<compile_context>
chip_gen: v7x
topology: tpu7x:2x2x1
jax: 0.10.0
libtpu: 0.0.40
codegen_flags: <defaults>
</compile_context>

<pallas_src>
import functools
import math

import jax
import jax.numpy as jnp
from jax.experimental import pallas as pl
from jax.experimental.pallas import tpu as pltpu


def _pad128(n):
    return ((n + 127) // 128) * 128


# ----------------------------------------------------------------------------
# Fused whole-forward kernel
# ----------------------------------------------------------------------------
def bert_fused_kernel(
    emb_ref, maskg_ref, eg_ref, eb_ref,
    wqkv_ref, bqkv_ref, wo_ref, bo_ref, ln1g_ref, ln1b_ref,
    wi_ref, bi_ref, wo2_ref, bo2_ref, ln2g_ref, ln2b_ref,
    poolw_ref, poolb_ref, clsw_ref, clsb_ref,
    out_ref,          # (8, 128) lane-dense packed output slab
    ctx_acc,          # (B*S, H) f32 VMEM scratch: per-head ctx merge buffer
    *, B, S, H, nh, L, C, eps,
):
    dh = H // nh
    T = B * S
    scale = 1.0 / math.sqrt(dh)
    bf16 = jnp.bfloat16

    def layernorm(x, g, b):        # f32 math
        m = jnp.mean(x, axis=-1, keepdims=True)
        v = jnp.mean((x - m) * (x - m), axis=-1, keepdims=True)
        return (x - m) * jax.lax.rsqrt(v + eps) * g + b

    def gelu(x):                   # tanh approximation, f32 (EUP)
        c = math.sqrt(2.0 / math.pi)
        return 0.5 * x * (1.0 + jnp.tanh(c * (x + 0.044715 * x * x * x)))

    # --- embeddings: (word + pos + type) summed outside; LN here (f32) ------
    x = layernorm(emb_ref[...], eg_ref[...], eb_ref[...])        # (T, H) f32
    # additive mask bias, pre-tiled per (head, batch) group in the wrapper.
    bias_g = maskg_ref[...][:, None, :]                          # (nh*B, 1, S)

    # --- encoder layers (static loop; weights stacked along leading L) ------
    for l in range(L):
        xb = x.astype(bf16)

        # Fused QKV projection: ONE lane-dense bf16 MXU op (N padded to 128).
        qkv = jnp.dot(xb, wqkv_ref[l],
                      preferred_element_type=jnp.float32) + bqkv_ref[l]  # (T, QKVP) f32

        # Head-batched Q/K/V: flatten (head, batch) into one batch dim g so
        # scores + context are each a single batched einsum on the MXU.
        # Group ordering g = h*B + b (matches the mask tiling in the wrapper).
        def heads(base):
            parts = [qkv[:, base + h * dh: base + (h + 1) * dh].reshape(B, S, dh)
                     for h in range(nh)]
            return jnp.concatenate(parts, axis=0)                # (nh*B, S, dh)

        q = (heads(0) * scale).astype(bf16)
        k = heads(H).astype(bf16)
        v = heads(2 * H).astype(bf16)

        s = jnp.einsum("gqd,gkd->gqk", q, k,
                       preferred_element_type=jnp.float32) + bias_g       # (nh*B, S, S)
        s = s - jnp.max(s, axis=-1, keepdims=True)
        p = jnp.exp(s)
        p = p * pl.reciprocal(jnp.sum(p, axis=-1, keepdims=True), approx=True)

        ctx = jnp.einsum("gqk,gkd->gqd", p.astype(bf16), v,
                         preferred_element_type=jnp.float32)               # (nh*B, S, dh)

        # Merge heads into a token-major (T, H) VMEM scratch, then ONE K=H
        # output-projection matmul (replaces nh K=dh dots + VPU accumulates).
        for h in range(nh):
            ctx_acc[:, h * dh:(h + 1) * dh] = ctx[h * B:(h + 1) * B].reshape(T, dh)
        attn = jnp.dot(ctx_acc[...].astype(bf16), wo_ref[l],
                       preferred_element_type=jnp.float32) + bo_ref[l]

        # residual + LN (fused, f32, no HBM writeback)
        x = layernorm(attn + x, ln1g_ref[l], ln1b_ref[l])

        # FFN: GELU(x @ Wi + bi) @ Wo2 + bo2 (lane-padded I), residual + LN.
        xb = x.astype(bf16)
        inter = gelu(jnp.dot(xb, wi_ref[l],
                             preferred_element_type=jnp.float32) + bi_ref[l])   # (T, IP)
        ffn = jnp.dot(inter.astype(bf16), wo2_ref[l],
                      preferred_element_type=jnp.float32) + bo2_ref[l]
        x = layernorm(ffn + x, ln2g_ref[l], ln2b_ref[l])

    # --- heads: CLS token, pooler (tanh), classifier -------------------------
    cls = x.reshape(B, S, H)[:, 0, :]                                         # (B, H) f32
    pooled = jnp.tanh(jnp.dot(cls.astype(bf16), poolw_ref[...],
                              preferred_element_type=jnp.float32) + poolb_ref[...])
    # nn.Dropout at inference is identity.
    # TODO(synk): training-mode dropout (stochastic masking) not implemented.
    logits = jnp.dot(pooled.astype(bf16), clsw_ref[...],
                     preferred_element_type=jnp.float32) + clsb_ref[...]

    # Single lane-dense packed output slab: cls | pooled | logits | zero pad.
    out_ref[...] = jnp.zeros_like(out_ref)
    out_ref[0:B, 0:H] = cls
    out_ref[0:B, H:2 * H] = pooled
    out_ref[0:B, 2 * H:2 * H + C] = logits


# ----------------------------------------------------------------------------
# Synthetic BERT parameters (deterministic, no checkpoint)
# ----------------------------------------------------------------------------
CFG = dict(
    vocab=50,
    max_pos=16,
    hidden=32,
    heads=4,
    layers=2,
    intermediate=64,
    num_classes=3,
)


def init_params(key, cfg):
    scale = 0.02
    H, I = cfg["hidden"], cfg["intermediate"]

    def nrm(k, shape):
        return jax.random.normal(k, shape, jnp.float32) * scale

    keys = iter(jax.random.split(key, 8 + 6 * cfg["layers"]))
    p = {
        "word_emb": nrm(next(keys), (cfg["vocab"], H)),
        "pos_emb": nrm(next(keys), (cfg["max_pos"], H)),
        "type_emb": nrm(next(keys), (2, H)),
        "emb_ln_g": jnp.ones((H,), jnp.float32),
        "emb_ln_b": jnp.zeros((H,), jnp.float32),
        "pool_w": nrm(next(keys), (H, H)),
        "pool_b": jnp.zeros((H,), jnp.float32),
        "cls_w": nrm(next(keys), (H, cfg["num_classes"])),
        "cls_b": jnp.zeros((cfg["num_classes"],), jnp.float32),
        "layers": [],
    }
    for _ in range(cfg["layers"]):
        layer = {
            "wq": nrm(next(keys), (H, H)), "bq": jnp.zeros((H,), jnp.float32),
            "wk": nrm(next(keys), (H, H)), "bk": jnp.zeros((H,), jnp.float32),
            "wv": nrm(next(keys), (H, H)), "bv": jnp.zeros((H,), jnp.float32),
            "wo": nrm(next(keys), (H, H)), "bo": jnp.zeros((H,), jnp.float32),
            "ln1_g": jnp.ones((H,), jnp.float32), "ln1_b": jnp.zeros((H,), jnp.float32),
            "wi": nrm(next(keys), (H, I)), "bi": jnp.zeros((I,), jnp.float32),
            "wo2": nrm(next(keys), (I, H)), "bo2": jnp.zeros((H,), jnp.float32),
            "ln2_g": jnp.ones((H,), jnp.float32), "ln2_b": jnp.zeros((H,), jnp.float32),
        }
        p["layers"].append(layer)
    return p


def pack_params(params, cfg):
    """Stack per-layer weights along a leading L axis, fuse Wq/Wk/Wv -> Wqkv,
    zero-pad the 3H / intermediate lane dims to multiples of 128, and cast all
    matmul weights to bf16 (MXU-native).  Biases and LN params stay f32."""
    layers = params["layers"]
    H, I = cfg["hidden"], cfg["intermediate"]
    QKVP = _pad128(3 * H)
    IP = _pad128(I)
    bf16 = jnp.bfloat16

    def stk(name):
        return jnp.stack([l[name] for l in layers])

    def stk_row(name):  # (L, 1, N) so a per-layer slice broadcasts over tokens
        return jnp.stack([l[name][None, :] for l in layers])

    wqkv = jnp.stack([jnp.concatenate([l["wq"], l["wk"], l["wv"]], axis=1)
                      for l in layers])                                    # (L, H, 3H)
    bqkv = jnp.stack([jnp.concatenate([l["bq"], l["bk"], l["bv"]])[None, :]
                      for l in layers])                                    # (L, 1, 3H)
    wqkv = jnp.pad(wqkv, ((0, 0), (0, 0), (0, QKVP - 3 * H)))
    bqkv = jnp.pad(bqkv, ((0, 0), (0, 0), (0, QKVP - 3 * H)))
    wi = jnp.pad(stk("wi"), ((0, 0), (0, 0), (0, IP - I)))
    bi = jnp.pad(stk_row("bi"), ((0, 0), (0, 0), (0, IP - I)))
    wo2 = jnp.pad(stk("wo2"), ((0, 0), (0, IP - I), (0, 0)))

    return {
        "word_emb": params["word_emb"],
        "pos_emb": params["pos_emb"],
        "type_emb": params["type_emb"],
        "emb_ln_g": params["emb_ln_g"][None, :],
        "emb_ln_b": params["emb_ln_b"][None, :],
        "wqkv": wqkv.astype(bf16), "bqkv": bqkv,
        "wo": stk("wo").astype(bf16), "bo": stk_row("bo"),
        "ln1_g": stk_row("ln1_g"), "ln1_b": stk_row("ln1_b"),
        "wi": wi.astype(bf16), "bi": bi,
        "wo2": wo2.astype(bf16), "bo2": stk_row("bo2"),
        "ln2_g": stk_row("ln2_g"), "ln2_b": stk_row("ln2_b"),
        "pool_w": params["pool_w"].astype(bf16), "pool_b": params["pool_b"][None, :],
        "cls_w": params["cls_w"].astype(bf16), "cls_b": params["cls_b"][None, :],
    }


# ----------------------------------------------------------------------------
# TextBert forward: one fused pallas_call
# ----------------------------------------------------------------------------
def text_bert_forward(packed, input_ids, attention_mask, cfg):
    B, S = input_ids.shape
    H, nh, L = cfg["hidden"], cfg["heads"], cfg["layers"]
    C = cfg["num_classes"]
    T = B * S
    QKVP = packed["wqkv"].shape[-1]
    IP = packed["wi"].shape[-1]
    assert 2 * H + C <= 128, "packed output slab assumes cls|pooled|logits fit 128 lanes"
    ROWS = pl.cdiv(B, 8) * 8

    # Embedding gather + add is glue (XLA); LN happens inside the kernel.
    word = jnp.take(packed["word_emb"], input_ids, axis=0)                  # (B,S,H)
    emb = (word + packed["pos_emb"][:S][None, :, :]
           + packed["type_emb"][0][None, None, :]).reshape(T, H)
    # TODO(synk): token_type_ids hard-coded to segment 0 (matches the ref).
    # additive attention-mask bias, pre-tiled per (head, batch) group g=h*B+b;
    # rows with an all-zero mask degrade to a uniform softmax (as in ref).
    mask_bias = (1.0 - attention_mask.astype(jnp.float32)) * -10000.0      # (B, S)
    mask_g = jnp.tile(mask_bias, (nh, 1))                                   # (nh*B, S)

    def full(shape):  # whole-array block, single grid step
        return pl.BlockSpec(shape, lambda i, _s=shape: (0,) * len(_s))

    kernel = functools.partial(bert_fused_kernel,
                               B=B, S=S, H=H, nh=nh, L=L, C=C, eps=1e-12)

    slab = pl.pallas_call(
        kernel,
        out_shape=jax.ShapeDtypeStruct((ROWS, 128), jnp.float32),
        grid=(1,),
        in_specs=[
            full((T, H)), full((nh * B, S)),
            full((1, H)), full((1, H)),
            full((L, H, QKVP)), full((L, 1, QKVP)),
            full((L, H, H)), full((L, 1, H)),
            full((L, 1, H)), full((L, 1, H)),
            full((L, H, IP)), full((L, 1, IP)),
            full((L, IP, H)), full((L, 1, H)),
            full((L, 1, H)), full((L, 1, H)),
            full((H, H)), full((1, H)),
            full((H, C)), full((1, C)),
        ],
        out_specs=full((ROWS, 128)),
        scratch_shapes=[pltpu.VMEM((T, H), jnp.float32)],   # ctx head-merge buffer
        compiler_params=pltpu.CompilerParams(
            dimension_semantics=("arbitrary",),
            vmem_limit_bytes=32 * 1024 * 1024,
        ),
    )(
        emb, mask_g,
        packed["emb_ln_g"], packed["emb_ln_b"],
        packed["wqkv"], packed["bqkv"],
        packed["wo"], packed["bo"],
        packed["ln1_g"], packed["ln1_b"],
        packed["wi"], packed["bi"],
        packed["wo2"], packed["bo2"],
        packed["ln2_g"], packed["ln2_b"],
        packed["pool_w"], packed["pool_b"],
        packed["cls_w"], packed["cls_b"],
    )

    # Slice the lane-dense slab apart (XLA glue).
    cls_repr = slab[:B, 0:H]
    pooler = slab[:B, H:2 * H]
    logits = slab[:B, 2 * H:2 * H + C]
    return {"logits": logits, "cls_repr": cls_repr, "pooler_repr": pooler}


# ----------------------------------------------------------------------------
# Pure-JAX (f32) reference for sanity checking
# ----------------------------------------------------------------------------
def _ref_forward(params, input_ids, attention_mask, cfg):
    B, S = input_ids.shape
    H, nh = cfg["hidden"], cfg["heads"]
    dh = H // nh

    def ln(x, g, b, eps=1e-12):
        m = jnp.mean(x, -1, keepdims=True)
        v = jnp.mean((x - m) ** 2, -1, keepdims=True)
        return (x - m) * jax.lax.rsqrt(v + eps) * g + b

    def gelu(x):
        c = math.sqrt(2.0 / math.pi)
        return 0.5 * x * (1.0 + jnp.tanh(c * (x + 0.044715 * x ** 3)))

    x = (jnp.take(params["word_emb"], input_ids, axis=0)
         + params["pos_emb"][:S][None] + params["type_emb"][0][None, None])
    x = ln(x, params["emb_ln_g"], params["emb_ln_b"])
    bias = (1.0 - attention_mask.astype(jnp.float32))[:, None, None, :] * -10000.0
    for l in params["layers"]:
        q = (x @ l["wq"] + l["bq"]).reshape(B, S, nh, dh).transpose(0, 2, 1, 3)
        k = (x @ l["wk"] + l["bk"]).reshape(B, S, nh, dh).transpose(0, 2, 1, 3)
        v = (x @ l["wv"] + l["bv"]).reshape(B, S, nh, dh).transpose(0, 2, 1, 3)
        s = jnp.einsum("bhqd,bhkd->bhqk", q, k) / math.sqrt(dh) + bias
        p = jax.nn.softmax(s, axis=-1)
        ctx = jnp.einsum("bhqk,bhkd->bhqd", p, v).transpose(0, 2, 1, 3).reshape(B, S, H)
        x = ln(ctx @ l["wo"] + l["bo"] + x, l["ln1_g"], l["ln1_b"])
        f = gelu(x @ l["wi"] + l["bi"]) @ l["wo2"] + l["bo2"]
        x = ln(f + x, l["ln2_g"], l["ln2_b"])
    cls = x[:, 0, :]
    pool = jnp.tanh(cls @ params["pool_w"] + params["pool_b"])
    logits = pool @ params["cls_w"] + params["cls_b"]
    return {"logits": logits, "cls_repr": cls, "pooler_repr": pool}


if __name__ == "__main__":
    B, S = 2, 8
    key = jax.random.PRNGKey(0)
    k_param, k_ids = jax.random.split(key)
    params = init_params(k_param, CFG)
    packed = pack_params(params, CFG)   # done once, outside the forward

    input_ids = jax.random.randint(k_ids, (B, S), 0, CFG["vocab"], dtype=jnp.int32)
    attention_mask = jnp.array([[1, 1, 1, 1, 1, 1, 0, 0],
                                [1, 1, 1, 1, 0, 0, 0, 0]], dtype=jnp.int32)

    out = text_bert_forward(packed, input_ids, attention_mask, CFG)
    jax.block_until_ready(out["logits"])

    # Kernel uses bf16 MXU operands (f32 accumulation) + EUP approx reciprocal
    # in the softmax denominator, so the match against the pure-f32 reference
    # is bounded by bf16 operand rounding: compare at 1e-2.
    ref = _ref_forward(params, input_ids, attention_mask, CFG)
    for name in ("logits", "cls_repr", "pooler_repr"):
        assert jnp.allclose(out[name], ref[name], atol=1e-2, rtol=1e-2), name

    assert out["logits"].shape == (B, CFG["num_classes"])
    assert out["cls_repr"].shape == (B, CFG["hidden"])
    assert out["pooler_repr"].shape == (B, CFG["hidden"])
    print("KERNEL_OK")
</pallas_src>

<mosaic_0001>
module attributes {stable_mosaic.version = 11 : i64} {
  func.func @bert_fused_kernel(%arg0: i32, %arg1: memref<16x32xf32, #tpu.memory_space<vmem>>, %arg2: memref<8x8xf32, #tpu.memory_space<vmem>>, %arg3: memref<1x32xf32, #tpu.memory_space<vmem>>, %arg4: memref<1x32xf32, #tpu.memory_space<vmem>>, %arg5: memref<2x32x128xbf16, #tpu.memory_space<vmem>>, %arg6: memref<2x1x128xf32, #tpu.memory_space<vmem>>, %arg7: memref<2x32x32xbf16, #tpu.memory_space<vmem>>, %arg8: memref<2x1x32xf32, #tpu.memory_space<vmem>>, %arg9: memref<2x1x32xf32, #tpu.memory_space<vmem>>, %arg10: memref<2x1x32xf32, #tpu.memory_space<vmem>>, %arg11: memref<2x32x128xbf16, #tpu.memory_space<vmem>>, %arg12: memref<2x1x128xf32, #tpu.memory_space<vmem>>, %arg13: memref<2x128x32xbf16, #tpu.memory_space<vmem>>, %arg14: memref<2x1x32xf32, #tpu.memory_space<vmem>>, %arg15: memref<2x1x32xf32, #tpu.memory_space<vmem>>, %arg16: memref<2x1x32xf32, #tpu.memory_space<vmem>>, %arg17: memref<32x32xbf16, #tpu.memory_space<vmem>>, %arg18: memref<1x32xf32, #tpu.memory_space<vmem>>, %arg19: memref<32x3xbf16, #tpu.memory_space<vmem>>, %arg20: memref<1x3xf32, #tpu.memory_space<vmem>>, %arg21: memref<8x128xf32, #tpu.memory_space<vmem>>, %arg22: memref<16x32xf32, #tpu.memory_space<vmem>>) attributes {dimension_semantics = [#tpu.dimension_semantics<arbitrary>], iteration_bounds = array<i64: 1>, scalar_prefetch = 0 : i64, scratch_operands = 1 : i64, tpu.core_type = #tpu.core_type<tc>, window_params = [{pipeline_mode = #tpu.pipeline_mode<synchronous>, transform_indices = @transform_0, window_bounds = array<i64: 16, 32>}, {pipeline_mode = #tpu.pipeline_mode<synchronous>, transform_indices = @transform_1, window_bounds = array<i64: 8, 8>}, {pipeline_mode = #tpu.pipeline_mode<synchronous>, transform_indices = @transform_2, window_bounds = array<i64: 1, 32>}, {pipeline_mode = #tpu.pipeline_mode<synchronous>, transform_indices = @transform_3, window_bounds = array<i64: 1, 32>}, {pipeline_mode = #tpu.pipeline_mode<synchronous>, transform_indices = @transform_4, window_bounds = array<i64: 2, 32, 128>}, {pipeline_mode = #tpu.pipeline_mode<synchronous>, transform_indices = @transform_5, window_bounds = array<i64: 2, 1, 128>}, {pipeline_mode = #tpu.pipeline_mode<synchronous>, transform_indices = @transform_6, window_bounds = array<i64: 2, 32, 32>}, {pipeline_mode = #tpu.pipeline_mode<synchronous>, transform_indices = @transform_7, window_bounds = array<i64: 2, 1, 32>}, {pipeline_mode = #tpu.pipeline_mode<synchronous>, transform_indices = @transform_8, window_bounds = array<i64: 2, 1, 32>}, {pipeline_mode = #tpu.pipeline_mode<synchronous>, transform_indices = @transform_9, window_bounds = array<i64: 2, 1, 32>}, {pipeline_mode = #tpu.pipeline_mode<synchronous>, transform_indices = @transform_10, window_bounds = array<i64: 2, 32, 128>}, {pipeline_mode = #tpu.pipeline_mode<synchronous>, transform_indices = @transform_11, window_bounds = array<i64: 2, 1, 128>}, {pipeline_mode = #tpu.pipeline_mode<synchronous>, transform_indices = @transform_12, window_bounds = array<i64: 2, 128, 32>}, {pipeline_mode = #tpu.pipeline_mode<synchronous>, transform_indices = @transform_13, window_bounds = array<i64: 2, 1, 32>}, {pipeline_mode = #tpu.pipeline_mode<synchronous>, transform_indices = @transform_14, window_bounds = array<i64: 2, 1, 32>}, {pipeline_mode = #tpu.pipeline_mode<synchronous>, transform_indices = @transform_15, window_bounds = array<i64: 2, 1, 32>}, {pipeline_mode = #tpu.pipeline_mode<synchronous>, transform_indices = @transform_16, window_bounds = array<i64: 32, 32>}, {pipeline_mode = #tpu.pipeline_mode<synchronous>, transform_indices = @transform_17, window_bounds = array<i64: 1, 32>}, {pipeline_mode = #tpu.pipeline_mode<synchronous>, transform_indices = @transform_18, window_bounds = array<i64: 32, 3>}, {pipeline_mode = #tpu.pipeline_mode<synchronous>, transform_indices = @transform_19, window_bounds = array<i64: 1, 3>}, {pipeline_mode = #tpu.pipeline_mode<synchronous>, transform_indices = @transform_20, window_bounds = array<i64: 8, 128>}]} {
    %c0 = arith.constant 0 : index
    %c0_0 = arith.constant 0 : index
    %0 = vector.load %arg1[%c0, %c0_0] : memref<16x32xf32, #tpu.memory_space<vmem>>, vector<16x32xf32>
    %c0_1 = arith.constant 0 : index
    %c0_2 = arith.constant 0 : index
    %1 = vector.load %arg3[%c0_1, %c0_2] : memref<1x32xf32, #tpu.memory_space<vmem>>, vector<1x32xf32>
    %c0_3 = arith.constant 0 : index
    %c0_4 = arith.constant 0 : index
    %2 = vector.load %arg4[%c0_3, %c0_4] : memref<1x32xf32, #tpu.memory_space<vmem>>, vector<1x32xf32>
    %cst = arith.constant dense<0.000000e+00> : vector<16xf32>
    %3 = vector.multi_reduction <add>, %0, %cst [1] : vector<16x32xf32> to vector<16xf32>
    %4 = vector.shape_cast %3 : vector<16xf32> to vector<16x1xf32>
    %cst_5 = arith.constant 3.200000e+01 : f32
    %5 = vector.broadcast %cst_5 : f32 to vector<16x1xf32>
    %6 = arith.divf %4, %5 : vector<16x1xf32>
    %7 = vector.broadcast %6 : vector<16x1xf32> to vector<16x32xf32>
    %8 = arith.subf %0, %7 : vector<16x32xf32>
    %9 = vector.broadcast %6 : vector<16x1xf32> to vector<16x32xf32>
    %10 = arith.subf %0, %9 : vector<16x32xf32>
    %11 = arith.mulf %8, %10 : vector<16x32xf32>
    %cst_6 = arith.constant dense<0.000000e+00> : vector<16xf32>
    %12 = vector.multi_reduction <add>, %11, %cst_6 [1] : vector<16x32xf32> to vector<16xf32>
    %13 = vector.shape_cast %12 : vector<16xf32> to vector<16x1xf32>
    %cst_7 = arith.constant 3.200000e+01 : f32
    %14 = vector.broadcast %cst_7 : f32 to vector<16x1xf32>
    %15 = arith.divf %13, %14 : vector<16x1xf32>
    %16 = vector.broadcast %6 : vector<16x1xf32> to vector<16x32xf32>
    %17 = arith.subf %0, %16 : vector<16x32xf32>
    %cst_8 = arith.constant 9.99999996E-13 : f32
    %18 = vector.broadcast %cst_8 : f32 to vector<16x1xf32>
    %19 = arith.addf %15, %18 : vector<16x1xf32>
    %20 = math.rsqrt %19 : vector<16x1xf32>
    %21 = vector.broadcast %20 : vector<16x1xf32> to vector<16x32xf32>
    %22 = arith.mulf %17, %21 : vector<16x32xf32>
    %23 = vector.broadcast %1 : vector<1x32xf32> to vector<16x32xf32>
    %24 = arith.mulf %22, %23 : vector<16x32xf32>
    %25 = vector.broadcast %2 : vector<1x32xf32> to vector<16x32xf32>
    %26 = arith.addf %24, %25 : vector<16x32xf32>
    %c0_9 = arith.constant 0 : index
    %c0_10 = arith.constant 0 : index
    %27 = vector.load %arg2[%c0_9, %c0_10] : memref<8x8xf32, #tpu.memory_space<vmem>>, vector<8x8xf32>
    %28 = vector.shape_cast %27 : vector<8x8xf32> to vector<8x1x8xf32>
    %29 = arith.truncf %26 : vector<16x32xf32> to vector<16x32xbf16>
    %c0_11 = arith.constant 0 : index
    %c0_12 = arith.constant 0 : index
    %c0_13 = arith.constant 0 : index
    %30 = vector.load %arg5[%c0_11, %c0_12, %c0_13] : memref<2x32x128xbf16, #tpu.memory_space<vmem>>, vector<1x32x128xbf16>
    %31 = vector.shape_cast %30 : vector<1x32x128xbf16> to vector<32x128xbf16>
    %cst_14 = arith.constant dense<0.000000e+00> : vector<16x128xf32>
    %32 = tpu.matmul %29, %31, %cst_14 {dimension_numbers = #tpu.dot_dimension_numbers<[1], [0], [0], [1], [0, 0, 1, 1], [], []>} : vector<16x32xbf16>, vector<32x128xbf16>, vector<16x128xf32> -> vector<16x128xf32>
    %c0_15 = arith.constant 0 : index
    %c0_16 = arith.constant 0 : index
    %c0_17 = arith.constant 0 : index
    %33 = vector.load %arg6[%c0_15, %c0_16, %c0_17] : memref<2x1x128xf32, #tpu.memory_space<vmem>>, vector<1x1x128xf32>
    %34 = vector.shape_cast %33 : vector<1x1x128xf32> to vector<1x128xf32>
    %35 = vector.broadcast %34 : vector<1x128xf32> to vector<16x128xf32>
    %36 = arith.addf %32, %35 : vector<16x128xf32>
    %37 = vector.extract_strided_slice %36 {offsets = [0, 0], sizes = [16, 8], strides = [1, 1]} : vector<16x128xf32> to vector<16x8xf32>
    %38 = vector.shape_cast %37 : vector<16x8xf32> to vector<2x8x8xf32>
    %39 = vector.extract_strided_slice %36 {offsets = [0, 8], sizes = [16, 8], strides = [1, 1]} : vector<16x128xf32> to vector<16x8xf32>
    %40 = vector.shape_cast %39 : vector<16x8xf32> to vector<2x8x8xf32>
    %41 = vector.extract_strided_slice %36 {offsets = [0, 16], sizes = [16, 8], strides = [1, 1]} : vector<16x128xf32> to vector<16x8xf32>
    %42 = vector.shape_cast %41 : vector<16x8xf32> to vector<2x8x8xf32>
    %43 = vector.extract_strided_slice %36 {offsets = [0, 24], sizes = [16, 8], strides = [1, 1]} : vector<16x128xf32> to vector<16x8xf32>
    %44 = vector.shape_cast %43 : vector<16x8xf32> to vector<2x8x8xf32>
    %45 = tpu.concatenate %38, %40, %42, %44 in 0 : vector<2x8x8xf32>, vector<2x8x8xf32>, vector<2x8x8xf32>, vector<2x8x8xf32> -> vector<8x8x8xf32>
    %cst_18 = arith.constant 0.353553385 : f32
    %46 = vector.broadcast %cst_18 : f32 to vector<8x8x8xf32>
    %47 = arith.mulf %45, %46 : vector<8x8x8xf32>
    %48 = arith.truncf %47 : vector<8x8x8xf32> to vector<8x8x8xbf16>
    %49 = vector.extract_strided_slice %36 {offsets = [0, 32], sizes = [16, 8], strides = [1, 1]} : vector<16x128xf32> to vector<16x8xf32>
    %50 = vector.shape_cast %49 : vector<16x8xf32> to vector<2x8x8xf32>
    %51 = vector.extract_strided_slice %36 {offsets = [0, 40], sizes = [16, 8], strides = [1, 1]} : vector<16x128xf32> to vector<16x8xf32>
    %52 = vector.shape_cast %51 : vector<16x8xf32> to vector<2x8x8xf32>
    %53 = vector.extract_strided_slice %36 {offsets = [0, 48], sizes = [16, 8], strides = [1, 1]} : vector<16x128xf32> to vector<16x8xf32>
    %54 = vector.shape_cast %53 : vector<16x8xf32> to vector<2x8x8xf32>
    %55 = vector.extract_strided_slice %36 {offsets = [0, 56], sizes = [16, 8], strides = [1, 1]} : vector<16x128xf32> to vector<16x8xf32>
    %56 = vector.shape_cast %55 : vector<16x8xf32> to vector<2x8x8xf32>
    %57 = tpu.concatenate %50, %52, %54, %56 in 0 : vector<2x8x8xf32>, vector<2x8x8xf32>, vector<2x8x8xf32>, vector<2x8x8xf32> -> vector<8x8x8xf32>
    %58 = arith.truncf %57 : vector<8x8x8xf32> to vector<8x8x8xbf16>
    %59 = vector.extract_strided_slice %36 {offsets = [0, 64], sizes = [16, 8], strides = [1, 1]} : vector<16x128xf32> to vector<16x8xf32>
    %60 = vector.shape_cast %59 : vector<16x8xf32> to vector<2x8x8xf32>
    %61 = vector.extract_strided_slice %36 {offsets = [0, 72], sizes = [16, 8], strides = [1, 1]} : vector<16x128xf32> to vector<16x8xf32>
    %62 = vector.shape_cast %61 : vector<16x8xf32> to vector<2x8x8xf32>
    %63 = vector.extract_strided_slice %36 {offsets = [0, 80], sizes = [16, 8], strides = [1, 1]} : vector<16x128xf32> to vector<16x8xf32>
    %64 = vector.shape_cast %63 : vector<16x8xf32> to vector<2x8x8xf32>
    %65 = vector.extract_strided_slice %36 {offsets = [0, 88], sizes = [16, 8], strides = [1, 1]} : vector<16x128xf32> to vector<16x8xf32>
    %66 = vector.shape_cast %65 : vector<16x8xf32> to vector<2x8x8xf32>
    %67 = tpu.concatenate %60, %62, %64, %66 in 0 : vector<2x8x8xf32>, vector<2x8x8xf32>, vector<2x8x8xf32>, vector<2x8x8xf32> -> vector<8x8x8xf32>
    %68 = arith.truncf %67 : vector<8x8x8xf32> to vector<8x8x8xbf16>
    "tpu.trace_start"() <{level = 10 : i32, message = "gqd,gkd->gqk"}> : () -> ()
    %cst_19 = arith.constant dense<0.000000e+00> : vector<8x8x8xf32>
    %69 = tpu.matmul %48, %58, %cst_19 {dimension_numbers = #tpu.dot_dimension_numbers<[2], [2], [1], [1], [0, 0, 0, 1, 1, 1], [0], [0]>} : vector<8x8x8xbf16>, vector<8x8x8xbf16>, vector<8x8x8xf32> -> vector<8x8x8xf32>
    "tpu.trace_stop"() : () -> ()
    %70 = vector.broadcast %28 : vector<8x1x8xf32> to vector<8x8x8xf32>
    %71 = arith.addf %69, %70 : vector<8x8x8xf32>
    %cst_20 = arith.constant dense<0xFF800000> : vector<8x8xf32>
    %72 = vector.multi_reduction <maximumf>, %71, %cst_20 [2] : vector<8x8x8xf32> to vector<8x8xf32>
    %73 = vector.shape_cast %72 : vector<8x8xf32> to vector<8x8x1xf32>
    %74 = vector.broadcast %73 : vector<8x8x1xf32> to vector<8x8x8xf32>
    %75 = arith.subf %71, %74 : vector<8x8x8xf32>
    %76 = math.exp %75 : vector<8x8x8xf32>
    %cst_21 = arith.constant dense<0.000000e+00> : vector<8x8xf32>
    %77 = vector.multi_reduction <add>, %76, %cst_21 [2] : vector<8x8x8xf32> to vector<8x8xf32>
    %78 = vector.shape_cast %77 : vector<8x8xf32> to vector<8x8x1xf32>
    %79 = tpu.reciprocal %78 {approx = true} : vector<8x8x1xf32> -> vector<8x8x1xf32>
    %80 = vector.broadcast %79 : vector<8x8x1xf32> to vector<8x8x8xf32>
    %81 = arith.mulf %76, %80 : vector<8x8x8xf32>
    %82 = arith.truncf %81 : vector<8x8x8xf32> to vector<8x8x8xbf16>
    "tpu.trace_start"() <{level = 10 : i32, message = "gqk,gkd->gqd"}> : () -> ()
    %cst_22 = arith.constant dense<0.000000e+00> : vector<8x8x8xf32>
    %83 = tpu.matmul %82, %68, %cst_22 {dimension_numbers = #tpu.dot_dimension_numbers<[2], [1], [1], [2], [0, 0, 0, 1, 1, 2], [0], [0]>} : vector<8x8x8xbf16>, vector<8x8x8xbf16>, vector<8x8x8xf32> -> vector<8x8x8xf32>
    "tpu.trace_stop"() : () -> ()
    %84 = vector.extract_strided_slice %83 {offsets = [0, 0, 0], sizes = [2, 8, 8], strides = [1, 1, 1]} : vector<8x8x8xf32> to vector<2x8x8xf32>
    %85 = vector.shape_cast %84 : vector<2x8x8xf32> to vector<16x8xf32>
    %c0_23 = arith.constant 0 : index
    %c0_24 = arith.constant 0 : index
    %86 = vector.load %arg22[%c0_23, %c0_24] : memref<16x32xf32, #tpu.memory_space<vmem>>, vector<16x8xf32>
    tpu.vector_store %arg22[%c0_23, %c0_24], %85 {strides = array<i32>} : memref<16x32xf32, #tpu.memory_space<vmem>>, vector<16x8xf32>,
    %87 = vector.extract_strided_slice %83 {offsets = [2, 0, 0], sizes = [2, 8, 8], strides = [1, 1, 1]} : vector<8x8x8xf32> to vector<2x8x8xf32>
    %88 = vector.shape_cast %87 : vector<2x8x8xf32> to vector<16x8xf32>
    %c0_25 = arith.constant 0 : index
    %c8 = arith.constant 8 : index
    %89 = vector.load %arg22[%c0_25, %c8] : memref<16x32xf32, #tpu.memory_space<vmem>>, vector<16x8xf32>
    tpu.vector_store %arg22[%c0_25, %c8], %88 {strides = array<i32>} : memref<16x32xf32, #tpu.memory_space<vmem>>, vector<16x8xf32>,
    %90 = vector.extract_strided_slice %83 {offsets = [4, 0, 0], sizes = [2, 8, 8], strides = [1, 1, 1]} : vector<8x8x8xf32> to vector<2x8x8xf32>
    %91 = vector.shape_cast %90 : vector<2x8x8xf32> to vector<16x8xf32>
    %c0_26 = arith.constant 0 : index
    %c16 = arith.constant 16 : index
    %92 = vector.load %arg22[%c0_26, %c16] : memref<16x32xf32, #tpu.memory_space<vmem>>, vector<16x8xf32>
    tpu.vector_store %arg22[%c0_26, %c16], %91 {strides = array<i32>} : memref<16x32xf32, #tpu.memory_space<vmem>>, vector<16x8xf32>,
    %93 = vector.extract_strided_slice %83 {offsets = [6, 0, 0], sizes = [2, 8, 8], strides = [1, 1, 1]} : vector<8x8x8xf32> to vector<2x8x8xf32>
    %94 = vector.shape_cast %93 : vector<2x8x8xf32> to vector<16x8xf32>
    %c0_27 = arith.constant 0 : index
    %c24 = arith.constant 24 : index
    %95 = vector.load %arg22[%c0_27, %c24] : memref<16x32xf32, #tpu.memory_space<vmem>>, vector<16x8xf32>
    tpu.vector_store %arg22[%c0_27, %c24], %94 {strides = array<i32>} : memref<16x32xf32, #tpu.memory_space<vmem>>, vector<16x8xf32>,
    %c0_28 = arith.constant 0 : index
    %c0_29 = arith.constant 0 : index
    %96 = vector.load %arg22[%c0_28, %c0_29] : memref<16x32xf32, #tpu.memory_space<vmem>>, vector<16x32xf32>
    %97 = arith.truncf %96 : vector<16x32xf32> to vector<16x32xbf16>
    %c0_30 = arith.constant 0 : index
    %c0_31 = arith.constant 0 : index
    %c0_32 = arith.constant 0 : index
    %98 = vector.load %arg7[%c0_30, %c0_31, %c0_32] : memref<2x32x32xbf16, #tpu.memory_space<vmem>>, vector<1x32x32xbf16>
    %99 = vector.shape_cast %98 : vector<1x32x32xbf16> to vector<32x32xbf16>
    %cst_33 = arith.constant dense<0.000000e+00> : vector<16x32xf32>
    %100 = tpu.matmul %97, %99, %cst_33 {dimension_numbers = #tpu.dot_dimension_numbers<[1], [0], [0], [1], [0, 0, 1, 1], [], []>} : vector<16x32xbf16>, vector<32x32xbf16>, vector<16x32xf32> -> vector<16x32xf32>
    %c0_34 = arith.constant 0 : index
    %c0_35 = arith.constant 0 : index
    %c0_36 = arith.constant 0 : index
    %101 = vector.load %arg8[%c0_34, %c0_35, %c0_36] : memref<2x1x32xf32, #tpu.memory_space<vmem>>, vector<1x1x32xf32>
    %102 = vector.shape_cast %101 : vector<1x1x32xf32> to vector<1x32xf32>
    %103 = vector.broadcast %102 : vector<1x32xf32> to vector<16x32xf32>
    %104 = arith.addf %100, %103 : vector<16x32xf32>
    %105 = arith.addf %104, %26 : vector<16x32xf32>
    %c0_37 = arith.constant 0 : index
    %c0_38 = arith.constant 0 : index
    %c0_39 = arith.constant 0 : index
    %106 = vector.load %arg9[%c0_37, %c0_38, %c0_39] : memref<2x1x32xf32, #tpu.memory_space<vmem>>, vector<1x1x32xf32>
    %107 = vector.shape_cast %106 : vector<1x1x32xf32> to vector<1x32xf32>
    %c0_40 = arith.constant 0 : index
    %c0_41 = arith.constant 0 : index
    %c0_42 = arith.constant 0 : index
    %108 = vector.load %arg10[%c0_40, %c0_41, %c0_42] : memref<2x1x32xf32, #tpu.memory_space<vmem>>, vector<1x1x32xf32>
    %109 = vector.shape_cast %108 : vector<1x1x32xf32> to vector<1x32xf32>
    %cst_43 = arith.constant dense<0.000000e+00> : vector<16xf32>
    %110 = vector.multi_reduction <add>, %105, %cst_43 [1] : vector<16x32xf32> to vector<16xf32>
    %111 = vector.shape_cast %110 : vector<16xf32> to vector<16x1xf32>
    %cst_44 = arith.constant 3.200000e+01 : f32
    %112 = vector.broadcast %cst_44 : f32 to vector<16x1xf32>
    %113 = arith.divf %111, %112 : vector<16x1xf32>
    %114 = vector.broadcast %113 : vector<16x1xf32> to vector<16x32xf32>
    %115 = arith.subf %105, %114 : vector<16x32xf32>
    %116 = vector.broadcast %113 : vector<16x1xf32> to vector<16x32xf32>
    %117 = arith.subf %105, %116 : vector<16x32xf32>
    %118 = arith.mulf %115, %117 : vector<16x32xf32>
    %cst_45 = arith.constant dense<0.000000e+00> : vector<16xf32>
    %119 = vector.multi_reduction <add>, %118, %cst_45 [1] : vector<16x32xf32> to vector<16xf32>
    %120 = vector.shape_cast %119 : vector<16xf32> to vector<16x1xf32>
    %cst_46 = arith.constant 3.200000e+01 : f32
    %121 = vector.broadcast %cst_46 : f32 to vector<16x1xf32>
    %122 = arith.divf %120, %121 : vector<16x1xf32>
    %123 = vector.broadcast %113 : vector<16x1xf32> to vector<16x32xf32>
    %124 = arith.subf %105, %123 : vector<16x32xf32>
    %cst_47 = arith.constant 9.99999996E-13 : f32
    %125 = vector.broadcast %cst_47 : f32 to vector<16x1xf32>
    %126 = arith.addf %122, %125 : vector<16x1xf32>
    %127 = math.rsqrt %126 : vector<16x1xf32>
    %128 = vector.broadcast %127 : vector<16x1xf32> to vector<16x32xf32>
    %129 = arith.mulf %124, %128 : vector<16x32xf32>
    %130 = vector.broadcast %107 : vector<1x32xf32> to vector<16x32xf32>
    %131 = arith.mulf %129, %130 : vector<16x32xf32>
    %132 = vector.broadcast %109 : vector<1x32xf32> to vector<16x32xf32>
    %133 = arith.addf %131, %132 : vector<16x32xf32>
    %134 = arith.truncf %133 : vector<16x32xf32> to vector<16x32xbf16>
    %c0_48 = arith.constant 0 : index
    %c0_49 = arith.constant 0 : index
    %c0_50 = arith.constant 0 : index
    %135 = vector.load %arg11[%c0_48, %c0_49, %c0_50] : memref<2x32x128xbf16, #tpu.memory_space<vmem>>, vector<1x32x128xbf16>
    %136 = vector.shape_cast %135 : vector<1x32x128xbf16> to vector<32x128xbf16>
    %cst_51 = arith.constant dense<0.000000e+00> : vector<16x128xf32>
    %137 = tpu.matmul %134, %136, %cst_51 {dimension_numbers = #tpu.dot_dimension_numbers<[1], [0], [0], [1], [0, 0, 1, 1], [], []>} : vector<16x32xbf16>, vector<32x128xbf16>, vector<16x128xf32> -> vector<16x128xf32>
    %c0_52 = arith.constant 0 : index
    %c0_53 = arith.constant 0 : index
    %c0_54 = arith.constant 0 : index
    %138 = vector.load %arg12[%c0_52, %c0_53, %c0_54] : memref<2x1x128xf32, #tpu.memory_space<vmem>>, vector<1x1x128xf32>
    %139 = vector.shape_cast %138 : vector<1x1x128xf32> to vector<1x128xf32>
    %140 = vector.broadcast %139 : vector<1x128xf32> to vector<16x128xf32>
    %141 = arith.addf %137, %140 : vector<16x128xf32>
    %cst_55 = arith.constant 5.000000e-01 : f32
    %142 = vector.broadcast %cst_55 : f32 to vector<16x128xf32>
    %143 = arith.mulf %142, %141 : vector<16x128xf32>
    %cst_56 = arith.constant 4.471500e-02 : f32
    %144 = vector.broadcast %cst_56 : f32 to vector<16x128xf32>
    %145 = arith.mulf %144, %141 : vector<16x128xf32>
    %146 = arith.mulf %145, %141 : vector<16x128xf32>
    %147 = arith.mulf %146, %141 : vector<16x128xf32>
    %148 = arith.addf %141, %147 : vector<16x128xf32>
    %cst_57 = arith.constant 0.797884583 : f32
    %149 = vector.broadcast %cst_57 : f32 to vector<16x128xf32>
    %150 = arith.mulf %149, %148 : vector<16x128xf32>
    %151 = math.tanh %150 : vector<16x128xf32>
    %cst_58 = arith.constant 1.000000e+00 : f32
    %152 = vector.broadcast %cst_58 : f32 to vector<16x128xf32>
    %153 = arith.addf %152, %151 : vector<16x128xf32>
    %154 = arith.mulf %143, %153 : vector<16x128xf32>
    %155 = arith.truncf %154 : vector<16x128xf32> to vector<16x128xbf16>
    %c0_59 = arith.constant 0 : index
    %c0_60 = arith.constant 0 : index
    %c0_61 = arith.constant 0 : index
    %156 = vector.load %arg13[%c0_59, %c0_60, %c0_61] : memref<2x128x32xbf16, #tpu.memory_space<vmem>>, vector<1x128x32xbf16>
    %157 = vector.shape_cast %156 : vector<1x128x32xbf16> to vector<128x32xbf16>
    %cst_62 = arith.constant dense<0.000000e+00> : vector<16x32xf32>
    %158 = tpu.matmul %155, %157, %cst_62 {dimension_numbers = #tpu.dot_dimension_numbers<[1], [0], [0], [1], [0, 0, 1, 1], [], []>} : vector<16x128xbf16>, vector<128x32xbf16>, vector<16x32xf32> -> vector<16x32xf32>
    %c0_63 = arith.constant 0 : index
    %c0_64 = arith.constant 0 : index
    %c0_65 = arith.constant 0 : index
    %159 = vector.load %arg14[%c0_63, %c0_64, %c0_65] : memref<2x1x32xf32, #tpu.memory_space<vmem>>, vector<1x1x32xf32>
    %160 = vector.shape_cast %159 : vector<1x1x32xf32> to vector<1x32xf32>
    %161 = vector.broadcast %160 : vector<1x32xf32> to vector<16x32xf32>
    %162 = arith.addf %158, %161 : vector<16x32xf32>
    %163 = arith.addf %162, %133 : vector<16x32xf32>
    %c0_66 = arith.constant 0 : index
    %c0_67 = arith.constant 0 : index
    %c0_68 = arith.constant 0 : index
    %164 = vector.load %arg15[%c0_66, %c0_67, %c0_68] : memref<2x1x32xf32, #tpu.memory_space<vmem>>, vector<1x1x32xf32>
    %165 = vector.shape_cast %164 : vector<1x1x32xf32> to vector<1x32xf32>
    %c0_69 = arith.constant 0 : index
    %c0_70 = arith.constant 0 : index
    %c0_71 = arith.constant 0 : index
    %166 = vector.load %arg16[%c0_69, %c0_70, %c0_71] : memref<2x1x32xf32, #tpu.memory_space<vmem>>, vector<1x1x32xf32>
    %167 = vector.shape_cast %166 : vector<1x1x32xf32> to vector<1x32xf32>
    %cst_72 = arith.constant dense<0.000000e+00> : vector<16xf32>
    %168 = vector.multi_reduction <add>, %163, %cst_72 [1] : vector<16x32xf32> to vector<16xf32>
    %169 = vector.shape_cast %168 : vector<16xf32> to vector<16x1xf32>
    %cst_73 = arith.constant 3.200000e+01 : f32
    %170 = vector.broadcast %cst_73 : f32 to vector<16x1xf32>
    %171 = arith.divf %169, %170 : vector<16x1xf32>
    %172 = vector.broadcast %171 : vector<16x1xf32> to vector<16x32xf32>
    %173 = arith.subf %163, %172 : vector<16x32xf32>
    %174 = vector.broadcast %171 : vector<16x1xf32> to vector<16x32xf32>
    %175 = arith.subf %163, %174 : vector<16x32xf32>
    %176 = arith.mulf %173, %175 : vector<16x32xf32>
    %cst_74 = arith.constant dense<0.000000e+00> : vector<16xf32>
    %177 = vector.multi_reduction <add>, %176, %cst_74 [1] : vector<16x32xf32> to vector<16xf32>
    %178 = vector.shape_cast %177 : vector<16xf32> to vector<16x1xf32>
    %cst_75 = arith.constant 3.200000e+01 : f32
    %179 = vector.broadcast %cst_75 : f32 to vector<16x1xf32>
    %180 = arith.divf %178, %179 : vector<16x1xf32>
    %181 = vector.broadcast %171 : vector<16x1xf32> to vector<16x32xf32>
    %182 = arith.subf %163, %181 : vector<16x32xf32>
    %cst_76 = arith.constant 9.99999996E-13 : f32
    %183 = vector.broadcast %cst_76 : f32 to vector<16x1xf32>
    %184 = arith.addf %180, %183 : vector<16x1xf32>
    %185 = math.rsqrt %184 : vector<16x1xf32>
    %186 = vector.broadcast %185 : vector<16x1xf32> to vector<16x32xf32>
    %187 = arith.mulf %182, %186 : vector<16x32xf32>
    %188 = vector.broadcast %165 : vector<1x32xf32> to vector<16x32xf32>
    %189 = arith.mulf %187, %188 : vector<16x32xf32>
    %190 = vector.broadcast %167 : vector<1x32xf32> to vector<16x32xf32>
    %191 = arith.addf %189, %190 : vector<16x32xf32>
    %192 = arith.truncf %191 : vector<16x32xf32> to vector<16x32xbf16>
    %c1 = arith.constant 1 : index
    %c0_77 = arith.constant 0 : index
    %c0_78 = arith.constant 0 : index
    %193 = vector.load %arg5[%c1, %c0_77, %c0_78] : memref<2x32x128xbf16, #tpu.memory_space<vmem>>, vector<1x32x128xbf16>
    %194 = vector.shape_cast %193 : vector<1x32x128xbf16> to vector<32x128xbf16>
    %cst_79 = arith.constant dense<0.000000e+00> : vector<16x128xf32>
    %195 = tpu.matmul %192, %194, %cst_79 {dimension_numbers = #tpu.dot_dimension_numbers<[1], [0], [0], [1], [0, 0, 1, 1], [], []>} : vector<16x32xbf16>, vector<32x128xbf16>, vector<16x128xf32> -> vector<16x128xf32>
    %c1_80 = arith.constant 1 : index
    %c0_81 = arith.constant 0 : index
    %c0_82 = arith.constant 0 : index
    %196 = vector.load %arg6[%c1_80, %c0_81, %c0_82] : memref<2x1x128xf32, #tpu.memory_space<vmem>>, vector<1x1x128xf32>
    %197 = vector.shape_cast %196 : vector<1x1x128xf32> to vector<1x128xf32>
    %198 = vector.broadcast %197 : vector<1x128xf32> to vector<16x128xf32>
    %199 = arith.addf %195, %198 : vector<16x128xf32>
    %200 = vector.extract_strided_slice %199 {offsets = [0, 0], sizes = [16, 8], strides = [1, 1]} : vector<16x128xf32> to vector<16x8xf32>
    %201 = vector.shape_cast %200 : vector<16x8xf32> to vector<2x8x8xf32>
    %202 = vector.extract_strided_slice %199 {offsets = [0, 8], sizes = [16, 8], strides = [1, 1]} : vector<16x128xf32> to vector<16x8xf32>
    %203 = vector.shape_cast %202 : vector<16x8xf32> to vector<2x8x8xf32>
    %204 = vector.extract_strided_slice %199 {offsets = [0, 16], sizes = [16, 8], strides = [1, 1]} : vector<16x128xf32> to vector<16x8xf32>
    %205 = vector.shape_cast %204 : vector<16x8xf32> to vector<2x8x8xf32>
    %206 = vector.extract_strided_slice %199 {offsets = [0, 24], sizes = [16, 8], strides = [1, 1]} : vector<16x128xf32> to vector<16x8xf32>
    %207 = vector.shape_cast %206 : vector<16x8xf32> to vector<2x8x8xf32>
    %208 = tpu.concatenate %201, %203, %205, %207 in 0 : vector<2x8x8xf32>, vector<2x8x8xf32>, vector<2x8x8xf32>, vector<2x8x8xf32> -> vector<8x8x8xf32>
    %cst_83 = arith.constant 0.353553385 : f32
    %209 = vector.broadcast %cst_83 : f32 to vector<8x8x8xf32>
    %210 = arith.mulf %208, %209 : vector<8x8x8xf32>
    %211 = arith.truncf %210 : vector<8x8x8xf32> to vector<8x8x8xbf16>
    %212 = vector.extract_strided_slice %199 {offsets = [0, 32], sizes = [16, 8], strides = [1, 1]} : vector<16x128xf32> to vector<16x8xf32>
    %213 = vector.shape_cast %212 : vector<16x8xf32> to vector<2x8x8xf32>
    %214 = vector.extract_strided_slice %199 {offsets = [0, 40], sizes = [16, 8], strides = [1, 1]} : vector<16x128xf32> to vector<16x8xf32>
    %215 = vector.shape_cast %214 : vector<16x8xf32> to vector<2x8x8xf32>
    %216 = vector.extract_strided_slice %199 {offsets = [0, 48], sizes = [16, 8], strides = [1, 1]} : vector<16x128xf32> to vector<16x8xf32>
    %217 = vector.shape_cast %216 : vector<16x8xf32> to vector<2x8x8xf32>
    %218 = vector.extract_strided_slice %199 {offsets = [0, 56], sizes = [16, 8], strides = [1, 1]} : vector<16x128xf32> to vector<16x8xf32>
    %219 = vector.shape_cast %218 : vector<16x8xf32> to vector<2x8x8xf32>
    %220 = tpu.concatenate %213, %215, %217, %219 in 0 : vector<2x8x8xf32>, vector<2x8x8xf32>, vector<2x8x8xf32>, vector<2x8x8xf32> -> vector<8x8x8xf32>
    %221 = arith.truncf %220 : vector<8x8x8xf32> to vector<8x8x8xbf16>
    %222 = vector.extract_strided_slice %199 {offsets = [0, 64], sizes = [16, 8], strides = [1, 1]} : vector<16x128xf32> to vector<16x8xf32>
    %223 = vector.shape_cast %222 : vector<16x8xf32> to vector<2x8x8xf32>
    %224 = vector.extract_strided_slice %199 {offsets = [0, 72], sizes = [16, 8], strides = [1, 1]} : vector<16x128xf32> to vector<16x8xf32>
    %225 = vector.shape_cast %224 : vector<16x8xf32> to vector<2x8x8xf32>
    %226 = vector.extract_strided_slice %199 {offsets = [0, 80], sizes = [16, 8], strides = [1, 1]} : vector<16x128xf32> to vector<16x8xf32>
    %227 = vector.shape_cast %226 : vector<16x8xf32> to vector<2x8x8xf32>
    %228 = vector.extract_strided_slice %199 {offsets = [0, 88], sizes = [16, 8], strides = [1, 1]} : vector<16x128xf32> to vector<16x8xf32>
    %229 = vector.shape_cast %228 : vector<16x8xf32> to vector<2x8x8xf32>
    %230 = tpu.concatenate %223, %225, %227, %229 in 0 : vector<2x8x8xf32>, vector<2x8x8xf32>, vector<2x8x8xf32>, vector<2x8x8xf32> -> vector<8x8x8xf32>
    %231 = arith.truncf %230 : vector<8x8x8xf32> to vector<8x8x8xbf16>
    "tpu.trace_start"() <{level = 10 : i32, message = "gqd,gkd->gqk"}> : () -> ()
    %cst_84 = arith.constant dense<0.000000e+00> : vector<8x8x8xf32>
    %232 = tpu.matmul %211, %221, %cst_84 {dimension_numbers = #tpu.dot_dimension_numbers<[2], [2], [1], [1], [0, 0, 0, 1, 1, 1], [0], [0]>} : vector<8x8x8xbf16>, vector<8x8x8xbf16>, vector<8x8x8xf32> -> vector<8x8x8xf32>
    "tpu.trace_stop"() : () -> ()
    %233 = vector.broadcast %28 : vector<8x1x8xf32> to vector<8x8x8xf32>
    %234 = arith.addf %232, %233 : vector<8x8x8xf32>
    %cst_85 = arith.constant dense<0xFF800000> : vector<8x8xf32>
    %235 = vector.multi_reduction <maximumf>, %234, %cst_85 [2] : vector<8x8x8xf32> to vector<8x8xf32>
    %236 = vector.shape_cast %235 : vector<8x8xf32> to vector<8x8x1xf32>
    %237 = vector.broadcast %236 : vector<8x8x1xf32> to vector<8x8x8xf32>
    %238 = arith.subf %234, %237 : vector<8x8x8xf32>
    %239 = math.exp %238 : vector<8x8x8xf32>
    %cst_86 = arith.constant dense<0.000000e+00> : vector<8x8xf32>
    %240 = vector.multi_reduction <add>, %239, %cst_86 [2] : vector<8x8x8xf32> to vector<8x8xf32>
    %241 = vector.shape_cast %240 : vector<8x8xf32> to vector<8x8x1xf32>
    %242 = tpu.reciprocal %241 {approx = true} : vector<8x8x1xf32> -> vector<8x8x1xf32>
    %243 = vector.broadcast %242 : vector<8x8x1xf32> to vector<8x8x8xf32>
    %244 = arith.mulf %239, %243 : vector<8x8x8xf32>
    %245 = arith.truncf %244 : vector<8x8x8xf32> to vector<8x8x8xbf16>
    "tpu.trace_start"() <{level = 10 : i32, message = "gqk,gkd->gqd"}> : () -> ()
    %cst_87 = arith.constant dense<0.000000e+00> : vector<8x8x8xf32>
    %246 = tpu.matmul %245, %231, %cst_87 {dimension_numbers = #tpu.dot_dimension_numbers<[2], [1], [1], [2], [0, 0, 0, 1, 1, 2], [0], [0]>} : vector<8x8x8xbf16>, vector<8x8x8xbf16>, vector<8x8x8xf32> -> vector<8x8x8xf32>
    "tpu.trace_stop"() : () -> ()
    %247 = vector.extract_strided_slice %246 {offsets = [0, 0, 0], sizes = [2, 8, 8], strides = [1, 1, 1]} : vector<8x8x8xf32> to vector<2x8x8xf32>
    %248 = vector.shape_cast %247 : vector<2x8x8xf32> to vector<16x8xf32>
    %c0_88 = arith.constant 0 : index
    %c0_89 = arith.constant 0 : index
    %249 = vector.load %arg22[%c0_88, %c0_89] : memref<16x32xf32, #tpu.memory_space<vmem>>, vector<16x8xf32>
    tpu.vector_store %arg22[%c0_88, %c0_89], %248 {strides = array<i32>} : memref<16x32xf32, #tpu.memory_space<vmem>>, vector<16x8xf32>,
    %250 = vector.extract_strided_slice %246 {offsets = [2, 0, 0], sizes = [2, 8, 8], strides = [1, 1, 1]} : vector<8x8x8xf32> to vector<2x8x8xf32>
    %251 = vector.shape_cast %250 : vector<2x8x8xf32> to vector<16x8xf32>
    %c0_90 = arith.constant 0 : index
    %c8_91 = arith.constant 8 : index
    %252 = vector.load %arg22[%c0_90, %c8_91] : memref<16x32xf32, #tpu.memory_space<vmem>>, vector<16x8xf32>
    tpu.vector_store %arg22[%c0_90, %c8_91], %251 {strides = array<i32>} : memref<16x32xf32, #tpu.memory_space<vmem>>, vector<16x8xf32>,
    %253 = vector.extract_strided_slice %246 {offsets = [4, 0, 0], sizes = [2, 8, 8], strides = [1, 1, 1]} : vector<8x8x8xf32> to vector<2x8x8xf32>
    %254 = vector.shape_cast %253 : vector<2x8x8xf32> to vector<16x8xf32>
    %c0_92 = arith.constant 0 : index
    %c16_93 = arith.constant 16 : index
    %255 = vector.load %arg22[%c0_92, %c16_93] : memref<16x32xf32, #tpu.memory_space<vmem>>, vector<16x8xf32>
    tpu.vector_store %arg22[%c0_92, %c16_93], %254 {strides = array<i32>} : memref<16x32xf32, #tpu.memory_space<vmem>>, vector<16x8xf32>,
    %256 = vector.extract_strided_slice %246 {offsets = [6, 0, 0], sizes = [2, 8, 8], strides = [1, 1, 1]} : vector<8x8x8xf32> to vector<2x8x8xf32>
    %257 = vector.shape_cast %256 : vector<2x8x8xf32> to vector<16x8xf32>
    %c0_94 = arith.constant 0 : index
    %c24_95 = arith.constant 24 : index
    %258 = vector.load %arg22[%c0_94, %c24_95] : memref<16x32xf32, #tpu.memory_space<vmem>>, vector<16x8xf32>
    tpu.vector_store %arg22[%c0_94, %c24_95], %257 {strides = array<i32>} : memref<16x32xf32, #tpu.memory_space<vmem>>, vector<16x8xf32>,
    %c0_96 = arith.constant 0 : index
    %c0_97 = arith.constant 0 : index
    %259 = vector.load %arg22[%c0_96, %c0_97] : memref<16x32xf32, #tpu.memory_space<vmem>>, vector<16x32xf32>
    %260 = arith.truncf %259 : vector<16x32xf32> to vector<16x32xbf16>
    %c1_98 = arith.constant 1 : index
    %c0_99 = arith.constant 0 : index
    %c0_100 = arith.constant 0 : index
    %261 = vector.load %arg7[%c1_98, %c0_99, %c0_100] : memref<2x32x32xbf16, #tpu.memory_space<vmem>>, vector<1x32x32xbf16>
    %262 = vector.shape_cast %261 : vector<1x32x32xbf16> to vector<32x32xbf16>
    %cst_101 = arith.constant dense<0.000000e+00> : vector<16x32xf32>
    %263 = tpu.matmul %260, %262, %cst_101 {dimension_numbers = #tpu.dot_dimension_numbers<[1], [0], [0], [1], [0, 0, 1, 1], [], []>} : vector<16x32xbf16>, vector<32x32xbf16>, vector<16x32xf32> -> vector<16x32xf32>
    %c1_102 = arith.constant 1 : index
    %c0_103 = arith.constant 0 : index
    %c0_104 = arith.constant 0 : index
    %264 = vector.load %arg8[%c1_102, %c0_103, %c0_104] : memref<2x1x32xf32, #tpu.memory_space<vmem>>, vector<1x1x32xf32>
    %265 = vector.shape_cast %264 : vector<1x1x32xf32> to vector<1x32xf32>
    %266 = vector.broadcast %265 : vector<1x32xf32> to vector<16x32xf32>
    %267 = arith.addf %263, %266 : vector<16x32xf32>
    %268 = arith.addf %267, %191 : vector<16x32xf32>
    %c1_105 = arith.constant 1 : index
    %c0_106 = arith.constant 0 : index
    %c0_107 = arith.constant 0 : index
    %269 = vector.load %arg9[%c1_105, %c0_106, %c0_107] : memref<2x1x32xf32, #tpu.memory_space<vmem>>, vector<1x1x32xf32>
    %270 = vector.shape_cast %269 : vector<1x1x32xf32> to vector<1x32xf32>
    %c1_108 = arith.constant 1 : index
    %c0_109 = arith.constant 0 : index
    %c0_110 = arith.constant 0 : index
    %271 = vector.load %arg10[%c1_108, %c0_109, %c0_110] : memref<2x1x32xf32, #tpu.memory_space<vmem>>, vector<1x1x32xf32>
    %272 = vector.shape_cast %271 : vector<1x1x32xf32> to vector<1x32xf32>
    %cst_111 = arith.constant dense<0.000000e+00> : vector<16xf32>
    %273 = vector.multi_reduction <add>, %268, %cst_111 [1] : vector<16x32xf32> to vector<16xf32>
    %274 = vector.shape_cast %273 : vector<16xf32> to vector<16x1xf32>
    %cst_112 = arith.constant 3.200000e+01 : f32
    %275 = vector.broadcast %cst_112 : f32 to vector<16x1xf32>
    %276 = arith.divf %274, %275 : vector<16x1xf32>
    %277 = vector.broadcast %276 : vector<16x1xf32> to vector<16x32xf32>
    %278 = arith.subf %268, %277 : vector<16x32xf32>
    %279 = vector.broadcast %276 : vector<16x1xf32> to vector<16x32xf32>
    %280 = arith.subf %268, %279 : vector<16x32xf32>
    %281 = arith.mulf %278, %280 : vector<16x32xf32>
    %cst_113 = arith.constant dense<0.000000e+00> : vector<16xf32>
    %282 = vector.multi_reduction <add>, %281, %cst_113 [1] : vector<16x32xf32> to vector<16xf32>
    %283 = vector.shape_cast %282 : vector<16xf32> to vector<16x1xf32>
    %cst_114 = arith.constant 3.200000e+01 : f32
    %284 = vector.broadcast %cst_114 : f32 to vector<16x1xf32>
    %285 = arith.divf %283, %284 : vector<16x1xf32>
    %286 = vector.broadcast %276 : vector<16x1xf32> to vector<16x32xf32>
    %287 = arith.subf %268, %286 : vector<16x32xf32>
    %cst_115 = arith.constant 9.99999996E-13 : f32
    %288 = vector.broadcast %cst_115 : f32 to vector<16x1xf32>
    %289 = arith.addf %285, %288 : vector<16x1xf32>
    %290 = math.rsqrt %289 : vector<16x1xf32>
    %291 = vector.broadcast %290 : vector<16x1xf32> to vector<16x32xf32>
    %292 = arith.mulf %287, %291 : vector<16x32xf32>
    %293 = vector.broadcast %270 : vector<1x32xf32> to vector<16x32xf32>
    %294 = arith.mulf %292, %293 : vector<16x32xf32>
    %295 = vector.broadcast %272 : vector<1x32xf32> to vector<16x32xf32>
    %296 = arith.addf %294, %295 : vector<16x32xf32>
    %297 = arith.truncf %296 : vector<16x32xf32> to vector<16x32xbf16>
    %c1_116 = arith.constant 1 : index
    %c0_117 = arith.constant 0 : index
    %c0_118 = arith.constant 0 : index
    %298 = vector.load %arg11[%c1_116, %c0_117, %c0_118] : memref<2x32x128xbf16, #tpu.memory_space<vmem>>, vector<1x32x128xbf16>
    %299 = vector.shape_cast %298 : vector<1x32x128xbf16> to vector<32x128xbf16>
    %cst_119 = arith.constant dense<0.000000e+00> : vector<16x128xf32>
    %300 = tpu.matmul %297, %299, %cst_119 {dimension_numbers = #tpu.dot_dimension_numbers<[1], [0], [0], [1], [0, 0, 1, 1], [], []>} : vector<16x32xbf16>, vector<32x128xbf16>, vector<16x128xf32> -> vector<16x128xf32>
    %c1_120 = arith.constant 1 : index
    %c0_121 = arith.constant 0 : index
    %c0_122 = arith.constant 0 : index
    %301 = vector.load %arg12[%c1_120, %c0_121, %c0_122] : memref<2x1x128xf32, #tpu.memory_space<vmem>>, vector<1x1x128xf32>
    %302 = vector.shape_cast %301 : vector<1x1x128xf32> to vector<1x128xf32>
    %303 = vector.broadcast %302 : vector<1x128xf32> to vector<16x128xf32>
    %304 = arith.addf %300, %303 : vector<16x128xf32>
    %cst_123 = arith.constant 5.000000e-01 : f32
    %305 = vector.broadcast %cst_123 : f32 to vector<16x128xf32>
    %306 = arith.mulf %305, %304 : vector<16x128xf32>
    %cst_124 = arith.constant 4.471500e-02 : f32
    %307 = vector.broadcast %cst_124 : f32 to vector<16x128xf32>
    %308 = arith.mulf %307, %304 : vector<16x128xf32>
    %309 = arith.mulf %308, %304 : vector<16x128xf32>
    %310 = arith.mulf %309, %304 : vector<16x128xf32>
    %311 = arith.addf %304, %310 : vector<16x128xf32>
    %cst_125 = arith.constant 0.797884583 : f32
    %312 = vector.broadcast %cst_125 : f32 to vector<16x128xf32>
    %313 = arith.mulf %312, %311 : vector<16x128xf32>
    %314 = math.tanh %313 : vector<16x128xf32>
    %cst_126 = arith.constant 1.000000e+00 : f32
    %315 = vector.broadcast %cst_126 : f32 to vector<16x128xf32>
    %316 = arith.addf %315, %314 : vector<16x128xf32>
    %317 = arith.mulf %306, %316 : vector<16x128xf32>
    %318 = arith.truncf %317 : vector<16x128xf32> to vector<16x128xbf16>
    %c1_127 = arith.constant 1 : index
    %c0_128 = arith.constant 0 : index
    %c0_129 = arith.constant 0 : index
    %319 = vector.load %arg13[%c1_127, %c0_128, %c0_129] : memref<2x128x32xbf16, #tpu.memory_space<vmem>>, vector<1x128x32xbf16>
    %320 = vector.shape_cast %319 : vector<1x128x32xbf16> to vector<128x32xbf16>
    %cst_130 = arith.constant dense<0.000000e+00> : vector<16x32xf32>
    %321 = tpu.matmul %318, %320, %cst_130 {dimension_numbers = #tpu.dot_dimension_numbers<[1], [0], [0], [1], [0, 0, 1, 1], [], []>} : vector<16x128xbf16>, vector<128x32xbf16>, vector<16x32xf32> -> vector<16x32xf32>
    %c1_131 = arith.constant 1 : index
    %c0_132 = arith.constant 0 : index
    %c0_133 = arith.constant 0 : index
    %322 = vector.load %arg14[%c1_131, %c0_132, %c0_133] : memref<2x1x32xf32, #tpu.memory_space<vmem>>, vector<1x1x32xf32>
    %323 = vector.shape_cast %322 : vector<1x1x32xf32> to vector<1x32xf32>
    %324 = vector.broadcast %323 : vector<1x32xf32> to vector<16x32xf32>
    %325 = arith.addf %321, %324 : vector<16x32xf32>
    %326 = arith.addf %325, %296 : vector<16x32xf32>
    %c1_134 = arith.constant 1 : index
    %c0_135 = arith.constant 0 : index
    %c0_136 = arith.constant 0 : index
    %327 = vector.load %arg15[%c1_134, %c0_135, %c0_136] : memref<2x1x32xf32, #tpu.memory_space<vmem>>, vector<1x1x32xf32>
    %328 = vector.shape_cast %327 : vector<1x1x32xf32> to vector<1x32xf32>
    %c1_137 = arith.constant 1 : index
    %c0_138 = arith.constant 0 : index
    %c0_139 = arith.constant 0 : index
    %329 = vector.load %arg16[%c1_137, %c0_138, %c0_139] : memref<2x1x32xf32, #tpu.memory_space<vmem>>, vector<1x1x32xf32>
    %330 = vector.shape_cast %329 : vector<1x1x32xf32> to vector<1x32xf32>
    %cst_140 = arith.constant dense<0.000000e+00> : vector<16xf32>
    %331 = vector.multi_reduction <add>, %326, %cst_140 [1] : vector<16x32xf32> to vector<16xf32>
    %332 = vector.shape_cast %331 : vector<16xf32> to vector<16x1xf32>
    %cst_141 = arith.constant 3.200000e+01 : f32
    %333 = vector.broadcast %cst_141 : f32 to vector<16x1xf32>
    %334 = arith.divf %332, %333 : vector<16x1xf32>
    %335 = vector.broadcast %334 : vector<16x1xf32> to vector<16x32xf32>
    %336 = arith.subf %326, %335 : vector<16x32xf32>
    %337 = vector.broadcast %334 : vector<16x1xf32> to vector<16x32xf32>
    %338 = arith.subf %326, %337 : vector<16x32xf32>
    %339 = arith.mulf %336, %338 : vector<16x32xf32>
    %cst_142 = arith.constant dense<0.000000e+00> : vector<16xf32>
    %340 = vector.multi_reduction <add>, %339, %cst_142 [1] : vector<16x32xf32> to vector<16xf32>
    %341 = vector.shape_cast %340 : vector<16xf32> to vector<16x1xf32>
    %cst_143 = arith.constant 3.200000e+01 : f32
    %342 = vector.broadcast %cst_143 : f32 to vector<16x1xf32>
    %343 = arith.divf %341, %342 : vector<16x1xf32>
    %344 = vector.broadcast %334 : vector<16x1xf32> to vector<16x32xf32>
    %345 = arith.subf %326, %344 : vector<16x32xf32>
    %cst_144 = arith.constant 9.99999996E-13 : f32
    %346 = vector.broadcast %cst_144 : f32 to vector<16x1xf32>
    %347 = arith.addf %343, %346 : vector<16x1xf32>
    %348 = math.rsqrt %347 : vector<16x1xf32>
    %349 = vector.broadcast %348 : vector<16x1xf32> to vector<16x32xf32>
    %350 = arith.mulf %345, %349 : vector<16x32xf32>
    %351 = vector.broadcast %328 : vector<1x32xf32> to vector<16x32xf32>
    %352 = arith.mulf %350, %351 : vector<16x32xf32>
    %353 = vector.broadcast %330 : vector<1x32xf32> to vector<16x32xf32>
    %354 = arith.addf %352, %353 : vector<16x32xf32>
    %355 = vector.shape_cast %354 : vector<16x32xf32> to vector<2x8x32xf32>
    %356 = vector.extract_strided_slice %355 {offsets = [0, 0, 0], sizes = [2, 1, 32], strides = [1, 1, 1]} : vector<2x8x32xf32> to vector<2x1x32xf32>
    %357 = vector.shape_cast %356 : vector<2x1x32xf32> to vector<2x32xf32>
    %358 = arith.truncf %357 : vector<2x32xf32> to vector<2x32xbf16>
    %c0_145 = arith.constant 0 : index
    %c0_146 = arith.constant 0 : index
    %359 = vector.load %arg17[%c0_145, %c0_146] : memref<32x32xbf16, #tpu.memory_space<vmem>>, vector<32x32xbf16>
    %cst_147 = arith.constant dense<0.000000e+00> : vector<2x32xf32>
    %360 = tpu.matmul %358, %359, %cst_147 {dimension_numbers = #tpu.dot_dimension_numbers<[1], [0], [0], [1], [0, 0, 1, 1], [], []>} : vector<2x32xbf16>, vector<32x32xbf16>, vector<2x32xf32> -> vector<2x32xf32>
    %c0_148 = arith.constant 0 : index
    %c0_149 = arith.constant 0 : index
    %361 = vector.load %arg18[%c0_148, %c0_149] : memref<1x32xf32, #tpu.memory_space<vmem>>, vector<1x32xf32>
    %362 = vector.broadcast %361 : vector<1x32xf32> to vector<2x32xf32>
    %363 = arith.addf %360, %362 : vector<2x32xf32>
    %364 = math.tanh %363 : vector<2x32xf32>
    %365 = arith.truncf %364 : vector<2x32xf32> to vector<2x32xbf16>
    %c0_150 = arith.constant 0 : index
    %c0_151 = arith.constant 0 : index
    %366 = vector.load %arg19[%c0_150, %c0_151] : memref<32x3xbf16, #tpu.memory_space<vmem>>, vector<32x3xbf16>
    %cst_152 = arith.constant dense<0.000000e+00> : vector<2x3xf32>
    %367 = tpu.matmul %365, %366, %cst_152 {dimension_numbers = #tpu.dot_dimension_numbers<[1], [0], [0], [1], [0, 0, 1, 1], [], []>} : vector<2x32xbf16>, vector<32x3xbf16>, vector<2x3xf32> -> vector<2x3xf32>
    %c0_153 = arith.constant 0 : index
    %c0_154 = arith.constant 0 : index
    %368 = vector.load %arg20[%c0_153, %c0_154] : memref<1x3xf32, #tpu.memory_space<vmem>>, vector<1x3xf32>
    %369 = vector.broadcast %368 : vector<1x3xf32> to vector<2x3xf32>
    %370 = arith.addf %367, %369 : vector<2x3xf32>
    %cst_155 = arith.constant 0.000000e+00 : f32
    %371 = vector.broadcast %cst_155 : f32 to vector<8x128xf32>
    %c0_156 = arith.constant 0 : index
    %c0_157 = arith.constant 0 : index
    %372 = vector.load %arg21[%c0_156, %c0_157] : memref<8x128xf32, #tpu.memory_space<vmem>>, vector<8x128xf32>
    tpu.vector_store %arg21[%c0_156, %c0_157], %371 {strides = array<i32>} : memref<8x128xf32, #tpu.memory_space<vmem>>, vector<8x128xf32>,
    %c0_158 = arith.constant 0 : index
    %c0_159 = arith.constant 0 : index
    %373 = vector.load %arg21[%c0_158, %c0_159] : memref<8x128xf32, #tpu.memory_space<vmem>>, vector<2x32xf32>
    tpu.vector_store %arg21[%c0_158, %c0_159], %357 {strides = array<i32>} : memref<8x128xf32, #tpu.memory_space<vmem>>, vector<2x32xf32>,
    %c0_160 = arith.constant 0 : index
    %c32 = arith.constant 32 : index
    %374 = vector.load %arg21[%c0_160, %c32] : memref<8x128xf32, #tpu.memory_space<vmem>>, vector<2x32xf32>
    tpu.vector_store %arg21[%c0_160, %c32], %364 {strides = array<i32>} : memref<8x128xf32, #tpu.memory_space<vmem>>, vector<2x32xf32>,
    %c0_161 = arith.constant 0 : index
    %c64 = arith.constant 64 : index
    %375 = vector.load %arg21[%c0_161, %c64] : memref<8x128xf32, #tpu.memory_space<vmem>>, vector<2x3xf32>
    tpu.vector_store %arg21[%c0_161, %c64], %370 {strides = array<i32>} : memref<8x128xf32, #tpu.memory_space<vmem>>, vector<2x3xf32>,
    return
  }
  func.func @transform_0(%arg0: i32) -> (i32, i32) {
    %c0_i32 = arith.constant 0 : i32
    %c0_i32_0 = arith.constant 0 : i32
    %c0_i32_1 = arith.constant 0 : i32
    return %c0_i32, %c0_i32_0 : i32, i32
  }
  func.func @transform_1(%arg0: i32) -> (i32, i32) {
    %c0_i32 = arith.constant 0 : i32
    %c0_i32_0 = arith.constant 0 : i32
    %c0_i32_1 = arith.constant 0 : i32
    return %c0_i32, %c0_i32_0 : i32, i32
  }
  func.func @transform_2(%arg0: i32) -> (i32, i32) {
    %c0_i32 = arith.constant 0 : i32
    %c0_i32_0 = arith.constant 0 : i32
    %c0_i32_1 = arith.constant 0 : i32
    return %c0_i32, %c0_i32_0 : i32, i32
  }
  func.func @transform_3(%arg0: i32) -> (i32, i32) {
    %c0_i32 = arith.constant 0 : i32
    %c0_i32_0 = arith.constant 0 : i32
    %c0_i32_1 = arith.constant 0 : i32
    return %c0_i32, %c0_i32_0 : i32, i32
  }
  func.func @transform_4(%arg0: i32) -> (i32, i32, i32) {
    %c0_i32 = arith.constant 0 : i32
    %c0_i32_0 = arith.constant 0 : i32
    %c0_i32_1 = arith.constant 0 : i32
    %c0_i32_2 = arith.constant 0 : i32
    return %c0_i32, %c0_i32_0, %c0_i32_1 : i32, i32, i32
  }
  func.func @transform_5(%arg0: i32) -> (i32, i32, i32) {
    %c0_i32 = arith.constant 0 : i32
    %c0_i32_0 = arith.constant 0 : i32
    %c0_i32_1 = arith.constant 0 : i32
    %c0_i32_2 = arith.constant 0 : i32
    return %c0_i32, %c0_i32_0, %c0_i32_1 : i32, i32, i32
  }
  func.func @transform_6(%arg0: i32) -> (i32, i32, i32) {
    %c0_i32 = arith.constant 0 : i32
    %c0_i32_0 = arith.constant 0 : i32
    %c0_i32_1 = arith.constant 0 : i32
    %c0_i32_2 = arith.constant 0 : i32
    return %c0_i32, %c0_i32_0, %c0_i32_1 : i32, i32, i32
  }
  func.func @transform_7(%arg0: i32) -> (i32, i32, i32) {
    %c0_i32 = arith.constant 0 : i32
    %c0_i32_0 = arith.constant 0 : i32
    %c0_i32_1 = arith.constant 0 : i32
    %c0_i32_2 = arith.constant 0 : i32
    return %c0_i32, %c0_i32_0, %c0_i32_1 : i32, i32, i32
  }
  func.func @transform_8(%arg0: i32) -> (i32, i32, i32) {
    %c0_i32 = arith.constant 0 : i32
    %c0_i32_0 = arith.constant 0 : i32
    %c0_i32_1 = arith.constant 0 : i32
    %c0_i32_2 = arith.constant 0 : i32
    return %c0_i32, %c0_i32_0, %c0_i32_1 : i32, i32, i32
  }
  func.func @transform_9(%arg0: i32) -> (i32, i32, i32) {
    %c0_i32 = arith.constant 0 : i32
    %c0_i32_0 = arith.constant 0 : i32
    %c0_i32_1 = arith.constant 0 : i32
    %c0_i32_2 = arith.constant 0 : i32
    return %c0_i32, %c0_i32_0, %c0_i32_1 : i32, i32, i32
  }
  func.func @transform_10(%arg0: i32) -> (i32, i32, i32) {
    %c0_i32 = arith.constant 0 : i32
    %c0_i32_0 = arith.constant 0 : i32
    %c0_i32_1 = arith.constant 0 : i32
    %c0_i32_2 = arith.constant 0 : i32
    return %c0_i32, %c0_i32_0, %c0_i32_1 : i32, i32, i32
  }
  func.func @transform_11(%arg0: i32) -> (i32, i32, i32) {
    %c0_i32 = arith.constant 0 : i32
    %c0_i32_0 = arith.constant 0 : i32
    %c0_i32_1 = arith.constant 0 : i32
    %c0_i32_2 = arith.constant 0 : i32
    return %c0_i32, %c0_i32_0, %c0_i32_1 : i32, i32, i32
  }
  func.func @transform_12(%arg0: i32) -> (i32, i32, i32) {
    %c0_i32 = arith.constant 0 : i32
    %c0_i32_0 = arith.constant 0 : i32
    %c0_i32_1 = arith.constant 0 : i32
    %c0_i32_2 = arith.constant 0 : i32
    return %c0_i32, %c0_i32_0, %c0_i32_1 : i32, i32, i32
  }
  func.func @transform_13(%arg0: i32) -> (i32, i32, i32) {
    %c0_i32 = arith.constant 0 : i32
    %c0_i32_0 = arith.constant 0 : i32
    %c0_i32_1 = arith.constant 0 : i32
    %c0_i32_2 = arith.constant 0 : i32
    return %c0_i32, %c0_i32_0, %c0_i32_1 : i32, i32, i32
  }
  func.func @transform_14(%arg0: i32) -> (i32, i32, i32) {
    %c0_i32 = arith.constant 0 : i32
    %c0_i32_0 = arith.constant 0 : i32
    %c0_i32_1 = arith.constant 0 : i32
    %c0_i32_2 = arith.constant 0 : i32
    return %c0_i32, %c0_i32_0, %c0_i32_1 : i32, i32, i32
  }
  func.func @transform_15(%arg0: i32) -> (i32, i32, i32) {
    %c0_i32 = arith.constant 0 : i32
    %c0_i32_0 = arith.constant 0 : i32
    %c0_i32_1 = arith.constant 0 : i32
    %c0_i32_2 = arith.constant 0 : i32
    return %c0_i32, %c0_i32_0, %c0_i32_1 : i32, i32, i32
  }
  func.func @transform_16(%arg0: i32) -> (i32, i32) {
    %c0_i32 = arith.constant 0 : i32
    %c0_i32_0 = arith.constant 0 : i32
    %c0_i32_1 = arith.constant 0 : i32
    return %c0_i32, %c0_i32_0 : i32, i32
  }
  func.func @transform_17(%arg0: i32) -> (i32, i32) {
    %c0_i32 = arith.constant 0 : i32
    %c0_i32_0 = arith.constant 0 : i32
    %c0_i32_1 = arith.constant 0 : i32
    return %c0_i32, %c0_i32_0 : i32, i32
  }
  func.func @transform_18(%arg0: i32) -> (i32, i32) {
    %c0_i32 = arith.constant 0 : i32
    %c0_i32_0 = arith.constant 0 : i32
    %c0_i32_1 = arith.constant 0 : i32
    return %c0_i32, %c0_i32_0 : i32, i32
  }
  func.func @transform_19(%arg0: i32) -> (i32, i32) {
    %c0_i32 = arith.constant 0 : i32
    %c0_i32_0 = arith.constant 0 : i32
    %c0_i32_1 = arith.constant 0 : i32
    return %c0_i32, %c0_i32_0 : i32, i32
  }
  func.func @transform_20(%arg0: i32) -> (i32, i32) {
    %c0_i32 = arith.constant 0 : i32
    %c0_i32_0 = arith.constant 0 : i32
    %c0_i32_1 = arith.constant 0 : i32
    return %c0_i32, %c0_i32_0 : i32, i32
  }
}

</mosaic_0001>

<llo_original>
// kernel: tpu_custom_call.1
$region0: #{tpu_custom_call.1}
  #allocation0 [shape = 'u32[]', space=smem, size = 0x4, offset = 0x4, fixed_abs, tag = 'smem constant byte address 0x4 - core index']
  #allocation1 [shape = 'u32[144,128]{1,0:T(1,128)}', space=vmem, size = 0x12000, scoped, tag = 'internal scratch']
  #allocation2 [shape = 'f32[16,32]{1,0:T(8,128)}', space=vmem, size = 0x2000, scoped, tag = 'scratch operand']
  %s0 = inlined_call_operand.vmem [shape: f32[16,32], index: 0, kind: input, shape index: {}]
  %s1 = inlined_call_operand.vmem [shape: f32[8,8], index: 1, kind: input, shape index: {}]
  %s2 = inlined_call_operand.vmem [shape: f32[1,32], index: 2, kind: input, shape index: {}]
  %s3 = inlined_call_operand.vmem [shape: f32[1,32], index: 3, kind: input, shape index: {}]
  %s4 = inlined_call_operand.vmem [shape: bf16[2,32,128], index: 4, kind: input, shape index: {}]
  %s5 = inlined_call_operand.vmem [shape: f32[2,1,128], index: 5, kind: input, shape index: {}]
  %s6 = inlined_call_operand.vmem [shape: bf16[2,32,32], index: 6, kind: input, shape index: {}]
  %s7 = inlined_call_operand.vmem [shape: f32[2,1,32], index: 7, kind: input, shape index: {}]
  %s8 = inlined_call_operand.vmem [shape: f32[2,1,32], index: 8, kind: input, shape index: {}]
  %s9 = inlined_call_operand.vmem [shape: f32[2,1,32], index: 9, kind: input, shape index: {}]
  %s10 = inlined_call_operand.vmem [shape: bf16[2,32,128], index: 10, kind: input, shape index: {}]
  %s11 = inlined_call_operand.vmem [shape: f32[2,1,128], index: 11, kind: input, shape index: {}]
  %s12 = inlined_call_operand.vmem [shape: bf16[2,128,32], index: 12, kind: input, shape index: {}]
  %s13 = inlined_call_operand.vmem [shape: f32[2,1,32], index: 13, kind: input, shape index: {}]
  %s14 = inlined_call_operand.vmem [shape: f32[2,1,32], index: 14, kind: input, shape index: {}]
  %s15 = inlined_call_operand.vmem [shape: f32[2,1,32], index: 15, kind: input, shape index: {}]
  %s16 = inlined_call_operand.vmem [shape: bf16[32,32], index: 16, kind: input, shape index: {}]
  %s17 = inlined_call_operand.vmem [shape: f32[1,32], index: 17, kind: input, shape index: {}]
  %s18 = inlined_call_operand.vmem [shape: bf16[32,3], index: 18, kind: input, shape index: {}]
  %s19 = inlined_call_operand.vmem [shape: f32[1,3], index: 19, kind: input, shape index: {}]
  %s20 = inlined_call_operand.hbm [shape: f32[8,128], index: 20, kind: output, shape index: {}]
  %s21 = sld [smem:[#allocation0]]
  $region90: #{tpu_custom_call.1} parent=0
    _
  %s23 = ssub.s32 1, %s21
  %s24 = scalar_select 0, %s23, %s21
  $region1: #{tpu_custom_call.1} parent=0
    #allocation3 [shape = 'u8[4096]{0}', space=vmem, size = 0x1000, scoped, tag = 'output window, operand 0, single buffered']
    #allocation4 [shape = 's32[1]{0}', space=sflag, size = 0x4, scoped, tag = 'scoped memory for tpu_custom_call.1']
    %25 = vsyncpa [#allocation4], 0
    // Predicated region
    $region2: #{tpu_custom_call.1} parent=1 // pred_check
      _
    $region3: #{tpu_custom_call.1} parent=1 // pred_check_branch
      %27 = sbr.rel (0) target = $region5
    $region4: #{tpu_custom_call.1} parent=1 // pred_region
      _
    $region5: #{tpu_custom_call.1} parent=1 // pred_fallthru
      _
    // Predicated region
    $region6: #{tpu_custom_call.1} parent=1 // pred_check
      _
    $region7: #{tpu_custom_call.1} parent=1 // pred_check_branch
      %29 = sbr.rel (0) target = $region9
    $region8: #{tpu_custom_call.1} parent=1 // pred_region
      _
    $region9: #{tpu_custom_call.1} parent=1 // pred_fallthru
      _
    // Predicated region
    $region10: #{tpu_custom_call.1} parent=1 // pred_check
      _
    $region11: #{tpu_custom_call.1} parent=1 // pred_check_branch
      %31 = sbr.rel (0) target = $region13
    $region12: #{tpu_custom_call.1} parent=1 // pred_region
      _
    $region13: #{tpu_custom_call.1} parent=1 // pred_fallthru
      _
    // Predicated region
    $region14: #{tpu_custom_call.1} parent=1 // pred_check
      _
    $region15: #{tpu_custom_call.1} parent=1 // pred_check_branch
      %33 = sbr.rel (0) target = $region17
    $region16: #{tpu_custom_call.1} parent=1 // pred_region
      _
    $region17: #{tpu_custom_call.1} parent=1 // pred_fallthru
      _
    // Predicated region
    $region18: #{tpu_custom_call.1} parent=1 // pred_check
      _
    $region19: #{tpu_custom_call.1} parent=1 // pred_check_branch
      %35 = sbr.rel (0) target = $region21
    $region20: #{tpu_custom_call.1} parent=1 // pred_region
      _
    $region21: #{tpu_custom_call.1} parent=1 // pred_fallthru
      _
    // Predicated region
    $region22: #{tpu_custom_call.1} parent=1 // pred_check
      _
    $region23: #{tpu_custom_call.1} parent=1 // pred_check_branch
      %37 = sbr.rel (0) target = $region25
    $region24: #{tpu_custom_call.1} parent=1 // pred_region
      _
    $region25: #{tpu_custom_call.1} parent=1 // pred_fallthru
      _
    // Predicated region
    $region26: #{tpu_custom_call.1} parent=1 // pred_check
      _
    $region27: #{tpu_custom_call.1} parent=1 // pred_check_branch
      %39 = sbr.rel (0) target = $region29
    $region28: #{tpu_custom_call.1} parent=1 // pred_region
      _
    $region29: #{tpu_custom_call.1} parent=1 // pred_fallthru
      _
    // Predicated region
    $region30: #{tpu_custom_call.1} parent=1 // pred_check
      _
    $region31: #{tpu_custom_call.1} parent=1 // pred_check_branch
      %41 = sbr.rel (0) target = $region33
    $region32: #{tpu_custom_call.1} parent=1 // pred_region
      _
    $region33: #{tpu_custom_call.1} parent=1 // pred_fallthru
      _
    // Predicated region
    $region34: #{tpu_custom_call.1} parent=1 // pred_check
      _
    $region35: #{tpu_custom_call.1} parent=1 // pred_check_branch
      %43 = sbr.rel (0) target = $region37
    $region36: #{tpu_custom_call.1} parent=1 // pred_region
      _
    $region37: #{tpu_custom_call.1} parent=1 // pred_fallthru
      _
    // Predicated region
    $region38: #{tpu_custom_call.1} parent=1 // pred_check
      _
    $region39: #{tpu_custom_call.1} parent=1 // pred_check_branch
      %45 = sbr.rel (0) target = $region41
    $region40: #{tpu_custom_call.1} parent=1 // pred_region
      _
    $region41: #{tpu_custom_call.1} parent=1 // pred_fallthru
      _
    // Predicated region
    $region42: #{tpu_custom_call.1} parent=1 // pred_check
      _
    $region43: #{tpu_custom_call.1} parent=1 // pred_check_branch
      %47 = sbr.rel (0) target = $region45
    $region44: #{tpu_custom_call.1} parent=1 // pred_region
      _
    $region45: #{tpu_custom_call.1} parent=1 // pred_fallthru
      _
    // Predicated region
    $region46: #{tpu_custom_call.1} parent=1 // pred_check
      _
    $region47: #{tpu_custom_call.1} parent=1 // pred_check_branch
      %49 = sbr.rel (0) target = $region49
    $region48: #{tpu_custom_call.1} parent=1 // pred_region
      _
    $region49: #{tpu_custom_call.1} parent=1 // pred_fallthru
      _
    // Predicated region
    $region50: #{tpu_custom_call.1} parent=1 // pred_check
      _
    $region51: #{tpu_custom_call.1} parent=1 // pred_check_branch
      %51 = sbr.rel (0) target = $region53
    $region52: #{tpu_custom_call.1} parent=1 // pred_region
      _
    $region53: #{tpu_custom_call.1} parent=1 // pred_fallthru
      _
    // Predicated region
    $region54: #{tpu_custom_call.1} parent=1 // pred_check
      _
    $region55: #{tpu_custom_call.1} parent=1 // pred_check_branch
      %53 = sbr.rel (0) target = $region57
    $region56: #{tpu_custom_call.1} parent=1 // pred_region
      _
    $region57: #{tpu_custom_call.1} parent=1 // pred_fallthru
      _
    // Predicated region
    $region58: #{tpu_custom_call.1} parent=1 // pred_check
      _
    $region59: #{tpu_custom_call.1} parent=1 // pred_check_branch
      %55 = sbr.rel (0) target = $region61
    $region60: #{tpu_custom_call.1} parent=1 // pred_region
      _
    $region61: #{tpu_custom_call.1} parent=1 // pred_fallthru
      _
    // Predicated region
    $region62: #{tpu_custom_call.1} parent=1 // pred_check
      _
    $region63: #{tpu_custom_call.1} parent=1 // pred_check_branch
      %57 = sbr.rel (0) target = $region65
    $region64: #{tpu_custom_call.1} parent=1 // pred_region
      _
    $region65: #{tpu_custom_call.1} parent=1 // pred_fallthru
      _
    // Predicated region
    $region66: #{tpu_custom_call.1} parent=1 // pred_check
      _
    $region67: #{tpu_custom_call.1} parent=1 // pred_check_branch
      %59 = sbr.rel (0) target = $region69
    $region68: #{tpu_custom_call.1} parent=1 // pred_region
      _
    $region69: #{tpu_custom_call.1} parent=1 // pred_fallthru
      _
    // Predicated region
    $region70: #{tpu_custom_call.1} parent=1 // pred_check
      _
    $region71: #{tpu_custom_call.1} parent=1 // pred_check_branch
      %61 = sbr.rel (0) target = $region73
    $region72: #{tpu_custom_call.1} parent=1 // pred_region
      _
    $region73: #{tpu_custom_call.1} parent=1 // pred_fallthru
      _
    // Predicated region
    $region74: #{tpu_custom_call.1} parent=1 // pred_check
      _
    $region75: #{tpu_custom_call.1} parent=1 // pred_check_branch
      %63 = sbr.rel (0) target = $region77
    $region76: #{tpu_custom_call.1} parent=1 // pred_region
      _
    $region77: #{tpu_custom_call.1} parent=1 // pred_fallthru
      _
    // Predicated region
    $region78: #{tpu_custom_call.1} parent=1 // pred_check
      _
    $region79: #{tpu_custom_call.1} parent=1 // pred_check_branch
      %65 = sbr.rel (0) target = $region81
    $region80: #{tpu_custom_call.1} parent=1 // pred_region
      _
    $region81: #{tpu_custom_call.1} parent=1 // pred_fallthru
      _
    %v67 = vld [vmem:[%s0] sm:$0xff]
    %v68 = vld [vmem:[%s0 + $0x8] sm:$0xff]
    %v69 = vld [vmem:[%s2] sm:$0x1]
    %v70 = vld [vmem:[%s3] sm:$0x1]
    %vm71 = vcmask 261120
    %v72 = vsel %vm71, %v67, 0.0
    %73 = vadd.xlane.f32.xlu0 %v72
    %v74 = vpop.xlane.xlu0 %73
    %v75 = vsel %vm71, %v68, 0.0
    %76 = vadd.xlane.f32.xlu0 %v75
    %v77 = vpop.xlane.xlu0 %76
    %v78 = vrcp.pop 32.0
    %v79 = vmul.f32 %v74, %v78
    %v80 = vmul.f32 %v77, %v78
    %v81 = vsub.f32 %v67, %v79
    %v82 = vsub.f32 %v68, %v80
    %v83 = vmul.f32 %v81, %v81
    %v84 = vmul.f32 %v82, %v82
    %v85 = vsel %vm71, %v83, 0.0
    %86 = vadd.xlane.f32.xlu0 %v85
    %v87 = vpop.xlane.xlu0 %86
    %v88 = vsel %vm71, %v84, 0.0
    %89 = vadd.xlane.f32.xlu0 %v88
    %v90 = vpop.xlane.xlu0 %89
    %v91 = vmul.f32 %v87, %v78
    %v92 = vmul.f32 %v90, %v78
    %v93 = vadd.f32 %v91, 1e-12
    %v94 = vadd.f32 %v92, 1e-12
    %v95 = vrsqrt.pop %v93
    %v96 = vrsqrt.pop %v94
    %v97 = vmul.f32 %v81, %v95
    %v98 = vmul.f32 %v82, %v96
    %v100 = vlaneseq
    %v101 = vshrl.u32 %v100, 7
    %v102 = vsub.s32 0, %v101
    %v103 = vrot.slane %v69, %v102
    %v105 = vmul.f32 %v97, %v103
    %v106 = vmul.f32 %v98, %v103
    %v108 = vlaneseq
    %v109 = vshrl.u32 %v108, 7
    %v110 = vsub.s32 0, %v109
    %v111 = vrot.slane %v70, %v110
    %v113 = vadd.f32 %v105, %v111
    %v114 = vadd.f32 %v106, %v111
    %v115 = vld [vmem:[%s1] sm:$0xff]
    %v117 = vcombine.high %v115, %v115
    %v119 = vunpack.c.l.s4 1966171168
    %v120 = vunpack.c.0.s8 %v119
    %v121 = vlaneseq
    %v122 = vshrl.u32 %v121, 7
    %v123 = vsub.s32 %v120, %v122
    %v124 = vrot.slane %v115, %v123
    %v126 = vunpack.c.l.s4 1966171168
    %v127 = vunpack.c.0.s8 %v126
    %v128 = vlaneseq
    %v129 = vshrl.u32 %v128, 7
    %v130 = vsub.s32 %v127, %v129
    %v131 = vrot.slane %v117, %v130
    %v132 = vcombine.high %v124, %v124
    %v133 = vcombine.high %v131, %v131
    %v135 = vunpack.c.l.s4 1966171168
    %v136 = vunpack.c.0.s8 %v135
    %v137 = vlaneseq
    %v138 = vshrl.u32 %v137, 7
    %v139 = vsub.s32 %v136, %v138
    %v140 = vrot.slane %v124, %v139
    %v142 = vunpack.c.l.s4 1966171168
    %v143 = vunpack.c.0.s8 %v142
    %v144 = vlaneseq
    %v145 = vshrl.u32 %v144, 7
    %v146 = vsub.s32 %v143, %v145
    %v147 = vrot.slane %v131, %v146
    %v149 = vunpack.c.l.s4 1966171168
    %v150 = vunpack.c.0.s8 %v149
    %v151 = vlaneseq
    %v152 = vshrl.u32 %v151, 7
    %v153 = vsub.s32 %v150, %v152
    %v154 = vrot.slane %v132, %v153
    %v156 = vunpack.c.l.s4 1966171168
    %v157 = vunpack.c.0.s8 %v156
    %v158 = vlaneseq
    %v159 = vshrl.u32 %v158, 7
    %v160 = vsub.s32 %v157, %v159
    %v161 = vrot.slane %v133, %v160
    %v162 = vcombine.high %v140, %v140
    %v163 = vcombine.high %v147, %v147
    %v164 = vcombine.high %v154, %v154
    %v165 = vcombine.high %v161, %v161
    %v166 = vpack.c.bf16 %v114, %v113
    %v167 = vld [vmem:[%s4] sm:$0xf]
    %v168 = vld [vmem:[%s4 + $0x4] sm:$0xf]
    %v169 = vld [vmem:[%s4 + $0x8] sm:$0xf]
    %v170 = vld [vmem:[%s4 + $0xc] sm:$0xf]
    %v171 = vld [vmem:[%s5] sm:$0x1]
    %v173 = vlaneseq
    %v174 = vshrl.u32 %v173, 7
    %v175 = vsub.s32 0, %v174
    %v176 = vrot.slane %v171, %v175
    %v182 = vunpack.c.l.b16 %v167
    %v183 = vunpack.c.l.b16 %v168
    %v184 = vunpack.c.l.b16 %v169
    %v185 = vunpack.c.l.b16 %v170
    %v186 = vpack.c.b16 %v183, %v182
    %v187 = vpack.c.b16 %v185, %v184
    %v191 = vsel %vm71, %v166, 0
    %193 = vmatprep.subr.bf16.mxu0 0
    %194 = vmatpush1.bf16.msra.mxu0 %v186
    %195 = vmatprep.subr.bf16.mxu0 0
    %196 = vmatpush1.bf16.msra.mxu0 %v187
    %197 = vmatprep.subr.bf16.mxu0 0
    %198 = vmatpush1.bf16.msra.mxu0 0
    %199 = vmatprep.subr.bf16.mxu0 0
    %200 = vmatpush1.bf16.msra.mxu0 0
    %201 = vmatprep.subr.bf16.mxu0 0
    %202 = vmatpush1.bf16.msra.mxu0 0
    %203 = vmatprep.subr.bf16.mxu0 0
    %204 = vmatpush1.bf16.msra.mxu0 0
    %205 = vmatprep.subr.bf16.mxu0 0
    %206 = vmatpush1.bf16.msra.mxu0 0
    %207 = vmatprep.subr.bf16.mxu0 0
    %208 = vmatpush1.bf16.msra.mxu0 0
    %209 = vmatprep.subr.bf16.mxu0 0
    %210 = vmatpush1.bf16.msra.mxu0 0
    %211 = vmatprep.subr.bf16.mxu0 0
    %212 = vmatpush1.bf16.msra.mxu0 0
    %213 = vmatprep.subr.bf16.mxu0 0
    %214 = vmatpush1.bf16.msra.mxu0 0
    %215 = vmatprep.subr.bf16.mxu0 0
    %216 = vmatpush1.bf16.msra.mxu0 0
    %217 = vmatprep.subr.bf16.mxu0 0
    %218 = vmatpush1.bf16.msra.mxu0 0
    %219 = vmatprep.subr.bf16.mxu0 0
    %220 = vmatpush1.bf16.msra.mxu0 0
    %221 = vmatprep.subr.bf16.mxu0 0
    %222 = vmatpush1.bf16.msra.mxu0 0
    %223 = vmatprep.subr.bf16.mxu0 0
    %224 = vmatpush1.bf16.msra.mxu0 0
    %225 = vmatprep.mubr.bf16.mxu0 0
    %226 = vmatmul.mubr.bf16.gmra.mrb[0].mxu0 %v191
    %v227 = vpop.f32.mrb[0].mxu0
    %v228 = vadd.f32 %v176, %v227
    %v229 = vpop.f32.mrb[0].mxu0
    %v230 = vpop.f32.mrb[0].mxu0
    %v231 = vadd.f32 %v176, %v230
    %v232 = vpop.f32.mrb[0].mxu0
    %233 = vdwg.mxu0
    %236 = vrot.lane.b32.xlu0 %v228, 120
    %v237 = vpop.permute.xlu0 %236
    %238 = vrot.lane.b32.xlu0 %v231, 120
    %v239 = vpop.permute.xlu0 %238
    %242 = vrot.lane.b32.xlu0 %v228, 112
    %v243 = vpop.permute.xlu0 %242
    %244 = vrot.lane.b32.xlu0 %v231, 112
    %v245 = vpop.permute.xlu0 %244
    %248 = vrot.lane.b32.xlu0 %v228, 104
    %v249 = vpop.permute.xlu0 %248
    %250 = vrot.lane.b32.xlu0 %v231, 104
    %v251 = vpop.permute.xlu0 %250
    %v254 = vmul.f32 %v228, 0.35355338
    %v255 = vmul.f32 %v231, 0.35355338
    %v256 = vmul.f32 %v237, 0.35355338
    %v257 = vmul.f32 %v239, 0.35355338
    %v258 = vmul.f32 %v243, 0.35355338
    %v259 = vmul.f32 %v245, 0.35355338
    %v260 = vmul.f32 %v249, 0.35355338
    %v261 = vmul.f32 %v251, 0.35355338
    %v262 = vpack.c.bf16 %v254, %v254
    %v263 = vpack.c.bf16 %v255, %v255
    %v264 = vpack.c.bf16 %v256, %v256
    %v265 = vpack.c.bf16 %v257, %v257
    %v266 = vpack.c.bf16 %v258, %v258
    %v267 = vpack.c.bf16 %v259, %v259
    %v268 = vpack.c.bf16 %v260, %v260
    %v269 = vpack.c.bf16 %v261, %v261
    %v270 = vpack.c.bf16 %v228, %v228
    %v271 = vpack.c.bf16 %v231, %v231
    %v272 = vpack.c.bf16 %v237, %v237
    %v273 = vpack.c.bf16 %v239, %v239
    %v274 = vpack.c.bf16 %v243, %v243
    %v275 = vpack.c.bf16 %v245, %v245
    %v276 = vpack.c.bf16 %v249, %v249
    %v277 = vpack.c.bf16 %v251, %v251
    %v278 = vlaneseq
    %v279 = vshrl.u32 %v278, 7
    %v280 = vsub.s32 0, %v279
    %v281 = vrot.slane %v140, %v280
    %v282 = vlaneseq
    %v283 = vshrl.u32 %v282, 7
    %v284 = vsub.s32 0, %v283
    %v285 = vrot.slane %v154, %v284
    %v286 = vlaneseq
    %v287 = vshrl.u32 %v286, 7
    %v288 = vsub.s32 0, %v287
    %v289 = vrot.slane %v162, %v288
    %v290 = vlaneseq
    %v291 = vshrl.u32 %v290, 7
    %v292 = vsub.s32 0, %v291
    %v293 = vrot.slane %v164, %v292
    %v294 = vlaneseq
    %v295 = vshrl.u32 %v294, 7
    %v296 = vsub.s32 0, %v295
    %v297 = vrot.slane %v147, %v296
    %v298 = vlaneseq
    %v299 = vshrl.u32 %v298, 7
    %v300 = vsub.s32 0, %v299
    %v301 = vrot.slane %v161, %v300
    %v302 = vlaneseq
    %v303 = vshrl.u32 %v302, 7
    %v304 = vsub.s32 0, %v303
    %v305 = vrot.slane %v163, %v304
    %v306 = vlaneseq
    %v307 = vshrl.u32 %v306, 7
    %v308 = vsub.s32 0, %v307
    %v309 = vrot.slane %v165, %v308
    %319 = vrot.lane.b32.xlu0 %v270, 96
    %v320 = vpop.permute.xlu0 %319
    %vm321 = vcmask 64512
    %v323 = vsel %vm321, %v262, 0
    %v326 = vsel %vm321, %v320, 0
    %328 = vmatprep.subr.bf16.mxu0 0
    %329 = vmatpush1.bf16.xpose.msra.mxu0 %v326
    %330 = vmatprep.subr.bf16.mxu0 0
    %331 = vmatpush1.bf16.xpose.msra.mxu0 0
    %332 = vmatprep.subr.bf16.mxu0 0
    %333 = vmatpush1.bf16.xpose.msra.mxu0 0
    %334 = vmatprep.subr.bf16.mxu0 0
    %335 = vmatpush1.bf16.xpose.msra.mxu0 0
    %336 = vmatprep.subr.bf16.mxu0 0
    %337 = vmatpush1.bf16.xpose.msra.mxu0 0
    %338 = vmatprep.subr.bf16.mxu0 0
    %339 = vmatpush1.bf16.xpose.msra.mxu0 0
    %340 = vmatprep.subr.bf16.mxu0 0
    %341 = vmatpush1.bf16.xpose.msra.mxu0 0
    %342 = vmatprep.subr.bf16.mxu0 0
    %343 = vmatpush1.bf16.xpose.msra.mxu0 0
    %344 = vmatprep.subr.bf16.mxu0 0
    %345 = vmatpush1.bf16.xpose.msra.mxu0 0
    %346 = vmatprep.subr.bf16.mxu0 0
    %347 = vmatpush1.bf16.xpose.msra.mxu0 0
    %348 = vmatprep.subr.bf16.mxu0 0
    %349 = vmatpush1.bf16.xpose.msra.mxu0 0
    %350 = vmatprep.subr.bf16.mxu0 0
    %351 = vmatpush1.bf16.xpose.msra.mxu0 0
    %352 = vmatprep.subr.bf16.mxu0 0
    %353 = vmatpush1.bf16.xpose.msra.mxu0 0
    %354 = vmatprep.subr.bf16.mxu0 0
    %355 = vmatpush1.bf16.xpose.msra.mxu0 0
    %356 = vmatprep.subr.bf16.mxu0 0
    %357 = vmatpush1.bf16.xpose.msra.mxu0 0
    %358 = vmatprep.subr.bf16.mxu0 0
    %359 = vmatpush1.bf16.xpose.msra.mxu0 0
    %360 = vmatprep.mubr.bf16.mxu0 0
    %361 = vmatmul.mubr.bf16.gmra.mrb[0].mxu0 %v323
    %v362 = vpop.f32.mrb[0].mxu0
    %v363 = vadd.f32 %v281, %v362
    %v364 = vpop.f32.mrb[0].mxu0
    %v365 = vpop.f32.mrb[0].mxu0
    %v366 = vpop.f32.mrb[0].mxu0
    %367 = vdwg.mxu0
    %369 = vrot.lane.b32.xlu0 %v271, 96
    %v370 = vpop.permute.xlu0 %369
    %v372 = vsel %vm321, %v263, 0
    %v375 = vsel %vm321, %v370, 0
    %377 = vmatprep.subr.bf16.mxu0 0
    %378 = vmatpush1.bf16.xpose.msra.mxu0 %v375
    %379 = vmatprep.subr.bf16.mxu0 0
    %380 = vmatpush1.bf16.xpose.msra.mxu0 0
    %381 = vmatprep.subr.bf16.mxu0 0
    %382 = vmatpush1.bf16.xpose.msra.mxu0 0
    %383 = vmatprep.subr.bf16.mxu0 0
    %384 = vmatpush1.bf16.xpose.msra.mxu0 0
    %385 = vmatprep.subr.bf16.mxu0 0
    %386 = vmatpush1.bf16.xpose.msra.mxu0 0
    %387 = vmatprep.subr.bf16.mxu0 0
    %388 = vmatpush1.bf16.xpose.msra.mxu0 0
    %389 = vmatprep.subr.bf16.mxu0 0
    %390 = vmatpush1.bf16.xpose.msra.mxu0 0
    %391 = vmatprep.subr.bf16.mxu0 0
    %392 = vmatpush1.bf16.xpose.msra.mxu0 0
    %393 = vmatprep.subr.bf16.mxu0 0
    %394 = vmatpush1.bf16.xpose.msra.mxu0 0
    %395 = vmatprep.subr.bf16.mxu0 0
    %396 = vmatpush1.bf16.xpose.msra.mxu0 0
    %397 = vmatprep.subr.bf16.mxu0 0
    %398 = vmatpush1.bf16.xpose.msra.mxu0 0
    %399 = vmatprep.subr.bf16.mxu0 0
    %400 = vmatpush1.bf16.xpose.msra.mxu0 0
    %401 = vmatprep.subr.bf16.mxu0 0
    %402 = vmatpush1.bf16.xpose.msra.mxu0 0
    %403 = vmatprep.subr.bf16.mxu0 0
    %404 = vmatpush1.bf16.xpose.msra.mxu0 0
    %405 = vmatprep.subr.bf16.mxu0 0
    %406 = vmatpush1.bf16.xpose.msra.mxu0 0
    %407 = vmatprep.subr.bf16.mxu0 0
    %408 = vmatpush1.bf16.xpose.msra.mxu0 0
    %409 = vmatprep.mubr.bf16.mxu0 0
    %410 = vmatmul.mubr.bf16.gmra.mrb[0].mxu0 %v372
    %v411 = vpop.f32.mrb[0].mxu0
    %v412 = vadd.f32 %v285, %v411
    %v413 = vpop.f32.mrb[0].mxu0
    %v414 = vpop.f32.mrb[0].mxu0
    %v415 = vpop.f32.mrb[0].mxu0
    %416 = vdwg.mxu0
    %418 = vrot.lane.b32.xlu0 %v272, 96
    %v419 = vpop.permute.xlu0 %418
    %v421 = vsel %vm321, %v264, 0
    %v424 = vsel %vm321, %v419, 0
    %426 = vmatprep.subr.bf16.mxu0 0
    %427 = vmatpush1.bf16.xpose.msra.mxu0 %v424
    %428 = vmatprep.subr.bf16.mxu0 0
    %429 = vmatpush1.bf16.xpose.msra.mxu0 0
    %430 = vmatprep.subr.bf16.mxu0 0
    %431 = vmatpush1.bf16.xpose.msra.mxu0 0
    %432 = vmatprep.subr.bf16.mxu0 0
    %433 = vmatpush1.bf16.xpose.msra.mxu0 0
    %434 = vmatprep.subr.bf16.mxu0 0
    %435 = vmatpush1.bf16.xpose.msra.mxu0 0
    %436 = vmatprep.subr.bf16.mxu0 0
    %437 = vmatpush1.bf16.xpose.msra.mxu0 0
    %438 = vmatprep.subr.bf16.mxu0 0
    %439 = vmatpush1.bf16.xpose.msra.mxu0 0
    %440 = vmatprep.subr.bf16.mxu0 0
    %441 = vmatpush1.bf16.xpose.msra.mxu0 0
    %442 = vmatprep.subr.bf16.mxu0 0
    %443 = vmatpush1.bf16.xpose.msra.mxu0 0
    %444 = vmatprep.subr.bf16.mxu0 0
    %445 = vmatpush1.bf16.xpose.msra.mxu0 0
    %446 = vmatprep.subr.bf16.mxu0 0
    %447 = vmatpush1.bf16.xpose.msra.mxu0 0
    %448 = vmatprep.subr.bf16.mxu0 0
    %449 = vmatpush1.bf16.xpose.msra.mxu0 0
    %450 = vmatprep.subr.bf16.mxu0 0
    %451 = vmatpush1.bf16.xpose.msra.mxu0 0
    %452 = vmatprep.subr.bf16.mxu0 0
    %453 = vmatpush1.bf16.xpose.msra.mxu0 0
    %454 = vmatprep.subr.bf16.mxu0 0
    %455 = vmatpush1.bf16.xpose.msra.mxu0 0
    %456 = vmatprep.subr.bf16.mxu0 0
    %457 = vmatpush1.bf16.xpose.msra.mxu0 0
    %458 = vmatprep.mubr.bf16.mxu0 0
    %459 = vmatmul.mubr.bf16.gmra.mrb[0].mxu0 %v421
    %v460 = vpop.f32.mrb[0].mxu0
    %v461 = vadd.f32 %v289, %v460
    %v462 = vpop.f32.mrb[0].mxu0
    %v463 = vpop.f32.mrb[0].mxu0
    %v464 = vpop.f32.mrb[0].mxu0
    %465 = vdwg.mxu0
    %467 = vrot.lane.b32.xlu0 %v273, 96
    %v468 = vpop.permute.xlu0 %467
    %v470 = vsel %vm321, %v265, 0
    %v473 = vsel %vm321, %v468, 0
    %475 = vmatprep.subr.bf16.mxu0 0
    %476 = vmatpush1.bf16.xpose.msra.mxu0 %v473
    %477 = vmatprep.subr.bf16.mxu0 0
    %478 = vmatpush1.bf16.xpose.msra.mxu0 0
    %479 = vmatprep.subr.bf16.mxu0 0
    %480 = vmatpush1.bf16.xpose.msra.mxu0 0
    %481 = vmatprep.subr.bf16.mxu0 0
    %482 = vmatpush1.bf16.xpose.msra.mxu0 0
    %483 = vmatprep.subr.bf16.mxu0 0
    %484 = vmatpush1.bf16.xpose.msra.mxu0 0
    %485 = vmatprep.subr.bf16.mxu0 0
    %486 = vmatpush1.bf16.xpose.msra.mxu0 0
    %487 = vmatprep.subr.bf16.mxu0 0
    %488 = vmatpush1.bf16.xpose.msra.mxu0 0
    %489 = vmatprep.subr.bf16.mxu0 0
    %490 = vmatpush1.bf16.xpose.msra.mxu0 0
    %491 = vmatprep.subr.bf16.mxu0 0
    %492 = vmatpush1.bf16.xpose.msra.mxu0 0
    %493 = vmatprep.subr.bf16.mxu0 0
    %494 = vmatpush1.bf16.xpose.msra.mxu0 0
    %495 = vmatprep.subr.bf16.mxu0 0
    %496 = vmatpush1.bf16.xpose.msra.mxu0 0
    %497 = vmatprep.subr.bf16.mxu0 0
    %498 = vmatpush1.bf16.xpose.msra.mxu0 0
    %499 = vmatprep.subr.bf16.mxu0 0
    %500 = vmatpush1.bf16.xpose.msra.mxu0 0
    %501 = vmatprep.subr.bf16.mxu0 0
    %502 = vmatpush1.bf16.xpose.msra.mxu0 0
    %503 = vmatprep.subr.bf16.mxu0 0
    %504 = vmatpush1.bf16.xpose.msra.mxu0 0
    %505 = vmatprep.subr.bf16.mxu0 0
    %506 = vmatpush1.bf16.xpose.msra.mxu0 0
    %507 = vmatprep.mubr.bf16.mxu0 0
    %508 = vmatmul.mubr.bf16.gmra.mrb[0].mxu0 %v470
    %v509 = vpop.f32.mrb[0].mxu0
    %v510 = vadd.f32 %v293, %v509
    %v511 = vpop.f32.mrb[0].mxu0
    %v512 = vpop.f32.mrb[0].mxu0
    %v513 = vpop.f32.mrb[0].mxu0
    %514 = vdwg.mxu0
    %516 = vrot.lane.b32.xlu0 %v274, 96
    %v517 = vpop.permute.xlu0 %516
    %v519 = vsel %vm321, %v266, 0
    %v522 = vsel %vm321, %v517, 0
    %524 = vmatprep.subr.bf16.mxu0 0
    %525 = vmatpush1.bf16.xpose.msra.mxu0 %v522
    %526 = vmatprep.subr.bf16.mxu0 0
    %527 = vmatpush1.bf16.xpose.msra.mxu0 0
    %528 = vmatprep.subr.bf16.mxu0 0
    %529 = vmatpush1.bf16.xpose.msra.mxu0 0
    %530 = vmatprep.subr.bf16.mxu0 0
    %531 = vmatpush1.bf16.xpose.msra.mxu0 0
    %532 = vmatprep.subr.bf16.mxu0 0
    %533 = vmatpush1.bf16.xpose.msra.mxu0 0
    %534 = vmatprep.subr.bf16.mxu0 0
    %535 = vmatpush1.bf16.xpose.msra.mxu0 0
    %536 = vmatprep.subr.bf16.mxu0 0
    %537 = vmatpush1.bf16.xpose.msra.mxu0 0
    %538 = vmatprep.subr.bf16.mxu0 0
    %539 = vmatpush1.bf16.xpose.msra.mxu0 0
    %540 = vmatprep.subr.bf16.mxu0 0
    %541 = vmatpush1.bf16.xpose.msra.mxu0 0
    %542 = vmatprep.subr.bf16.mxu0 0
    %543 = vmatpush1.bf16.xpose.msra.mxu0 0
    %544 = vmatprep.subr.bf16.mxu0 0
    %545 = vmatpush1.bf16.xpose.msra.mxu0 0
    %546 = vmatprep.subr.bf16.mxu0 0
    %547 = vmatpush1.bf16.xpose.msra.mxu0 0
    %548 = vmatprep.subr.bf16.mxu0 0
    %549 = vmatpush1.bf16.xpose.msra.mxu0 0
    %550 = vmatprep.subr.bf16.mxu0 0
    %551 = vmatpush1.bf16.xpose.msra.mxu0 0
    %552 = vmatprep.subr.bf16.mxu0 0
    %553 = vmatpush1.bf16.xpose.msra.mxu0 0
    %554 = vmatprep.subr.bf16.mxu0 0
    %555 = vmatpush1.bf16.xpose.msra.mxu0 0
    %556 = vmatprep.mubr.bf16.mxu0 0
    %557 = vmatmul.mubr.bf16.gmra.mrb[0].mxu0 %v519
    %v558 = vpop.f32.mrb[0].mxu0
    %v559 = vadd.f32 %v297, %v558
    %v560 = vpop.f32.mrb[0].mxu0
    %v561 = vpop.f32.mrb[0].mxu0
    %v562 = vpop.f32.mrb[0].mxu0
    %563 = vdwg.mxu0
    %565 = vrot.lane.b32.xlu0 %v275, 96
    %v566 = vpop.permute.xlu0 %565
    %v568 = vsel %vm321, %v267, 0
    %v571 = vsel %vm321, %v566, 0
    %573 = vmatprep.subr.bf16.mxu0 0
    %574 = vmatpush1.bf16.xpose.msra.mxu0 %v571
    %575 = vmatprep.subr.bf16.mxu0 0
    %576 = vmatpush1.bf16.xpose.msra.mxu0 0
    %577 = vmatprep.subr.bf16.mxu0 0
    %578 = vmatpush1.bf16.xpose.msra.mxu0 0
    %579 = vmatprep.subr.bf16.mxu0 0
    %580 = vmatpush1.bf16.xpose.msra.mxu0 0
    %581 = vmatprep.subr.bf16.mxu0 0
    %582 = vmatpush1.bf16.xpose.msra.mxu0 0
    %583 = vmatprep.subr.bf16.mxu0 0
    %584 = vmatpush1.bf16.xpose.msra.mxu0 0
    %585 = vmatprep.subr.bf16.mxu0 0
    %586 = vmatpush1.bf16.xpose.msra.mxu0 0
    %587 = vmatprep.subr.bf16.mxu0 0
    %588 = vmatpush1.bf16.xpose.msra.mxu0 0
    %589 = vmatprep.subr.bf16.mxu0 0
    %590 = vmatpush1.bf16.xpose.msra.mxu0 0
    %591 = vmatprep.subr.bf16.mxu0 0
    %592 = vmatpush1.bf16.xpose.msra.mxu0 0
    %593 = vmatprep.subr.bf16.mxu0 0
    %594 = vmatpush1.bf16.xpose.msra.mxu0 0
    %595 = vmatprep.subr.bf16.mxu0 0
    %596 = vmatpush1.bf16.xpose.msra.mxu0 0
    %597 = vmatprep.subr.bf16.mxu0 0
    %598 = vmatpush1.bf16.xpose.msra.mxu0 0
    %599 = vmatprep.subr.bf16.mxu0 0
    %600 = vmatpush1.bf16.xpose.msra.mxu0 0
    %601 = vmatprep.subr.bf16.mxu0 0
    %602 = vmatpush1.bf16.xpose.msra.mxu0 0
    %603 = vmatprep.subr.bf16.mxu0 0
    %604 = vmatpush1.bf16.xpose.msra.mxu0 0
    %605 = vmatprep.mubr.bf16.mxu0 0
    %606 = vmatmul.mubr.bf16.gmra.mrb[0].mxu0 %v568
    %v607 = vpop.f32.mrb[0].mxu0
    %v608 = vadd.f32 %v301, %v607
    %v609 = vpop.f32.mrb[0].mxu0
    %v610 = vpop.f32.mrb[0].mxu0
    %v611 = vpop.f32.mrb[0].mxu0
    %612 = vdwg.mxu0
    %614 = vrot.lane.b32.xlu0 %v276, 96
    %v615 = vpop.permute.xlu0 %614
    %v617 = vsel %vm321, %v268, 0
    %v620 = vsel %vm321, %v615, 0
    %622 = vmatprep.subr.bf16.mxu0 0
    %623 = vmatpush1.bf16.xpose.msra.mxu0 %v620
    %624 = vmatprep.subr.bf16.mxu0 0
    %625 = vmatpush1.bf16.xpose.msra.mxu0 0
    %626 = vmatprep.subr.bf16.mxu0 0
    %627 = vmatpush1.bf16.xpose.msra.mxu0 0
    %628 = vmatprep.subr.bf16.mxu0 0
    %629 = vmatpush1.bf16.xpose.msra.mxu0 0
    %630 = vmatprep.subr.bf16.mxu0 0
    %631 = vmatpush1.bf16.xpose.msra.mxu0 0
    %632 = vmatprep.subr.bf16.mxu0 0
    %633 = vmatpush1.bf16.xpose.msra.mxu0 0
    %634 = vmatprep.subr.bf16.mxu0 0
    %635 = vmatpush1.bf16.xpose.msra.mxu0 0
    %636 = vmatprep.subr.bf16.mxu0 0
    %637 = vmatpush1.bf16.xpose.msra.mxu0 0
    %638 = vmatprep.subr.bf16.mxu0 0
    %639 = vmatpush1.bf16.xpose.msra.mxu0 0
    %640 = vmatprep.subr.bf16.mxu0 0
    %641 = vmatpush1.bf16.xpose.msra.mxu0 0
    %642 = vmatprep.subr.bf16.mxu0 0
    %643 = vmatpush1.bf16.xpose.msra.mxu0 0
    %644 = vmatprep.subr.bf16.mxu0 0
    %645 = vmatpush1.bf16.xpose.msra.mxu0 0
    %646 = vmatprep.subr.bf16.mxu0 0
    %647 = vmatpush1.bf16.xpose.msra.mxu0 0
    %648 = vmatprep.subr.bf16.mxu0 0
    %649 = vmatpush1.bf16.xpose.msra.mxu0 0
    %650 = vmatprep.subr.bf16.mxu0 0
    %651 = vmatpush1.bf16.xpose.msra.mxu0 0
    %652 = vmatprep.subr.bf16.mxu0 0
    %653 = vmatpush1.bf16.xpose.msra.mxu0 0
    %654 = vmatprep.mubr.bf16.mxu0 0
    %655 = vmatmul.mubr.bf16.gmra.mrb[0].mxu0 %v617
    %v656 = vpop.f32.mrb[0].mxu0
    %v657 = vadd.f32 %v305, %v656
    %v658 = vpop.f32.mrb[0].mxu0
    %v659 = vpop.f32.mrb[0].mxu0
    %v660 = vpop.f32.mrb[0].mxu0
    %661 = vdwg.mxu0
    %663 = vrot.lane.b32.xlu0 %v277, 96
    %v664 = vpop.permute.xlu0 %663
    %v666 = vsel %vm321, %v269, 0
    %v669 = vsel %vm321, %v664, 0
    %671 = vmatprep.subr.bf16.mxu0 0
    %672 = vmatpush1.bf16.xpose.msra.mxu0 %v669
    %673 = vmatprep.subr.bf16.mxu0 0
    %674 = vmatpush1.bf16.xpose.msra.mxu0 0
    %675 = vmatprep.subr.bf16.mxu0 0
    %676 = vmatpush1.bf16.xpose.msra.mxu0 0
    %677 = vmatprep.subr.bf16.mxu0 0
    %678 = vmatpush1.bf16.xpose.msra.mxu0 0
    %679 = vmatprep.subr.bf16.mxu0 0
    %680 = vmatpush1.bf16.xpose.msra.mxu0 0
    %681 = vmatprep.subr.bf16.mxu0 0
    %682 = vmatpush1.bf16.xpose.msra.mxu0 0
    %683 = vmatprep.subr.bf16.mxu0 0
    %684 = vmatpush1.bf16.xpose.msra.mxu0 0
    %685 = vmatprep.subr.bf16.mxu0 0
    %686 = vmatpush1.bf16.xpose.msra.mxu0 0
    %687 = vmatprep.subr.bf16.mxu0 0
    %688 = vmatpush1.bf16.xpose.msra.mxu0 0
    %689 = vmatprep.subr.bf16.mxu0 0
    %690 = vmatpush1.bf16.xpose.msra.mxu0 0
    %691 = vmatprep.subr.bf16.mxu0 0
    %692 = vmatpush1.bf16.xpose.msra.mxu0 0
    %693 = vmatprep.subr.bf16.mxu0 0
    %694 = vmatpush1.bf16.xpose.msra.mxu0 0
    %695 = vmatprep.subr.bf16.mxu0 0
    %696 = vmatpush1.bf16.xpose.msra.mxu0 0
    %697 = vmatprep.subr.bf16.mxu0 0
    %698 = vmatpush1.bf16.xpose.msra.mxu0 0
    %699 = vmatprep.subr.bf16.mxu0 0
    %700 = vmatpush1.bf16.xpose.msra.mxu0 0
    %701 = vmatprep.subr.bf16.mxu0 0
    %702 = vmatpush1.bf16.xpose.msra.mxu0 0
    %703 = vmatprep.mubr.bf16.mxu0 0
    %704 = vmatmul.mubr.bf16.gmra.mrb[0].mxu0 %v666
    %v705 = vpop.f32.mrb[0].mxu0
    %v706 = vadd.f32 %v309, %v705
    %v707 = vpop.f32.mrb[0].mxu0
    %v708 = vpop.f32.mrb[0].mxu0
    %v709 = vpop.f32.mrb[0].mxu0
    %710 = vdwg.mxu0
    %v711 = vsel %vm321, %v363, -inf
    %712 = vmax.xlane.f32.xlu0 %v711
    %v713 = vpop.xlane.xlu0 %712
    %v714 = vsel %vm321, %v412, -inf
    %715 = vmax.xlane.f32.xlu0 %v714
    %v716 = vpop.xlane.xlu0 %715
    %v717 = vsel %vm321, %v461, -inf
    %718 = vmax.xlane.f32.xlu0 %v717
    %v719 = vpop.xlane.xlu0 %718
    %v720 = vsel %vm321, %v510, -inf
    %721 = vmax.xlane.f32.xlu0 %v720
    %v722 = vpop.xlane.xlu0 %721
    %v723 = vsel %vm321, %v559, -inf
    %724 = vmax.xlane.f32.xlu0 %v723
    %v725 = vpop.xlane.xlu0 %724
    %v726 = vsel %vm321, %v608, -inf
    %727 = vmax.xlane.f32.xlu0 %v726
    %v728 = vpop.xlane.xlu0 %727
    %v729 = vsel %vm321, %v657, -inf
    %730 = vmax.xlane.f32.xlu0 %v729
    %v731 = vpop.xlane.xlu0 %730
    %v732 = vsel %vm321, %v706, -inf
    %733 = vmax.xlane.f32.xlu0 %v732
    %v734 = vpop.xlane.xlu0 %733
    %v735 = vsub.f32 %v363, %v713
    %v736 = vsub.f32 %v412, %v716
    %v737 = vsub.f32 %v461, %v719
    %v738 = vsub.f32 %v510, %v722
    %v739 = vsub.f32 %v559, %v725
    %v740 = vsub.f32 %v608, %v728
    %v741 = vsub.f32 %v657, %v731
    %v742 = vsub.f32 %v706, %v734
    %v743 = vmul.f32 %v735, 1.442695
    %v744 = vpow.pop %v743
    %v745 = vmul.f32 %v736, 1.442695
    %v746 = vpow.pop %v745
    %v747 = vmul.f32 %v737, 1.442695
    %v748 = vpow.pop %v747
    %v749 = vmul.f32 %v738, 1.442695
    %v750 = vpow.pop %v749
    %v751 = vmul.f32 %v739, 1.442695
    %v752 = vpow.pop %v751
    %v753 = vmul.f32 %v740, 1.442695
    %v754 = vpow.pop %v753
    %v755 = vmul.f32 %v741, 1.442695
    %v756 = vpow.pop %v755
    %v757 = vmul.f32 %v742, 1.442695
    %v758 = vpow.pop %v757
    %v759 = vsel %vm321, %v744, 0.0
    %760 = vadd.xlane.f32.xlu0 %v759
    %v761 = vpop.xlane.xlu0 %760
    %v762 = vsel %vm321, %v746, 0.0
    %763 = vadd.xlane.f32.xlu0 %v762
    %v764 = vpop.xlane.xlu0 %763
    %v765 = vsel %vm321, %v748, 0.0
    %766 = vadd.xlane.f32.xlu0 %v765
    %v767 = vpop.xlane.xlu0 %766
    %v768 = vsel %vm321, %v750, 0.0
    %769 = vadd.xlane.f32.xlu0 %v768
    %v770 = vpop.xlane.xlu0 %769
    %v771 = vsel %vm321, %v752, 0.0
    %772 = vadd.xlane.f32.xlu0 %v771
    %v773 = vpop.xlane.xlu0 %772
    %v774 = vsel %vm321, %v754, 0.0
    %775 = vadd.xlane.f32.xlu0 %v774
    %v776 = vpop.xlane.xlu0 %775
    %v777 = vsel %vm321, %v756, 0.0
    %778 = vadd.xlane.f32.xlu0 %v777
    %v779 = vpop.xlane.xlu0 %778
    %v780 = vsel %vm321, %v758, 0.0
    %781 = vadd.xlane.f32.xlu0 %v780
    %v782 = vpop.xlane.xlu0 %781
    %v783 = vrcp.pop %v761
    %v784 = vrcp.pop %v764
    %v785 = vrcp.pop %v767
    %v786 = vrcp.pop %v770
    %v787 = vrcp.pop %v773
    %v788 = vrcp.pop %v776
    %v789 = vrcp.pop %v779
    %v790 = vrcp.pop %v782
    %v791 = vmul.f32 %v744, %v783
    %v792 = vmul.f32 %v746, %v784
    %v793 = vmul.f32 %v748, %v785
    %v794 = vmul.f32 %v750, %v786
    %v795 = vmul.f32 %v752, %v787
    %v796 = vmul.f32 %v754, %v788
    %v797 = vmul.f32 %v756, %v789
    %v798 = vmul.f32 %v758, %v790
    %v799 = vpack.c.bf16 %v791, %v791
    %v800 = vpack.c.bf16 %v792, %v792
    %v801 = vpack.c.bf16 %v793, %v793
    %v802 = vpack.c.bf16 %v794, %v794
    %v803 = vpack.c.bf16 %v795, %v795
    %v804 = vpack.c.bf16 %v796, %v796
    %v805 = vpack.c.bf16 %v797, %v797
    %v806 = vpack.c.bf16 %v798, %v798
    %807 = vrot.lane.b32.xlu0 %v270, 64
    %v808 = vpop.permute.xlu0 %807
    %v810 = vsel %vm321, %v799, 0
    %vm812 = vcmask 1043456
    %v814 = vsel %vm812, %v808, 0
    %816 = vmatprep.subr.bf16.mxu0 0
    %817 = vmatpush1.bf16.msra.mxu0 %v814
    %818 = vmatprep.subr.bf16.mxu0 0
    %819 = vmatpush1.bf16.msra.mxu0 0
    %820 = vmatprep.subr.bf16.mxu0 0
    %821 = vmatpush1.bf16.msra.mxu0 0
    %822 = vmatprep.subr.bf16.mxu0 0
    %823 = vmatpush1.bf16.msra.mxu0 0
    %824 = vmatprep.subr.bf16.mxu0 0
    %825 = vmatpush1.bf16.msra.mxu0 0
    %826 = vmatprep.subr.bf16.mxu0 0
    %827 = vmatpush1.bf16.msra.mxu0 0
    %828 = vmatprep.subr.bf16.mxu0 0
    %829 = vmatpush1.bf16.msra.mxu0 0
    %830 = vmatprep.subr.bf16.mxu0 0
    %831 = vmatpush1.bf16.msra.mxu0 0
    %832 = vmatprep.subr.bf16.mxu0 0
    %833 = vmatpush1.bf16.msra.mxu0 0
    %834 = vmatprep.subr.bf16.mxu0 0
    %835 = vmatpush1.bf16.msra.mxu0 0
    %836 = vmatprep.subr.bf16.mxu0 0
    %837 = vmatpush1.bf16.msra.mxu0 0
    %838 = vmatprep.subr.bf16.mxu0 0
    %839 = vmatpush1.bf16.msra.mxu0 0
    %840 = vmatprep.subr.bf16.mxu0 0
    %841 = vmatpush1.bf16.msra.mxu0 0
    %842 = vmatprep.subr.bf16.mxu0 0
    %843 = vmatpush1.bf16.msra.mxu0 0
    %844 = vmatprep.subr.bf16.mxu0 0
    %845 = vmatpush1.bf16.msra.mxu0 0
    %846 = vmatprep.subr.bf16.mxu0 0
    %847 = vmatpush1.bf16.msra.mxu0 0
    %848 = vmatprep.mubr.bf16.mxu0 0
    %849 = vmatmul.mubr.bf16.gmra.mrb[0].mxu0 %v810
    %v850 = vpop.f32.mrb[0].mxu0
    %v851 = vadd.f32 0.0, %v850
    %v852 = vpop.f32.mrb[0].mxu0
    %v853 = vpop.f32.mrb[0].mxu0
    %v854 = vpop.f32.mrb[0].mxu0
    %855 = vdwg.mxu0
    %856 = vrot.lane.b32.xlu0 %v271, 64
    %v857 = vpop.permute.xlu0 %856
    %v859 = vsel %vm321, %v800, 0
    %v862 = vsel %vm812, %v857, 0
    %864 = vmatprep.subr.bf16.mxu0 0
    %865 = vmatpush1.bf16.msra.mxu0 %v862
    %866 = vmatprep.subr.bf16.mxu0 0
    %867 = vmatpush1.bf16.msra.mxu0 0
    %868 = vmatprep.subr.bf16.mxu0 0
    %869 = vmatpush1.bf16.msra.mxu0 0
    %870 = vmatprep.subr.bf16.mxu0 0
    %871 = vmatpush1.bf16.msra.mxu0 0
    %872 = vmatprep.subr.bf16.mxu0 0
    %873 = vmatpush1.bf16.msra.mxu0 0
    %874 = vmatprep.subr.bf16.mxu0 0
    %875 = vmatpush1.bf16.msra.mxu0 0
    %876 = vmatprep.subr.bf16.mxu0 0
    %877 = vmatpush1.bf16.msra.mxu0 0
    %878 = vmatprep.subr.bf16.mxu0 0
    %879 = vmatpush1.bf16.msra.mxu0 0
    %880 = vmatprep.subr.bf16.mxu0 0
    %881 = vmatpush1.bf16.msra.mxu0 0
    %882 = vmatprep.subr.bf16.mxu0 0
    %883 = vmatpush1.bf16.msra.mxu0 0
    %884 = vmatprep.subr.bf16.mxu0 0
    %885 = vmatpush1.bf16.msra.mxu0 0
    %886 = vmatprep.subr.bf16.mxu0 0
    %887 = vmatpush1.bf16.msra.mxu0 0
    %888 = vmatprep.subr.bf16.mxu0 0
    %889 = vmatpush1.bf16.msra.mxu0 0
    %890 = vmatprep.subr.bf16.mxu0 0
    %891 = vmatpush1.bf16.msra.mxu0 0
    %892 = vmatprep.subr.bf16.mxu0 0
    %893 = vmatpush1.bf16.msra.mxu0 0
    %894 = vmatprep.subr.bf16.mxu0 0
    %895 = vmatpush1.bf16.msra.mxu0 0
    %896 = vmatprep.mubr.bf16.mxu0 0
    %897 = vmatmul.mubr.bf16.gmra.mrb[0].mxu0 %v859
    %v898 = vpop.f32.mrb[0].mxu0
    %v899 = vadd.f32 0.0, %v898
    %v900 = vpop.f32.mrb[0].mxu0
    %v901 = vpop.f32.mrb[0].mxu0
    %v902 = vpop.f32.mrb[0].mxu0
    %903 = vdwg.mxu0
    %904 = vrot.lane.b32.xlu0 %v272, 64
    %v905 = vpop.permute.xlu0 %904
    %v907 = vsel %vm321, %v801, 0
    %v910 = vsel %vm812, %v905, 0
    %912 = vmatprep.subr.bf16.mxu0 0
    %913 = vmatpush1.bf16.msra.mxu0 %v910
    %914 = vmatprep.subr.bf16.mxu0 0
    %915 = vmatpush1.bf16.msra.mxu0 0
    %916 = vmatprep.subr.bf16.mxu0 0
    %917 = vmatpush1.bf16.msra.mxu0 0
    %918 = vmatprep.subr.bf16.mxu0 0
    %919 = vmatpush1.bf16.msra.mxu0 0
    %920 = vmatprep.subr.bf16.mxu0 0
    %921 = vmatpush1.bf16.msra.mxu0 0
    %922 = vmatprep.subr.bf16.mxu0 0
    %923 = vmatpush1.bf16.msra.mxu0 0
    %924 = vmatprep.subr.bf16.mxu0 0
    %925 = vmatpush1.bf16.msra.mxu0 0
    %926 = vmatprep.subr.bf16.mxu0 0
    %927 = vmatpush1.bf16.msra.mxu0 0
    %928 = vmatprep.subr.bf16.mxu0 0
    %929 = vmatpush1.bf16.msra.mxu0 0
    %930 = vmatprep.subr.bf16.mxu0 0
    %931 = vmatpush1.bf16.msra.mxu0 0
    %932 = vmatprep.subr.bf16.mxu0 0
    %933 = vmatpush1.bf16.msra.mxu0 0
    %934 = vmatprep.subr.bf16.mxu0 0
    %935 = vmatpush1.bf16.msra.mxu0 0
    %936 = vmatprep.subr.bf16.mxu0 0
    %937 = vmatpush1.bf16.msra.mxu0 0
    %938 = vmatprep.subr.bf16.mxu0 0
    %939 = vmatpush1.bf16.msra.mxu0 0
    %940 = vmatprep.subr.bf16.mxu0 0
    %941 = vmatpush1.bf16.msra.mxu0 0
    %942 = vmatprep.subr.bf16.mxu0 0
    %943 = vmatpush1.bf16.msra.mxu0 0
    %944 = vmatprep.mubr.bf16.mxu0 0
    %945 = vmatmul.mubr.bf16.gmra.mrb[0].mxu0 %v907
    %v946 = vpop.f32.mrb[0].mxu0
    %v947 = vadd.f32 0.0, %v946
    %v948 = vpop.f32.mrb[0].mxu0
    %v949 = vpop.f32.mrb[0].mxu0
    %v950 = vpop.f32.mrb[0].mxu0
    %951 = vdwg.mxu0
    %952 = vrot.lane.b32.xlu0 %v273, 64
    %v953 = vpop.permute.xlu0 %952
    %v955 = vsel %vm321, %v802, 0
    %v958 = vsel %vm812, %v953, 0
    %960 = vmatprep.subr.bf16.mxu0 0
    %961 = vmatpush1.bf16.msra.mxu0 %v958
    %962 = vmatprep.subr.bf16.mxu0 0
    %963 = vmatpush1.bf16.msra.mxu0 0
    %964 = vmatprep.subr.bf16.mxu0 0
    %965 = vmatpush1.bf16.msra.mxu0 0
    %966 = vmatprep.subr.bf16.mxu0 0
    %967 = vmatpush1.bf16.msra.mxu0 0
    %968 = vmatprep.subr.bf16.mxu0 0
    %969 = vmatpush1.bf16.msra.mxu0 0
    %970 = vmatprep.subr.bf16.mxu0 0
    %971 = vmatpush1.bf16.msra.mxu0 0
    %972 = vmatprep.subr.bf16.mxu0 0
    %973 = vmatpush1.bf16.msra.mxu0 0
    %974 = vmatprep.subr.bf16.mxu0 0
    %975 = vmatpush1.bf16.msra.mxu0 0
    %976 = vmatprep.subr.bf16.mxu0 0
    %977 = vmatpush1.bf16.msra.mxu0 0
    %978 = vmatprep.subr.bf16.mxu0 0
    %979 = vmatpush1.bf16.msra.mxu0 0
    %980 = vmatprep.subr.bf16.mxu0 0
    %981 = vmatpush1.bf16.msra.mxu0 0
    %982 = vmatprep.subr.bf16.mxu0 0
    %983 = vmatpush1.bf16.msra.mxu0 0
    %984 = vmatprep.subr.bf16.mxu0 0
    %985 = vmatpush1.bf16.msra.mxu0 0
    %986 = vmatprep.subr.bf16.mxu0 0
    %987 = vmatpush1.bf16.msra.mxu0 0
    %988 = vmatprep.subr.bf16.mxu0 0
    %989 = vmatpush1.bf16.msra.mxu0 0
    %990 = vmatprep.subr.bf16.mxu0 0
    %991 = vmatpush1.bf16.msra.mxu0 0
    %992 = vmatprep.mubr.bf16.mxu0 0
    %993 = vmatmul.mubr.bf16.gmra.mrb[0].mxu0 %v955
    %v994 = vpop.f32.mrb[0].mxu0
    %v995 = vadd.f32 0.0, %v994
    %v996 = vpop.f32.mrb[0].mxu0
    %v997 = vpop.f32.mrb[0].mxu0
    %v998 = vpop.f32.mrb[0].mxu0
    %999 = vdwg.mxu0
    %1000 = vrot.lane.b32.xlu0 %v274, 64
    %v1001 = vpop.permute.xlu0 %1000
    %v1003 = vsel %vm321, %v803, 0
    %v1006 = vsel %vm812, %v1001, 0
    %1008 = vmatprep.subr.bf16.mxu0 0
    %1009 = vmatpush1.bf16.msra.mxu0 %v1006
    %1010 = vmatprep.subr.bf16.mxu0 0
    %1011 = vmatpush1.bf16.msra.mxu0 0
    %1012 = vmatprep.subr.bf16.mxu0 0
    %1013 = vmatpush1.bf16.msra.mxu0 0
    %1014 = vmatprep.subr.bf16.mxu0 0
    %1015 = vmatpush1.bf16.msra.mxu0 0
    %1016 = vmatprep.subr.bf16.mxu0 0
    %1017 = vmatpush1.bf16.msra.mxu0 0
    %1018 = vmatprep.subr.bf16.mxu0 0
    %1019 = vmatpush1.bf16.msra.mxu0 0
    %1020 = vmatprep.subr.bf16.mxu0 0
    %1021 = vmatpush1.bf16.msra.mxu0 0
    %1022 = vmatprep.subr.bf16.mxu0 0
    %1023 = vmatpush1.bf16.msra.mxu0 0
    %1024 = vmatprep.subr.bf16.mxu0 0
    %1025 = vmatpush1.bf16.msra.mxu0 0
    %1026 = vmatprep.subr.bf16.mxu0 0
    %1027 = vmatpush1.bf16.msra.mxu0 0
    %1028 = vmatprep.subr.bf16.mxu0 0
    %1029 = vmatpush1.bf16.msra.mxu0 0
    %1030 = vmatprep.subr.bf16.mxu0 0
    %1031 = vmatpush1.bf16.msra.mxu0 0
    %1032 = vmatprep.subr.bf16.mxu0 0
    %1033 = vmatpush1.bf16.msra.mxu0 0
    %1034 = vmatprep.subr.bf16.mxu0 0
    %1035 = vmatpush1.bf16.msra.mxu0 0
    %1036 = vmatprep.subr.bf16.mxu0 0
    %1037 = vmatpush1.bf16.msra.mxu0 0
    %1038 = vmatprep.subr.bf16.mxu0 0
    %1039 = vmatpush1.bf16.msra.mxu0 0
    %1040 = vmatprep.mubr.bf16.mxu0 0
    %1041 = vmatmul.mubr.bf16.gmra.mrb[0].mxu0 %v1003
    %v1042 = vpop.f32.mrb[0].mxu0
    %v1043 = vadd.f32 0.0, %v1042
    %v1044 = vpop.f32.mrb[0].mxu0
    %v1045 = vpop.f32.mrb[0].mxu0
    %v1046 = vpop.f32.mrb[0].mxu0
    %1047 = vdwg.mxu0
    %1048 = vrot.lane.b32.xlu0 %v275, 64
    %v1049 = vpop.permute.xlu0 %1048
    %v1051 = vsel %vm321, %v804, 0
    %v1054 = vsel %vm812, %v1049, 0
    %1056 = vmatprep.subr.bf16.mxu0 0
    %1057 = vmatpush1.bf16.msra.mxu0 %v1054
    %1058 = vmatprep.subr.bf16.mxu0 0
    %1059 = vmatpush1.bf16.msra.mxu0 0
    %1060 = vmatprep.subr.bf16.mxu0 0
    %1061 = vmatpush1.bf16.msra.mxu0 0
    %1062 = vmatprep.subr.bf16.mxu0 0
    %1063 = vmatpush1.bf16.msra.mxu0 0
    %1064 = vmatprep.subr.bf16.mxu0 0
    %1065 = vmatpush1.bf16.msra.mxu0 0
    %1066 = vmatprep.subr.bf16.mxu0 0
    %1067 = vmatpush1.bf16.msra.mxu0 0
    %1068 = vmatprep.subr.bf16.mxu0 0
    %1069 = vmatpush1.bf16.msra.mxu0 0
    %1070 = vmatprep.subr.bf16.mxu0 0
    %1071 = vmatpush1.bf16.msra.mxu0 0
    %1072 = vmatprep.subr.bf16.mxu0 0
    %1073 = vmatpush1.bf16.msra.mxu0 0
    %1074 = vmatprep.subr.bf16.mxu0 0
    %1075 = vmatpush1.bf16.msra.mxu0 0
    %1076 = vmatprep.subr.bf16.mxu0 0
    %1077 = vmatpush1.bf16.msra.mxu0 0
    %1078 = vmatprep.subr.bf16.mxu0 0
    %1079 = vmatpush1.bf16.msra.mxu0 0
    %1080 = vmatprep.subr.bf16.mxu0 0
    %1081 = vmatpush1.bf16.msra.mxu0 0
    %1082 = vmatprep.subr.bf16.mxu0 0
    %1083 = vmatpush1.bf16.msra.mxu0 0
    %1084 = vmatprep.subr.bf16.mxu0 0
    %1085 = vmatpush1.bf16.msra.mxu0 0
    %1086 = vmatprep.subr.bf16.mxu0 0
    %1087 = vmatpush1.bf16.msra.mxu0 0
    %1088 = vmatprep.mubr.bf16.mxu0 0
    %1089 = vmatmul.mubr.bf16.gmra.mrb[0].mxu0 %v1051
    %v1090 = vpop.f32.mrb[0].mxu0
    %v1091 = vadd.f32 0.0, %v1090
    %v1092 = vpop.f32.mrb[0].mxu0
    %v1093 = vpop.f32.mrb[0].mxu0
    %v1094 = vpop.f32.mrb[0].mxu0
    %1095 = vdwg.mxu0
    %1096 = vrot.lane.b32.xlu0 %v276, 64
    %v1097 = vpop.permute.xlu0 %1096
    %v1099 = vsel %vm321, %v805, 0
    %v1102 = vsel %vm812, %v1097, 0
    %1104 = vmatprep.subr.bf16.mxu0 0
    %1105 = vmatpush1.bf16.msra.mxu0 %v1102
    %1106 = vmatprep.subr.bf16.mxu0 0
    %1107 = vmatpush1.bf16.msra.mxu0 0
    %1108 = vmatprep.subr.bf16.mxu0 0
    %1109 = vmatpush1.bf16.msra.mxu0 0
    %1110 = vmatprep.subr.bf16.mxu0 0
    %1111 = vmatpush1.bf16.msra.mxu0 0
    %1112 = vmatprep.subr.bf16.mxu0 0
    %1113 = vmatpush1.bf16.msra.mxu0 0
    %1114 = vmatprep.subr.bf16.mxu0 0
    %1115 = vmatpush1.bf16.msra.mxu0 0
    %1116 = vmatprep.subr.bf16.mxu0 0
    %1117 = vmatpush1.bf16.msra.mxu0 0
    %1118 = vmatprep.subr.bf16.mxu0 0
    %1119 = vmatpush1.bf16.msra.mxu0 0
    %1120 = vmatprep.subr.bf16.mxu0 0
    %1121 = vmatpush1.bf16.msra.mxu0 0
    %1122 = vmatprep.subr.bf16.mxu0 0
    %1123 = vmatpush1.bf16.msra.mxu0 0
    %1124 = vmatprep.subr.bf16.mxu0 0
    %1125 = vmatpush1.bf16.msra.mxu0 0
    %1126 = vmatprep.subr.bf16.mxu0 0
    %1127 = vmatpush1.bf16.msra.mxu0 0
    %1128 = vmatprep.subr.bf16.mxu0 0
    %1129 = vmatpush1.bf16.msra.mxu0 0
    %1130 = vmatprep.subr.bf16.mxu0 0
    %1131 = vmatpush1.bf16.msra.mxu0 0
    %1132 = vmatprep.subr.bf16.mxu0 0
    %1133 = vmatpush1.bf16.msra.mxu0 0
    %1134 = vmatprep.subr.bf16.mxu0 0
    %1135 = vmatpush1.bf16.msra.mxu0 0
    %1136 = vmatprep.mubr.bf16.mxu0 0
    %1137 = vmatmul.mubr.bf16.gmra.mrb[0].mxu0 %v1099
    %v1138 = vpop.f32.mrb[0].mxu0
    %v1139 = vadd.f32 0.0, %v1138
    %v1140 = vpop.f32.mrb[0].mxu0
    %v1141 = vpop.f32.mrb[0].mxu0
    %v1142 = vpop.f32.mrb[0].mxu0
    %1143 = vdwg.mxu0
    %1144 = vrot.lane.b32.xlu0 %v277, 64
    %v1145 = vpop.permute.xlu0 %1144
    %v1147 = vsel %vm321, %v806, 0
    %v1150 = vsel %vm812, %v1145, 0
    %1152 = vmatprep.subr.bf16.mxu0 0
    %1153 = vmatpush1.bf16.msra.mxu0 %v1150
    %1154 = vmatprep.subr.bf16.mxu0 0
    %1155 = vmatpush1.bf16.msra.mxu0 0
    %1156 = vmatprep.subr.bf16.mxu0 0
    %1157 = vmatpush1.bf16.msra.mxu0 0
    %1158 = vmatprep.subr.bf16.mxu0 0
    %1159 = vmatpush1.bf16.msra.mxu0 0
    %1160 = vmatprep.subr.bf16.mxu0 0
    %1161 = vmatpush1.bf16.msra.mxu0 0
    %1162 = vmatprep.subr.bf16.mxu0 0
    %1163 = vmatpush1.bf16.msra.mxu0 0
    %1164 = vmatprep.subr.bf16.mxu0 0
    %1165 = vmatpush1.bf16.msra.mxu0 0
    %1166 = vmatprep.subr.bf16.mxu0 0
    %1167 = vmatpush1.bf16.msra.mxu0 0
    %1168 = vmatprep.subr.bf16.mxu0 0
    %1169 = vmatpush1.bf16.msra.mxu0 0
    %1170 = vmatprep.subr.bf16.mxu0 0
    %1171 = vmatpush1.bf16.msra.mxu0 0
    %1172 = vmatprep.subr.bf16.mxu0 0
    %1173 = vmatpush1.bf16.msra.mxu0 0
    %1174 = vmatprep.subr.bf16.mxu0 0
    %1175 = vmatpush1.bf16.msra.mxu0 0
    %1176 = vmatprep.subr.bf16.mxu0 0
    %1177 = vmatpush1.bf16.msra.mxu0 0
    %1178 = vmatprep.subr.bf16.mxu0 0
    %1179 = vmatpush1.bf16.msra.mxu0 0
    %1180 = vmatprep.subr.bf16.mxu0 0
    %1181 = vmatpush1.bf16.msra.mxu0 0
    %1182 = vmatprep.subr.bf16.mxu0 0
    %1183 = vmatpush1.bf16.msra.mxu0 0
    %1184 = vmatprep.mubr.bf16.mxu0 0
    %1185 = vmatmul.mubr.bf16.gmra.mrb[0].mxu0 %v1147
    %v1186 = vpop.f32.mrb[0].mxu0
    %v1187 = vadd.f32 0.0, %v1186
    %v1188 = vpop.f32.mrb[0].mxu0
    %v1189 = vpop.f32.mrb[0].mxu0
    %v1190 = vpop.f32.mrb[0].mxu0
    %1191 = vdwg.mxu0
    %1192 = vst.msk [vmem:[#allocation2] sm:$0xff] %vm321, %v851
    %1193 = vst.msk [vmem:[#allocation2 + $0x8] sm:$0xff] %vm321, %v899
    %1196 = vrot.lane.b32.xlu0 %v947, 8
    %v1197 = vpop.permute.xlu0 %1196
    %1198 = vrot.lane.b32.xlu0 %v995, 8
    %v1199 = vpop.permute.xlu0 %1198
    %vm1202 = vcmask 130112
    %1203 = vst.msk [vmem:[#allocation2] sm:$0xff] %vm1202, %v1197
    %1204 = vst.msk [vmem:[#allocation2 + $0x8] sm:$0xff] %vm1202, %v1199
    %1207 = vrot.lane.b32.xlu0 %v1043, 16
    %v1208 = vpop.permute.xlu0 %1207
    %1209 = vrot.lane.b32.xlu0 %v1091, 16
    %v1210 = vpop.permute.xlu0 %1209
    %vm1213 = vcmask 195712
    %1214 = vst.msk [vmem:[#allocation2] sm:$0xff] %vm1213, %v1208
    %1215 = vst.msk [vmem:[#allocation2 + $0x8] sm:$0xff] %vm1213, %v1210
    %1218 = vrot.lane.b32.xlu0 %v1139, 24
    %v1219 = vpop.permute.xlu0 %1218
    %1220 = vrot.lane.b32.xlu0 %v1187, 24
    %v1221 = vpop.permute.xlu0 %1220
    %vm1224 = vcmask 261312
    %1225 = vst.msk [vmem:[#allocation2] sm:$0xff] %vm1224, %v1219
    %1226 = vst.msk [vmem:[#allocation2 + $0x8] sm:$0xff] %vm1224, %v1221
    %v1227 = vld [vmem:[#allocation2] sm:$0xff]
    %v1228 = vld [vmem:[#allocation2 + $0x8] sm:$0xff]
    %v1229 = vpack.c.bf16 %v1228, %v1227
    %v1230 = vld [vmem:[%s6] sm:$0xf]
    %v1231 = vld [vmem:[%s6 + $0x4] sm:$0xf]
    %v1232 = vld [vmem:[%s6 + $0x8] sm:$0xf]
    %v1233 = vld [vmem:[%s6 + $0xc] sm:$0xf]
    %v1234 = vld [vmem:[%s7] sm:$0x1]
    %v1236 = vlaneseq
    %v1237 = vshrl.u32 %v1236, 7
    %v1238 = vsub.s32 0, %v1237
    %v1239 = vrot.slane %v1234, %v1238
    %v1245 = vunpack.c.l.b16 %v1230
    %v1246 = vunpack.c.l.b16 %v1231
    %v1247 = vunpack.c.l.b16 %v1232
    %v1248 = vunpack.c.l.b16 %v1233
    %v1249 = vpack.c.b16 %v1246, %v1245
    %v1250 = vpack.c.b16 %v1248, %v1247
    %v1254 = vsel %vm71, %v1229, 0
    %1256 = vmatprep.subr.bf16.mxu0 0
    %1257 = vmatpush1.bf16.msra.mxu0 %v1249
    %1258 = vmatprep.subr.bf16.mxu0 0
    %1259 = vmatpush1.bf16.msra.mxu0 %v1250
    %1260 = vmatprep.subr.bf16.mxu0 0
    %1261 = vmatpush1.bf16.msra.mxu0 0
    %1262 = vmatprep.subr.bf16.mxu0 0
    %1263 = vmatpush1.bf16.msra.mxu0 0
    %1264 = vmatprep.subr.bf16.mxu0 0
    %1265 = vmatpush1.bf16.msra.mxu0 0
    %1266 = vmatprep.subr.bf16.mxu0 0
    %1267 = vmatpush1.bf16.msra.mxu0 0
    %1268 = vmatprep.subr.bf16.mxu0 0
    %1269 = vmatpush1.bf16.msra.mxu0 0
    %1270 = vmatprep.subr.bf16.mxu0 0
    %1271 = vmatpush1.bf16.msra.mxu0 0
    %1272 = vmatprep.subr.bf16.mxu0 0
    %1273 = vmatpush1.bf16.msra.mxu0 0
    %1274 = vmatprep.subr.bf16.mxu0 0
    %1275 = vmatpush1.bf16.msra.mxu0 0
    %1276 = vmatprep.subr.bf16.mxu0 0
    %1277 = vmatpush1.bf16.msra.mxu0 0
    %1278 = vmatprep.subr.bf16.mxu0 0
    %1279 = vmatpush1.bf16.msra.mxu0 0
    %1280 = vmatprep.subr.bf16.mxu0 0
    %1281 = vmatpush1.bf16.msra.mxu0 0
    %1282 = vmatprep.subr.bf16.mxu0 0
    %1283 = vmatpush1.bf16.msra.mxu0 0
    %1284 = vmatprep.subr.bf16.mxu0 0
    %1285 = vmatpush1.bf16.msra.mxu0 0
    %1286 = vmatprep.subr.bf16.mxu0 0
    %1287 = vmatpush1.bf16.msra.mxu0 0
    %1288 = vmatprep.mubr.bf16.mxu0 0
    %1289 = vmatmul.mubr.bf16.gmra.mrb[0].mxu0 %v1254
    %v1290 = vpop.f32.mrb[0].mxu0
    %v1291 = vadd.f32 %v1239, %v1290
    %v1292 = vpop.f32.mrb[0].mxu0
    %v1293 = vpop.f32.mrb[0].mxu0
    %v1294 = vadd.f32 %v1239, %v1293
    %v1295 = vpop.f32.mrb[0].mxu0
    %1296 = vdwg.mxu0
    %v1297 = vadd.f32 %v1291, %v113
    %v1298 = vadd.f32 %v1294, %v114
    %v1299 = vld [vmem:[%s8] sm:$0x1]
    %v1300 = vld [vmem:[%s9] sm:$0x1]
    %v1301 = vsel %vm71, %v1297, 0.0
    %1302 = vadd.xlane.f32.xlu0 %v1301
    %v1303 = vpop.xlane.xlu0 %1302
    %v1304 = vsel %vm71, %v1298, 0.0
    %1305 = vadd.xlane.f32.xlu0 %v1304
    %v1306 = vpop.xlane.xlu0 %1305
    %v1307 = vmul.f32 %v1303, %v78
    %v1308 = vmul.f32 %v1306, %v78
    %v1309 = vsub.f32 %v1297, %v1307
    %v1310 = vsub.f32 %v1298, %v1308
    %v1311 = vmul.f32 %v1309, %v1309
    %v1312 = vmul.f32 %v1310, %v1310
    %v1313 = vsel %vm71, %v1311, 0.0
    %1314 = vadd.xlane.f32.xlu0 %v1313
    %v1315 = vpop.xlane.xlu0 %1314
    %v1316 = vsel %vm71, %v1312, 0.0
    %1317 = vadd.xlane.f32.xlu0 %v1316
    %v1318 = vpop.xlane.xlu0 %1317
    %v1319 = vmul.f32 %v1315, %v78
    %v1320 = vmul.f32 %v1318, %v78
    %v1321 = vadd.f32 %v1319, 1e-12
    %v1322 = vadd.f32 %v1320, 1e-12
    %v1323 = vrsqrt.pop %v1321
    %v1324 = vrsqrt.pop %v1322
    %v1325 = vmul.f32 %v1309, %v1323
    %v1326 = vmul.f32 %v1310, %v1324
    %v1328 = vlaneseq
    %v1329 = vshrl.u32 %v1328, 7
    %v1330 = vsub.s32 0, %v1329
    %v1331 = vrot.slane %v1299, %v1330
    %v1333 = vmul.f32 %v1325, %v1331
    %v1334 = vmul.f32 %v1326, %v1331
    %v1336 = vlaneseq
    %v1337 = vshrl.u32 %v1336, 7
    %v1338 = vsub.s32 0, %v1337
    %v1339 = vrot.slane %v1300, %v1338
    %v1341 = vadd.f32 %v1333, %v1339
    %v1342 = vadd.f32 %v1334, %v1339
    %v1343 = vpack.c.bf16 %v1342, %v1341
    %v1344 = vld [vmem:[%s10] sm:$0xf]
    %v1345 = vld [vmem:[%s10 + $0x4] sm:$0xf]
    %v1346 = vld [vmem:[%s10 + $0x8] sm:$0xf]
    %v1347 = vld [vmem:[%s10 + $0xc] sm:$0xf]
    %v1348 = vld [vmem:[%s11] sm:$0x1]
    %v1350 = vlaneseq
    %v1351 = vshrl.u32 %v1350, 7
    %v1352 = vsub.s32 0, %v1351
    %v1353 = vrot.slane %v1348, %v1352
    %v1359 = vunpack.c.l.b16 %v1344
    %v1360 = vunpack.c.l.b16 %v1345
    %v1361 = vunpack.c.l.b16 %v1346
    %v1362 = vunpack.c.l.b16 %v1347
    %v1363 = vpack.c.b16 %v1360, %v1359
    %v1364 = vpack.c.b16 %v1362, %v1361
    %v1368 = vsel %vm71, %v1343, 0
    %1370 = vmatprep.subr.bf16.mxu0 0
    %1371 = vmatpush1.bf16.msra.mxu0 %v1363
    %1372 = vmatprep.subr.bf16.mxu0 0
    %1373 = vmatpush1.bf16.msra.mxu0 %v1364
    %1374 = vmatprep.subr.bf16.mxu0 0
    %1375 = vmatpush1.bf16.msra.mxu0 0
    %1376 = vmatprep.subr.bf16.mxu0 0
    %1377 = vmatpush1.bf16.msra.mxu0 0
    %1378 = vmatprep.subr.bf16.mxu0 0
    %1379 = vmatpush1.bf16.msra.mxu0 0
    %1380 = vmatprep.subr.bf16.mxu0 0
    %1381 = vmatpush1.bf16.msra.mxu0 0
    %1382 = vmatprep.subr.bf16.mxu0 0
    %1383 = vmatpush1.bf16.msra.mxu0 0
    %1384 = vmatprep.subr.bf16.mxu0 0
    %1385 = vmatpush1.bf16.msra.mxu0 0
    %1386 = vmatprep.subr.bf16.mxu0 0
    %1387 = vmatpush1.bf16.msra.mxu0 0
    %1388 = vmatprep.subr.bf16.mxu0 0
    %1389 = vmatpush1.bf16.msra.mxu0 0
    %1390 = vmatprep.subr.bf16.mxu0 0
    %1391 = vmatpush1.bf16.msra.mxu0 0
    %1392 = vmatprep.subr.bf16.mxu0 0
    %1393 = vmatpush1.bf16.msra.mxu0 0
    %1394 = vmatprep.subr.bf16.mxu0 0
    %1395 = vmatpush1.bf16.msra.mxu0 0
    %1396 = vmatprep.subr.bf16.mxu0 0
    %1397 = vmatpush1.bf16.msra.mxu0 0
    %1398 = vmatprep.subr.bf16.mxu0 0
    %1399 = vmatpush1.bf16.msra.mxu0 0
    %1400 = vmatprep.subr.bf16.mxu0 0
    %1401 = vmatpush1.bf16.msra.mxu0 0
    %1402 = vmatprep.mubr.bf16.mxu0 0
    %1403 = vmatmul.mubr.bf16.gmra.mrb[0].mxu0 %v1368
    %v1404 = vpop.f32.mrb[0].mxu0
    %v1405 = vadd.f32 %v1353, %v1404
    %v1406 = vpop.f32.mrb[0].mxu0
    %v1407 = vpop.f32.mrb[0].mxu0
    %v1408 = vadd.f32 %v1353, %v1407
    %v1409 = vpop.f32.mrb[0].mxu0
    %1410 = vdwg.mxu0
    %v1411 = vmul.f32 %v1405, 0.5
    %v1412 = vmul.f32 %v1408, 0.5
    %v1413 = vmul.f32 %v1405, 0.044715
    %v1414 = vmul.f32 %v1408, 0.044715
    %v1415 = vmul.f32 %v1413, %v1405
    %v1416 = vmul.f32 %v1414, %v1408
    %v1417 = vmul.f32 %v1415, %v1405
    %v1418 = vmul.f32 %v1416, %v1408
    %v1419 = vadd.f32 %v1405, %v1417
    %v1420 = vadd.f32 %v1408, %v1418
    %v1421 = vmul.f32 %v1419, 0.7978846
    %v1422 = vmul.f32 %v1420, 0.7978846
    %v1423 = vtanh.pop %v1421
    %v1424 = vtanh.pop %v1422
    %v1425 = vadd.f32 %v1423, 1.0
    %v1426 = vadd.f32 %v1424, 1.0
    %v1427 = vmul.f32 %v1411, %v1425
    %v1428 = vmul.f32 %v1412, %v1426
    %v1429 = vpack.c.bf16 %v1428, %v1427
    %v1430 = vld [vmem:[%s12] sm:$0xf]
    %v1431 = vld [vmem:[%s12 + $0x4] sm:$0xf]
    %v1432 = vld [vmem:[%s12 + $0x8] sm:$0xf]
    %v1433 = vld [vmem:[%s12 + $0xc] sm:$0xf]
    %v1434 = vld [vmem:[%s12 + $0x10] sm:$0xf]
    %v1435 = vld [vmem:[%s12 + $0x14] sm:$0xf]
    %v1436 = vld [vmem:[%s12 + $0x18] sm:$0xf]
    %v1437 = vld [vmem:[%s12 + $0x1c] sm:$0xf]
    %v1438 = vld [vmem:[%s12 + $0x20] sm:$0xf]
    %v1439 = vld [vmem:[%s12 + $0x24] sm:$0xf]
    %v1440 = vld [vmem:[%s12 + $0x28] sm:$0xf]
    %v1441 = vld [vmem:[%s12 + $0x2c] sm:$0xf]
    %v1442 = vld [vmem:[%s12 + $0x30] sm:$0xf]
    %v1443 = vld [vmem:[%s12 + $0x34] sm:$0xf]
    %v1444 = vld [vmem:[%s12 + $0x38] sm:$0xf]
    %v1445 = vld [vmem:[%s12 + $0x3c] sm:$0xf]
    %v1446 = vld [vmem:[%s13] sm:$0x1]
    %v1448 = vlaneseq
    %v1449 = vshrl.u32 %v1448, 7
    %v1450 = vsub.s32 0, %v1449
    %v1451 = vrot.slane %v1446, %v1450
    %v1469 = vunpack.c.l.b16 %v1430
    %v1470 = vunpack.c.l.b16 %v1431
    %v1471 = vunpack.c.l.b16 %v1432
    %v1472 = vunpack.c.l.b16 %v1433
    %v1473 = vunpack.c.l.b16 %v1434
    %v1474 = vunpack.c.l.b16 %v1435
    %v1475 = vunpack.c.l.b16 %v1436
    %v1476 = vunpack.c.l.b16 %v1437
    %v1477 = vunpack.c.l.b16 %v1438
    %v1478 = vunpack.c.l.b16 %v1439
    %v1479 = vunpack.c.l.b16 %v1440
    %v1480 = vunpack.c.l.b16 %v1441
    %v1481 = vunpack.c.l.b16 %v1442
    %v1482 = vunpack.c.l.b16 %v1443
    %v1483 = vunpack.c.l.b16 %v1444
    %v1484 = vunpack.c.l.b16 %v1445
    %v1485 = vpack.c.b16 %v1470, %v1469
    %v1486 = vpack.c.b16 %v1472, %v1471
    %v1487 = vpack.c.b16 %v1474, %v1473
    %v1488 = vpack.c.b16 %v1476, %v1475
    %v1489 = vpack.c.b16 %v1478, %v1477
    %v1490 = vpack.c.b16 %v1480, %v1479
    %v1491 = vpack.c.b16 %v1482, %v1481
    %v1492 = vpack.c.b16 %v1484, %v1483
    %1501 = vmatprep.subr.bf16.mxu0 0
    %1502 = vmatpush1.bf16.msra.mxu0 %v1485
    %1503 = vmatprep.subr.bf16.mxu0 0
    %1504 = vmatpush1.bf16.msra.mxu0 %v1486
    %1505 = vmatprep.subr.bf16.mxu0 0
    %1506 = vmatpush1.bf16.msra.mxu0 %v1487
    %1507 = vmatprep.subr.bf16.mxu0 0
    %1508 = vmatpush1.bf16.msra.mxu0 %v1488
    %1509 = vmatprep.subr.bf16.mxu0 0
    %1510 = vmatpush1.bf16.msra.mxu0 %v1489
    %1511 = vmatprep.subr.bf16.mxu0 0
    %1512 = vmatpush1.bf16.msra.mxu0 %v1490
    %1513 = vmatprep.subr.bf16.mxu0 0
    %1514 = vmatpush1.bf16.msra.mxu0 %v1491
    %1515 = vmatprep.subr.bf16.mxu0 0
    %1516 = vmatpush1.bf16.msra.mxu0 %v1492
    %1517 = vmatprep.subr.bf16.mxu0 0
    %1518 = vmatpush1.bf16.msra.mxu0 0
    %1519 = vmatprep.subr.bf16.mxu0 0
    %1520 = vmatpush1.bf16.msra.mxu0 0
    %1521 = vmatprep.subr.bf16.mxu0 0
    %1522 = vmatpush1.bf16.msra.mxu0 0
    %1523 = vmatprep.subr.bf16.mxu0 0
    %1524 = vmatpush1.bf16.msra.mxu0 0
    %1525 = vmatprep.subr.bf16.mxu0 0
    %1526 = vmatpush1.bf16.msra.mxu0 0
    %1527 = vmatprep.subr.bf16.mxu0 0
    %1528 = vmatpush1.bf16.msra.mxu0 0
    %1529 = vmatprep.subr.bf16.mxu0 0
    %1530 = vmatpush1.bf16.msra.mxu0 0
    %1531 = vmatprep.subr.bf16.mxu0 0
    %1532 = vmatpush1.bf16.msra.mxu0 0
    %1533 = vmatprep.mubr.bf16.mxu0 0
    %1534 = vmatmul.mubr.bf16.gmra.mrb[0].mxu0 %v1429
    %v1535 = vpop.f32.mrb[0].mxu0
    %v1536 = vadd.f32 %v1451, %v1535
    %v1537 = vpop.f32.mrb[0].mxu0
    %v1538 = vpop.f32.mrb[0].mxu0
    %v1539 = vadd.f32 %v1451, %v1538
    %v1540 = vpop.f32.mrb[0].mxu0
    %1541 = vdwg.mxu0
    %v1542 = vadd.f32 %v1536, %v1341
    %v1543 = vadd.f32 %v1539, %v1342
    %v1544 = vld [vmem:[%s14] sm:$0x1]
    %v1545 = vld [vmem:[%s15] sm:$0x1]
    %v1546 = vsel %vm71, %v1542, 0.0
    %1547 = vadd.xlane.f32.xlu0 %v1546
    %v1548 = vpop.xlane.xlu0 %1547
    %v1549 = vsel %vm71, %v1543, 0.0
    %1550 = vadd.xlane.f32.xlu0 %v1549
    %v1551 = vpop.xlane.xlu0 %1550
    %v1552 = vmul.f32 %v1548, %v78
    %v1553 = vmul.f32 %v1551, %v78
    %v1554 = vsub.f32 %v1542, %v1552
    %v1555 = vsub.f32 %v1543, %v1553
    %v1556 = vmul.f32 %v1554, %v1554
    %v1557 = vmul.f32 %v1555, %v1555
    %v1558 = vsel %vm71, %v1556, 0.0
    %1559 = vadd.xlane.f32.xlu0 %v1558
    %v1560 = vpop.xlane.xlu0 %1559
    %v1561 = vsel %vm71, %v1557, 0.0
    %1562 = vadd.xlane.f32.xlu0 %v1561
    %v1563 = vpop.xlane.xlu0 %1562
    %v1564 = vmul.f32 %v1560, %v78
    %v1565 = vmul.f32 %v1563, %v78
    %v1566 = vadd.f32 %v1564, 1e-12
    %v1567 = vadd.f32 %v1565, 1e-12
    %v1568 = vrsqrt.pop %v1566
    %v1569 = vrsqrt.pop %v1567
    %v1570 = vmul.f32 %v1554, %v1568
    %v1571 = vmul.f32 %v1555, %v1569
    %v1573 = vlaneseq
    %v1574 = vshrl.u32 %v1573, 7
    %v1575 = vsub.s32 0, %v1574
    %v1576 = vrot.slane %v1544, %v1575
    %v1578 = vmul.f32 %v1570, %v1576
    %v1579 = vmul.f32 %v1571, %v1576
    %v1581 = vlaneseq
    %v1582 = vshrl.u32 %v1581, 7
    %v1583 = vsub.s32 0, %v1582
    %v1584 = vrot.slane %v1545, %v1583
    %v1586 = vadd.f32 %v1578, %v1584
    %v1587 = vadd.f32 %v1579, %v1584
    %v1588 = vpack.c.bf16 %v1587, %v1586
    %s1589 = scalar_lea.vmem %s4, 16
    %v1590 = vld [vmem:[%s1589] sm:$0xf]
    %v1591 = vld [vmem:[%s1589 + $0x4] sm:$0xf]
    %v1592 = vld [vmem:[%s1589 + $0x8] sm:$0xf]
    %v1593 = vld [vmem:[%s1589 + $0xc] sm:$0xf]
    %s1594 = scalar_lea.vmem %s5, 1
    %v1595 = vld [vmem:[%s1594] sm:$0x1]
    %v1597 = vlaneseq
    %v1598 = vshrl.u32 %v1597, 7
    %v1599 = vsub.s32 0, %v1598
    %v1600 = vrot.slane %v1595, %v1599
    %v1606 = vunpack.c.l.b16 %v1590
    %v1607 = vunpack.c.l.b16 %v1591
    %v1608 = vunpack.c.l.b16 %v1592
    %v1609 = vunpack.c.l.b16 %v1593
    %v1610 = vpack.c.b16 %v1607, %v1606
    %v1611 = vpack.c.b16 %v1609, %v1608
    %v1615 = vsel %vm71, %v1588, 0
    %1617 = vmatprep.subr.bf16.mxu0 0
    %1618 = vmatpush1.bf16.msra.mxu0 %v1610
    %1619 = vmatprep.subr.bf16.mxu0 0
    %1620 = vmatpush1.bf16.msra.mxu0 %v1611
    %1621 = vmatprep.subr.bf16.mxu0 0
    %1622 = vmatpush1.bf16.msra.mxu0 0
    %1623 = vmatprep.subr.bf16.mxu0 0
    %1624 = vmatpush1.bf16.msra.mxu0 0
    %1625 = vmatprep.subr.bf16.mxu0 0
    %1626 = vmatpush1.bf16.msra.mxu0 0
    %1627 = vmatprep.subr.bf16.mxu0 0
    %1628 = vmatpush1.bf16.msra.mxu0 0
    %1629 = vmatprep.subr.bf16.mxu0 0
    %1630 = vmatpush1.bf16.msra.mxu0 0
    %1631 = vmatprep.subr.bf16.mxu0 0
    %1632 = vmatpush1.bf16.msra.mxu0 0
    %1633 = vmatprep.subr.bf16.mxu0 0
    %1634 = vmatpush1.bf16.msra.mxu0 0
    %1635 = vmatprep.subr.bf16.mxu0 0
    %1636 = vmatpush1.bf16.msra.mxu0 0
    %1637 = vmatprep.subr.bf16.mxu0 0
    %1638 = vmatpush1.bf16.msra.mxu0 0
    %1639 = vmatprep.subr.bf16.mxu0 0
    %1640 = vmatpush1.bf16.msra.mxu0 0
    %1641 = vmatprep.subr.bf16.mxu0 0
    %1642 = vmatpush1.bf16.msra.mxu0 0
    %1643 = vmatprep.subr.bf16.mxu0 0
    %1644 = vmatpush1.bf16.msra.mxu0 0
    %1645 = vmatprep.subr.bf16.mxu0 0
    %1646 = vmatpush1.bf16.msra.mxu0 0
    %1647 = vmatprep.subr.bf16.mxu0 0
    %1648 = vmatpush1.bf16.msra.mxu0 0
    %1649 = vmatprep.mubr.bf16.mxu0 0
    %1650 = vmatmul.mubr.bf16.gmra.mrb[0].mxu0 %v1615
    %v1651 = vpop.f32.mrb[0].mxu0
    %v1652 = vadd.f32 %v1600, %v1651
    %v1653 = vpop.f32.mrb[0].mxu0
    %v1654 = vpop.f32.mrb[0].mxu0
    %v1655 = vadd.f32 %v1600, %v1654
    %v1656 = vpop.f32.mrb[0].mxu0
    %1657 = vdwg.mxu0
    %1660 = vrot.lane.b32.xlu0 %v1652, 120
    %v1661 = vpop.permute.xlu0 %1660
    %1662 = vrot.lane.b32.xlu0 %v1655, 120
    %v1663 = vpop.permute.xlu0 %1662
    %1666 = vrot.lane.b32.xlu0 %v1652, 112
    %v1667 = vpop.permute.xlu0 %1666
    %1668 = vrot.lane.b32.xlu0 %v1655, 112
    %v1669 = vpop.permute.xlu0 %1668
    %1672 = vrot.lane.b32.xlu0 %v1652, 104
    %v1673 = vpop.permute.xlu0 %1672
    %1674 = vrot.lane.b32.xlu0 %v1655, 104
    %v1675 = vpop.permute.xlu0 %1674
    %v1678 = vmul.f32 %v1652, 0.35355338
    %v1679 = vmul.f32 %v1655, 0.35355338
    %v1680 = vmul.f32 %v1661, 0.35355338
    %v1681 = vmul.f32 %v1663, 0.35355338
    %v1682 = vmul.f32 %v1667, 0.35355338
    %v1683 = vmul.f32 %v1669, 0.35355338
    %v1684 = vmul.f32 %v1673, 0.35355338
    %v1685 = vmul.f32 %v1675, 0.35355338
    %v1686 = vpack.c.bf16 %v1678, %v1678
    %v1687 = vpack.c.bf16 %v1679, %v1679
    %v1688 = vpack.c.bf16 %v1680, %v1680
    %v1689 = vpack.c.bf16 %v1681, %v1681
    %v1690 = vpack.c.bf16 %v1682, %v1682
    %v1691 = vpack.c.bf16 %v1683, %v1683
    %v1692 = vpack.c.bf16 %v1684, %v1684
    %v1693 = vpack.c.bf16 %v1685, %v1685
    %v1694 = vpack.c.bf16 %v1652, %v1652
    %v1695 = vpack.c.bf16 %v1655, %v1655
    %v1696 = vpack.c.bf16 %v1661, %v1661
    %v1697 = vpack.c.bf16 %v1663, %v1663
    %v1698 = vpack.c.bf16 %v1667, %v1667
    %v1699 = vpack.c.bf16 %v1669, %v1669
    %v1700 = vpack.c.bf16 %v1673, %v1673
    %v1701 = vpack.c.bf16 %v1675, %v1675
    %1703 = vrot.lane.b32.xlu0 %v1694, 96
    %v1704 = vpop.permute.xlu0 %1703
    %v1706 = vsel %vm321, %v1686, 0
    %v1709 = vsel %vm321, %v1704, 0
    %1711 = vmatprep.subr.bf16.mxu0 0
    %1712 = vmatpush1.bf16.xpose.msra.mxu0 %v1709
    %1713 = vmatprep.subr.bf16.mxu0 0
    %1714 = vmatpush1.bf16.xpose.msra.mxu0 0
    %1715 = vmatprep.subr.bf16.mxu0 0
    %1716 = vmatpush1.bf16.xpose.msra.mxu0 0
    %1717 = vmatprep.subr.bf16.mxu0 0
    %1718 = vmatpush1.bf16.xpose.msra.mxu0 0
    %1719 = vmatprep.subr.bf16.mxu0 0
    %1720 = vmatpush1.bf16.xpose.msra.mxu0 0
    %1721 = vmatprep.subr.bf16.mxu0 0
    %1722 = vmatpush1.bf16.xpose.msra.mxu0 0
    %1723 = vmatprep.subr.bf16.mxu0 0
    %1724 = vmatpush1.bf16.xpose.msra.mxu0 0
    %1725 = vmatprep.subr.bf16.mxu0 0
    %1726 = vmatpush1.bf16.xpose.msra.mxu0 0
    %1727 = vmatprep.subr.bf16.mxu0 0
    %1728 = vmatpush1.bf16.xpose.msra.mxu0 0
    %1729 = vmatprep.subr.bf16.mxu0 0
    %1730 = vmatpush1.bf16.xpose.msra.mxu0 0
    %1731 = vmatprep.subr.bf16.mxu0 0
    %1732 = vmatpush1.bf16.xpose.msra.mxu0 0
    %1733 = vmatprep.subr.bf16.mxu0 0
    %1734 = vmatpush1.bf16.xpose.msra.mxu0 0
    %1735 = vmatprep.subr.bf16.mxu0 0
    %1736 = vmatpush1.bf16.xpose.msra.mxu0 0
    %1737 = vmatprep.subr.bf16.mxu0 0
    %1738 = vmatpush1.bf16.xpose.msra.mxu0 0
    %1739 = vmatprep.subr.bf16.mxu0 0
    %1740 = vmatpush1.bf16.xpose.msra.mxu0 0
    %1741 = vmatprep.subr.bf16.mxu0 0
    %1742 = vmatpush1.bf16.xpose.msra.mxu0 0
    %1743 = vmatprep.mubr.bf16.mxu0 0
    %1744 = vmatmul.mubr.bf16.gmra.mrb[0].mxu0 %v1706
    %v1745 = vpop.f32.mrb[0].mxu0
    %v1746 = vadd.f32 %v281, %v1745
    %v1747 = vpop.f32.mrb[0].mxu0
    %v1748 = vpop.f32.mrb[0].mxu0
    %v1749 = vpop.f32.mrb[0].mxu0
    %1750 = vdwg.mxu0
    %1752 = vrot.lane.b32.xlu0 %v1695, 96
    %v1753 = vpop.permute.xlu0 %1752
    %v1755 = vsel %vm321, %v1687, 0
    %v1758 = vsel %vm321, %v1753, 0
    %1760 = vmatprep.subr.bf16.mxu0 0
    %1761 = vmatpush1.bf16.xpose.msra.mxu0 %v1758
    %1762 = vmatprep.subr.bf16.mxu0 0
    %1763 = vmatpush1.bf16.xpose.msra.mxu0 0
    %1764 = vmatprep.subr.bf16.mxu0 0
    %1765 = vmatpush1.bf16.xpose.msra.mxu0 0
    %1766 = vmatprep.subr.bf16.mxu0 0
    %1767 = vmatpush1.bf16.xpose.msra.mxu0 0
    %1768 = vmatprep.subr.bf16.mxu0 0
    %1769 = vmatpush1.bf16.xpose.msra.mxu0 0
    %1770 = vmatprep.subr.bf16.mxu0 0
    %1771 = vmatpush1.bf16.xpose.msra.mxu0 0
    %1772 = vmatprep.subr.bf16.mxu0 0
    %1773 = vmatpush1.bf16.xpose.msra.mxu0 0
    %1774 = vmatprep.subr.bf16.mxu0 0
    %1775 = vmatpush1.bf16.xpose.msra.mxu0 0
    %1776 = vmatprep.subr.bf16.mxu0 0
    %1777 = vmatpush1.bf16.xpose.msra.mxu0 0
    %1778 = vmatprep.subr.bf16.mxu0 0
    %1779 = vmatpush1.bf16.xpose.msra.mxu0 0
    %1780 = vmatprep.subr.bf16.mxu0 0
    %1781 = vmatpush1.bf16.xpose.msra.mxu0 0
    %1782 = vmatprep.subr.bf16.mxu0 0
    %1783 = vmatpush1.bf16.xpose.msra.mxu0 0
    %1784 = vmatprep.subr.bf16.mxu0 0
    %1785 = vmatpush1.bf16.xpose.msra.mxu0 0
    %1786 = vmatprep.subr.bf16.mxu0 0
    %1787 = vmatpush1.bf16.xpose.msra.mxu0 0
    %1788 = vmatprep.subr.bf16.mxu0 0
    %1789 = vmatpush1.bf16.xpose.msra.mxu0 0
    %1790 = vmatprep.subr.bf16.mxu0 0
    %1791 = vmatpush1.bf16.xpose.msra.mxu0 0
    %1792 = vmatprep.mubr.bf16.mxu0 0
    %1793 = vmatmul.mubr.bf16.gmra.mrb[0].mxu0 %v1755
    %v1794 = vpop.f32.mrb[0].mxu0
    %v1795 = vadd.f32 %v285, %v1794
    %v1796 = vpop.f32.mrb[0].mxu0
    %v1797 = vpop.f32.mrb[0].mxu0
    %v1798 = vpop.f32.mrb[0].mxu0
    %1799 = vdwg.mxu0
    %1801 = vrot.lane.b32.xlu0 %v1696, 96
    %v1802 = vpop.permute.xlu0 %1801
    %v1804 = vsel %vm321, %v1688, 0
    %v1807 = vsel %vm321, %v1802, 0
    %1809 = vmatprep.subr.bf16.mxu0 0
    %1810 = vmatpush1.bf16.xpose.msra.mxu0 %v1807
    %1811 = vmatprep.subr.bf16.mxu0 0
    %1812 = vmatpush1.bf16.xpose.msra.mxu0 0
    %1813 = vmatprep.subr.bf16.mxu0 0
    %1814 = vmatpush1.bf16.xpose.msra.mxu0 0
    %1815 = vmatprep.subr.bf16.mxu0 0
    %1816 = vmatpush1.bf16.xpose.msra.mxu0 0
    %1817 = vmatprep.subr.bf16.mxu0 0
    %1818 = vmatpush1.bf16.xpose.msra.mxu0 0
    %1819 = vmatprep.subr.bf16.mxu0 0
    %1820 = vmatpush1.bf16.xpose.msra.mxu0 0
    %1821 = vmatprep.subr.bf16.mxu0 0
    %1822 = vmatpush1.bf16.xpose.msra.mxu0 0
    %1823 = vmatprep.subr.bf16.mxu0 0
    %1824 = vmatpush1.bf16.xpose.msra.mxu0 0
    %1825 = vmatprep.subr.bf16.mxu0 0
    %1826 = vmatpush1.bf16.xpose.msra.mxu0 0
    %1827 = vmatprep.subr.bf16.mxu0 0
    %1828 = vmatpush1.bf16.xpose.msra.mxu0 0
    %1829 = vmatprep.subr.bf16.mxu0 0
    %1830 = vmatpush1.bf16.xpose.msra.mxu0 0
    %1831 = vmatprep.subr.bf16.mxu0 0
    %1832 = vmatpush1.bf16.xpose.msra.mxu0 0
    %1833 = vmatprep.subr.bf16.mxu0 0
    %1834 = vmatpush1.bf16.xpose.msra.mxu0 0
    %1835 = vmatprep.subr.bf16.mxu0 0
    %1836 = vmatpush1.bf16.xpose.msra.mxu0 0
    %1837 = vmatprep.subr.bf16.mxu0 0
    %1838 = vmatpush1.bf16.xpose.msra.mxu0 0
    %1839 = vmatprep.subr.bf16.mxu0 0
    %1840 = vmatpush1.bf16.xpose.msra.mxu0 0
    %1841 = vmatprep.mubr.bf16.mxu0 0
    %1842 = vmatmul.mubr.bf16.gmra.mrb[0].mxu0 %v1804
    %v1843 = vpop.f32.mrb[0].mxu0
    %v1844 = vadd.f32 %v289, %v1843
    %v1845 = vpop.f32.mrb[0].mxu0
    %v1846 = vpop.f32.mrb[0].mxu0
    %v1847 = vpop.f32.mrb[0].mxu0
    %1848 = vdwg.mxu0
    %1850 = vrot.lane.b32.xlu0 %v1697, 96
    %v1851 = vpop.permute.xlu0 %1850
    %v1853 = vsel %vm321, %v1689, 0
    %v1856 = vsel %vm321, %v1851, 0
    %1858 = vmatprep.subr.bf16.mxu0 0
    %1859 = vmatpush1.bf16.xpose.msra.mxu0 %v1856
    %1860 = vmatprep.subr.bf16.mxu0 0
    %1861 = vmatpush1.bf16.xpose.msra.mxu0 0
    %1862 = vmatprep.subr.bf16.mxu0 0
    %1863 = vmatpush1.bf16.xpose.msra.mxu0 0
    %1864 = vmatprep.subr.bf16.mxu0 0
    %1865 = vmatpush1.bf16.xpose.msra.mxu0 0
    %1866 = vmatprep.subr.bf16.mxu0 0
    %1867 = vmatpush1.bf16.xpose.msra.mxu0 0
    %1868 = vmatprep.subr.bf16.mxu0 0
    %1869 = vmatpush1.bf16.xpose.msra.mxu0 0
    %1870 = vmatprep.subr.bf16.mxu0 0
    %1871 = vmatpush1.bf16.xpose.msra.mxu0 0
    %1872 = vmatprep.subr.bf16.mxu0 0
    %1873 = vmatpush1.bf16.xpose.msra.mxu0 0
    %1874 = vmatprep.subr.bf16.mxu0 0
    %1875 = vmatpush1.bf16.xpose.msra.mxu0 0
    %1876 = vmatprep.subr.bf16.mxu0 0
    %1877 = vmatpush1.bf16.xpose.msra.mxu0 0
    %1878 = vmatprep.subr.bf16.mxu0 0
    %1879 = vmatpush1.bf16.xpose.msra.mxu0 0
    %1880 = vmatprep.subr.bf16.mxu0 0
    %1881 = vmatpush1.bf16.xpose.msra.mxu0 0
    %1882 = vmatprep.subr.bf16.mxu0 0
    %1883 = vmatpush1.bf16.xpose.msra.mxu0 0
    %1884 = vmatprep.subr.bf16.mxu0 0
    %1885 = vmatpush1.bf16.xpose.msra.mxu0 0
    %1886 = vmatprep.subr.bf16.mxu0 0
    %1887 = vmatpush1.bf16.xpose.msra.mxu0 0
    %1888 = vmatprep.subr.bf16.mxu0 0
    %1889 = vmatpush1.bf16.xpose.msra.mxu0 0
    %1890 = vmatprep.mubr.bf16.mxu0 0
    %1891 = vmatmul.mubr.bf16.gmra.mrb[0].mxu0 %v1853
    %v1892 = vpop.f32.mrb[0].mxu0
    %v1893 = vadd.f32 %v293, %v1892
    %v1894 = vpop.f32.mrb[0].mxu0
    %v1895 = vpop.f32.mrb[0].mxu0
    %v1896 = vpop.f32.mrb[0].mxu0
    %1897 = vdwg.mxu0
    %1899 = vrot.lane.b32.xlu0 %v1698, 96
    %v1900 = vpop.permute.xlu0 %1899
    %v1902 = vsel %vm321, %v1690, 0
    %v1905 = vsel %vm321, %v1900, 0
    %1907 = vmatprep.subr.bf16.mxu0 0
    %1908 = vmatpush1.bf16.xpose.msra.mxu0 %v1905
    %1909 = vmatprep.subr.bf16.mxu0 0
    %1910 = vmatpush1.bf16.xpose.msra.mxu0 0
    %1911 = vmatprep.subr.bf16.mxu0 0
    %1912 = vmatpush1.bf16.xpose.msra.mxu0 0
    %1913 = vmatprep.subr.bf16.mxu0 0
    %1914 = vmatpush1.bf16.xpose.msra.mxu0 0
    %1915 = vmatprep.subr.bf16.mxu0 0
    %1916 = vmatpush1.bf16.xpose.msra.mxu0 0
    %1917 = vmatprep.subr.bf16.mxu0 0
    %1918 = vmatpush1.bf16.xpose.msra.mxu0 0
    %1919 = vmatprep.subr.bf16.mxu0 0
    %1920 = vmatpush1.bf16.xpose.msra.mxu0 0
    %1921 = vmatprep.subr.bf16.mxu0 0
    %1922 = vmatpush1.bf16.xpose.msra.mxu0 0
    %1923 = vmatprep.subr.bf16.mxu0 0
    %1924 = vmatpush1.bf16.xpose.msra.mxu0 0
    %1925 = vmatprep.subr.bf16.mxu0 0
    %1926 = vmatpush1.bf16.xpose.msra.mxu0 0
    %1927 = vmatprep.subr.bf16.mxu0 0
    %1928 = vmatpush1.bf16.xpose.msra.mxu0 0
    %1929 = vmatprep.subr.bf16.mxu0 0
    %1930 = vmatpush1.bf16.xpose.msra.mxu0 0
    %1931 = vmatprep.subr.bf16.mxu0 0
    %1932 = vmatpush1.bf16.xpose.msra.mxu0 0
    %1933 = vmatprep.subr.bf16.mxu0 0
    %1934 = vmatpush1.bf16.xpose.msra.mxu0 0
    %1935 = vmatprep.subr.bf16.mxu0 0
    %1936 = vmatpush1.bf16.xpose.msra.mxu0 0
    %1937 = vmatprep.subr.bf16.mxu0 0
    %1938 = vmatpush1.bf16.xpose.msra.mxu0 0
    %1939 = vmatprep.mubr.bf16.mxu0 0
    %1940 = vmatmul.mubr.bf16.gmra.mrb[0].mxu0 %v1902
    %v1941 = vpop.f32.mrb[0].mxu0
    %v1942 = vadd.f32 %v297, %v1941
    %v1943 = vpop.f32.mrb[0].mxu0
    %v1944 = vpop.f32.mrb[0].mxu0
    %v1945 = vpop.f32.mrb[0].mxu0
    %1946 = vdwg.mxu0
    %1948 = vrot.lane.b32.xlu0 %v1699, 96
    %v1949 = vpop.permute.xlu0 %1948
    %v1951 = vsel %vm321, %v1691, 0
    %v1954 = vsel %vm321, %v1949, 0
    %1956 = vmatprep.subr.bf16.mxu0 0
    %1957 = vmatpush1.bf16.xpose.msra.mxu0 %v1954
    %1958 = vmatprep.subr.bf16.mxu0 0
    %1959 = vmatpush1.bf16.xpose.msra.mxu0 0
    %1960 = vmatprep.subr.bf16.mxu0 0
    %1961 = vmatpush1.bf16.xpose.msra.mxu0 0
    %1962 = vmatprep.subr.bf16.mxu0 0
    %1963 = vmatpush1.bf16.xpose.msra.mxu0 0
    %1964 = vmatprep.subr.bf16.mxu0 0
    %1965 = vmatpush1.bf16.xpose.msra.mxu0 0
    %1966 = vmatprep.subr.bf16.mxu0 0
    %1967 = vmatpush1.bf16.xpose.msra.mxu0 0
    %1968 = vmatprep.subr.bf16.mxu0 0
    %1969 = vmatpush1.bf16.xpose.msra.mxu0 0
    %1970 = vmatprep.subr.bf16.mxu0 0
    %1971 = vmatpush1.bf16.xpose.msra.mxu0 0
    %1972 = vmatprep.subr.bf16.mxu0 0
    %1973 = vmatpush1.bf16.xpose.msra.mxu0 0
    %1974 = vmatprep.subr.bf16.mxu0 0
    %1975 = vmatpush1.bf16.xpose.msra.mxu0 0
    %1976 = vmatprep.subr.bf16.mxu0 0
    %1977 = vmatpush1.bf16.xpose.msra.mxu0 0
    %1978 = vmatprep.subr.bf16.mxu0 0
    %1979 = vmatpush1.bf16.xpose.msra.mxu0 0
    %1980 = vmatprep.subr.bf16.mxu0 0
    %1981 = vmatpush1.bf16.xpose.msra.mxu0 0
    %1982 = vmatprep.subr.bf16.mxu0 0
    %1983 = vmatpush1.bf16.xpose.msra.mxu0 0
    %1984 = vmatprep.subr.bf16.mxu0 0
    %1985 = vmatpush1.bf16.xpose.msra.mxu0 0
    %1986 = vmatprep.subr.bf16.mxu0 0
    %1987 = vmatpush1.bf16.xpose.msra.mxu0 0
    %1988 = vmatprep.mubr.bf16.mxu0 0
    %1989 = vmatmul.mubr.bf16.gmra.mrb[0].mxu0 %v1951
    %v1990 = vpop.f32.mrb[0].mxu0
    %v1991 = vadd.f32 %v301, %v1990
    %v1992 = vpop.f32.mrb[0].mxu0
    %v1993 = vpop.f32.mrb[0].mxu0
    %v1994 = vpop.f32.mrb[0].mxu0
    %1995 = vdwg.mxu0
    %1997 = vrot.lane.b32.xlu0 %v1700, 96
    %v1998 = vpop.permute.xlu0 %1997
    %v2000 = vsel %vm321, %v1692, 0
    %v2003 = vsel %vm321, %v1998, 0
    %2005 = vmatprep.subr.bf16.mxu0 0
    %2006 = vmatpush1.bf16.xpose.msra.mxu0 %v2003
    %2007 = vmatprep.subr.bf16.mxu0 0
    %2008 = vmatpush1.bf16.xpose.msra.mxu0 0
    %2009 = vmatprep.subr.bf16.mxu0 0
    %2010 = vmatpush1.bf16.xpose.msra.mxu0 0
    %2011 = vmatprep.subr.bf16.mxu0 0
    %2012 = vmatpush1.bf16.xpose.msra.mxu0 0
    %2013 = vmatprep.subr.bf16.mxu0 0
    %2014 = vmatpush1.bf16.xpose.msra.mxu0 0
    %2015 = vmatprep.subr.bf16.mxu0 0
    %2016 = vmatpush1.bf16.xpose.msra.mxu0 0
    %2017 = vmatprep.subr.bf16.mxu0 0
    %2018 = vmatpush1.bf16.xpose.msra.mxu0 0
    %2019 = vmatprep.subr.bf16.mxu0 0
    %2020 = vmatpush1.bf16.xpose.msra.mxu0 0
    %2021 = vmatprep.subr.bf16.mxu0 0
    %2022 = vmatpush1.bf16.xpose.msra.mxu0 0
    %2023 = vmatprep.subr.bf16.mxu0 0
    %2024 = vmatpush1.bf16.xpose.msra.mxu0 0
    %2025 = vmatprep.subr.bf16.mxu0 0
    %2026 = vmatpush1.bf16.xpose.msra.mxu0 0
    %2027 = vmatprep.subr.bf16.mxu0 0
    %2028 = vmatpush1.bf16.xpose.msra.mxu0 0
    %2029 = vmatprep.subr.bf16.mxu0 0
    %2030 = vmatpush1.bf16.xpose.msra.mxu0 0
    %2031 = vmatprep.subr.bf16.mxu0 0
    %2032 = vmatpush1.bf16.xpose.msra.mxu0 0
    %2033 = vmatprep.subr.bf16.mxu0 0
    %2034 = vmatpush1.bf16.xpose.msra.mxu0 0
    %2035 = vmatprep.subr.bf16.mxu0 0
    %2036 = vmatpush1.bf16.xpose.msra.mxu0 0
    %2037 = vmatprep.mubr.bf16.mxu0 0
    %2038 = vmatmul.mubr.bf16.gmra.mrb[0].mxu0 %v2000
    %v2039 = vpop.f32.mrb[0].mxu0
    %v2040 = vadd.f32 %v305, %v2039
    %v2041 = vpop.f32.mrb[0].mxu0
    %v2042 = vpop.f32.mrb[0].mxu0
    %v2043 = vpop.f32.mrb[0].mxu0
    %2044 = vdwg.mxu0
    %2046 = vrot.lane.b32.xlu0 %v1701, 96
    %v2047 = vpop.permute.xlu0 %2046
    %v2049 = vsel %vm321, %v1693, 0
    %v2052 = vsel %vm321, %v2047, 0
    %2054 = vmatprep.subr.bf16.mxu0 0
    %2055 = vmatpush1.bf16.xpose.msra.mxu0 %v2052
    %2056 = vmatprep.subr.bf16.mxu0 0
    %2057 = vmatpush1.bf16.xpose.msra.mxu0 0
    %2058 = vmatprep.subr.bf16.mxu0 0
    %2059 = vmatpush1.bf16.xpose.msra.mxu0 0
    %2060 = vmatprep.subr.bf16.mxu0 0
    %2061 = vmatpush1.bf16.xpose.msra.mxu0 0
    %2062 = vmatprep.subr.bf16.mxu0 0
    %2063 = vmatpush1.bf16.xpose.msra.mxu0 0
    %2064 = vmatprep.subr.bf16.mxu0 0
    %2065 = vmatpush1.bf16.xpose.msra.mxu0 0
    %2066 = vmatprep.subr.bf16.mxu0 0
    %2067 = vmatpush1.bf16.xpose.msra.mxu0 0
    %2068 = vmatprep.subr.bf16.mxu0 0
    %2069 = vmatpush1.bf16.xpose.msra.mxu0 0
    %2070 = vmatprep.subr.bf16.mxu0 0
    %2071 = vmatpush1.bf16.xpose.msra.mxu0 0
    %2072 = vmatprep.subr.bf16.mxu0 0
    %2073 = vmatpush1.bf16.xpose.msra.mxu0 0
    %2074 = vmatprep.subr.bf16.mxu0 0
    %2075 = vmatpush1.bf16.xpose.msra.mxu0 0
    %2076 = vmatprep.subr.bf16.mxu0 0
    %2077 = vmatpush1.bf16.xpose.msra.mxu0 0
    %2078 = vmatprep.subr.bf16.mxu0 0
    %2079 = vmatpush1.bf16.xpose.msra.mxu0 0
    %2080 = vmatprep.subr.bf16.mxu0 0
    %2081 = vmatpush1.bf16.xpose.msra.mxu0 0
    %2082 = vmatprep.subr.bf16.mxu0 0
    %2083 = vmatpush1.bf16.xpose.msra.mxu0 0
    %2084 = vmatprep.subr.bf16.mxu0 0
    %2085 = vmatpush1.bf16.xpose.msra.mxu0 0
    %2086 = vmatprep.mubr.bf16.mxu0 0
    %2087 = vmatmul.mubr.bf16.gmra.mrb[0].mxu0 %v2049
    %v2088 = vpop.f32.mrb[0].mxu0
    %v2089 = vadd.f32 %v309, %v2088
    %v2090 = vpop.f32.mrb[0].mxu0
    %v2091 = vpop.f32.mrb[0].mxu0
    %v2092 = vpop.f32.mrb[0].mxu0
    %2093 = vdwg.mxu0
    %v2094 = vsel %vm321, %v1746, -inf
    %2095 = vmax.xlane.f32.xlu0 %v2094
    %v2096 = vpop.xlane.xlu0 %2095
    %v2097 = vsel %vm321, %v1795, -inf
    %2098 = vmax.xlane.f32.xlu0 %v2097
    %v2099 = vpop.xlane.xlu0 %2098
    %v2100 = vsel %vm321, %v1844, -inf
    %2101 = vmax.xlane.f32.xlu0 %v2100
    %v2102 = vpop.xlane.xlu0 %2101
    %v2103 = vsel %vm321, %v1893, -inf
    %2104 = vmax.xlane.f32.xlu0 %v2103
    %v2105 = vpop.xlane.xlu0 %2104
    %v2106 = vsel %vm321, %v1942, -inf
    %2107 = vmax.xlane.f32.xlu0 %v2106
    %v2108 = vpop.xlane.xlu0 %2107
    %v2109 = vsel %vm321, %v1991, -inf
    %2110 = vmax.xlane.f32.xlu0 %v2109
    %v2111 = vpop.xlane.xlu0 %2110
    %v2112 = vsel %vm321, %v2040, -inf
    %2113 = vmax.xlane.f32.xlu0 %v2112
    %v2114 = vpop.xlane.xlu0 %2113
    %v2115 = vsel %vm321, %v2089, -inf
    %2116 = vmax.xlane.f32.xlu0 %v2115
    %v2117 = vpop.xlane.xlu0 %2116
    %v2118 = vsub.f32 %v1746, %v2096
    %v2119 = vsub.f32 %v1795, %v2099
    %v2120 = vsub.f32 %v1844, %v2102
    %v2121 = vsub.f32 %v1893, %v2105
    %v2122 = vsub.f32 %v1942, %v2108
    %v2123 = vsub.f32 %v1991, %v2111
    %v2124 = vsub.f32 %v2040, %v2114
    %v2125 = vsub.f32 %v2089, %v2117
    %v2126 = vmul.f32 %v2118, 1.442695
    %v2127 = vpow.pop %v2126
    %v2128 = vmul.f32 %v2119, 1.442695
    %v2129 = vpow.pop %v2128
    %v2130 = vmul.f32 %v2120, 1.442695
    %v2131 = vpow.pop %v2130
    %v2132 = vmul.f32 %v2121, 1.442695
    %v2133 = vpow.pop %v2132
    %v2134 = vmul.f32 %v2122, 1.442695
    %v2135 = vpow.pop %v2134
    %v2136 = vmul.f32 %v2123, 1.442695
    %v2137 = vpow.pop %v2136
    %v2138 = vmul.f32 %v2124, 1.442695
    %v2139 = vpow.pop %v2138
    %v2140 = vmul.f32 %v2125, 1.442695
    %v2141 = vpow.pop %v2140
    %v2142 = vsel %vm321, %v2127, 0.0
    %2143 = vadd.xlane.f32.xlu0 %v2142
    %v2144 = vpop.xlane.xlu0 %2143
    %v2145 = vsel %vm321, %v2129, 0.0
    %2146 = vadd.xlane.f32.xlu0 %v2145
    %v2147 = vpop.xlane.xlu0 %2146
    %v2148 = vsel %vm321, %v2131, 0.0
    %2149 = vadd.xlane.f32.xlu0 %v2148
    %v2150 = vpop.xlane.xlu0 %2149
    %v2151 = vsel %vm321, %v2133, 0.0
    %2152 = vadd.xlane.f32.xlu0 %v2151
    %v2153 = vpop.xlane.xlu0 %2152
    %v2154 = vsel %vm321, %v2135, 0.0
    %2155 = vadd.xlane.f32.xlu0 %v2154
    %v2156 = vpop.xlane.xlu0 %2155
    %v2157 = vsel %vm321, %v2137, 0.0
    %2158 = vadd.xlane.f32.xlu0 %v2157
    %v2159 = vpop.xlane.xlu0 %2158
    %v2160 = vsel %vm321, %v2139, 0.0
    %2161 = vadd.xlane.f32.xlu0 %v2160
    %v2162 = vpop.xlane.xlu0 %2161
    %v2163 = vsel %vm321, %v2141, 0.0
    %2164 = vadd.xlane.f32.xlu0 %v2163
    %v2165 = vpop.xlane.xlu0 %2164
    %v2166 = vrcp.pop %v2144
    %v2167 = vrcp.pop %v2147
    %v2168 = vrcp.pop %v2150
    %v2169 = vrcp.pop %v2153
    %v2170 = vrcp.pop %v2156
    %v2171 = vrcp.pop %v2159
    %v2172 = vrcp.pop %v2162
    %v2173 = vrcp.pop %v2165
    %v2174 = vmul.f32 %v2127, %v2166
    %v2175 = vmul.f32 %v2129, %v2167
    %v2176 = vmul.f32 %v2131, %v2168
    %v2177 = vmul.f32 %v2133, %v2169
    %v2178 = vmul.f32 %v2135, %v2170
    %v2179 = vmul.f32 %v2137, %v2171
    %v2180 = vmul.f32 %v2139, %v2172
    %v2181 = vmul.f32 %v2141, %v2173
    %v2182 = vpack.c.bf16 %v2174, %v2174
    %v2183 = vpack.c.bf16 %v2175, %v2175
    %v2184 = vpack.c.bf16 %v2176, %v2176
    %v2185 = vpack.c.bf16 %v2177, %v2177
    %v2186 = vpack.c.bf16 %v2178, %v2178
    %v2187 = vpack.c.bf16 %v2179, %v2179
    %v2188 = vpack.c.bf16 %v2180, %v2180
    %v2189 = vpack.c.bf16 %v2181, %v2181
    %2190 = vrot.lane.b32.xlu0 %v1694, 64
    %v2191 = vpop.permute.xlu0 %2190
    %v2193 = vsel %vm321, %v2182, 0
    %v2196 = vsel %vm812, %v2191, 0
    %2198 = vmatprep.subr.bf16.mxu0 0
    %2199 = vmatpush1.bf16.msra.mxu0 %v2196
    %2200 = vmatprep.subr.bf16.mxu0 0
    %2201 = vmatpush1.bf16.msra.mxu0 0
    %2202 = vmatprep.subr.bf16.mxu0 0
    %2203 = vmatpush1.bf16.msra.mxu0 0
    %2204 = vmatprep.subr.bf16.mxu0 0
    %2205 = vmatpush1.bf16.msra.mxu0 0
    %2206 = vmatprep.subr.bf16.mxu0 0
    %2207 = vmatpush1.bf16.msra.mxu0 0
    %2208 = vmatprep.subr.bf16.mxu0 0
    %2209 = vmatpush1.bf16.msra.mxu0 0
    %2210 = vmatprep.subr.bf16.mxu0 0
    %2211 = vmatpush1.bf16.msra.mxu0 0
    %2212 = vmatprep.subr.bf16.mxu0 0
    %2213 = vmatpush1.bf16.msra.mxu0 0
    %2214 = vmatprep.subr.bf16.mxu0 0
    %2215 = vmatpush1.bf16.msra.mxu0 0
    %2216 = vmatprep.subr.bf16.mxu0 0
    %2217 = vmatpush1.bf16.msra.mxu0 0
    %2218 = vmatprep.subr.bf16.mxu0 0
    %2219 = vmatpush1.bf16.msra.mxu0 0
    %2220 = vmatprep.subr.bf16.mxu0 0
    %2221 = vmatpush1.bf16.msra.mxu0 0
    %2222 = vmatprep.subr.bf16.mxu0 0
    %2223 = vmatpush1.bf16.msra.mxu0 0
    %2224 = vmatprep.subr.bf16.mxu0 0
    %2225 = vmatpush1.bf16.msra.mxu0 0
    %2226 = vmatprep.subr.bf16.mxu0 0
    %2227 = vmatpush1.bf16.msra.mxu0 0
    %2228 = vmatprep.subr.bf16.mxu0 0
    %2229 = vmatpush1.bf16.msra.mxu0 0
    %2230 = vmatprep.mubr.bf16.mxu0 0
    %2231 = vmatmul.mubr.bf16.gmra.mrb[0].mxu0 %v2193
    %v2232 = vpop.f32.mrb[0].mxu0
    %v2233 = vadd.f32 0.0, %v2232
    %v2234 = vpop.f32.mrb[0].mxu0
    %v2235 = vpop.f32.mrb[0].mxu0
    %v2236 = vpop.f32.mrb[0].mxu0
    %2237 = vdwg.mxu0
    %2238 = vrot.lane.b32.xlu0 %v1695, 64
    %v2239 = vpop.permute.xlu0 %2238
    %v2241 = vsel %vm321, %v2183, 0
    %v2244 = vsel %vm812, %v2239, 0
    %2246 = vmatprep.subr.bf16.mxu0 0
    %2247 = vmatpush1.bf16.msra.mxu0 %v2244
    %2248 = vmatprep.subr.bf16.mxu0 0
    %2249 = vmatpush1.bf16.msra.mxu0 0
    %2250 = vmatprep.subr.bf16.mxu0 0
    %2251 = vmatpush1.bf16.msra.mxu0 0
    %2252 = vmatprep.subr.bf16.mxu0 0
    %2253 = vmatpush1.bf16.msra.mxu0 0
    %2254 = vmatprep.subr.bf16.mxu0 0
    %2255 = vmatpush1.bf16.msra.mxu0 0
    %2256 = vmatprep.subr.bf16.mxu0 0
    %2257 = vmatpush1.bf16.msra.mxu0 0
    %2258 = vmatprep.subr.bf16.mxu0 0
    %2259 = vmatpush1.bf16.msra.mxu0 0
    %2260 = vmatprep.subr.bf16.mxu0 0
    %2261 = vmatpush1.bf16.msra.mxu0 0
    %2262 = vmatprep.subr.bf16.mxu0 0
    %2263 = vmatpush1.bf16.msra.mxu0 0
    %2264 = vmatprep.subr.bf16.mxu0 0
    %2265 = vmatpush1.bf16.msra.mxu0 0
    %2266 = vmatprep.subr.bf16.mxu0 0
    %2267 = vmatpush1.bf16.msra.mxu0 0
    %2268 = vmatprep.subr.bf16.mxu0 0
    %2269 = vmatpush1.bf16.msra.mxu0 0
    %2270 = vmatprep.subr.bf16.mxu0 0
    %2271 = vmatpush1.bf16.msra.mxu0 0
    %2272 = vmatprep.subr.bf16.mxu0 0
    %2273 = vmatpush1.bf16.msra.mxu0 0
    %2274 = vmatprep.subr.bf16.mxu0 0
    %2275 = vmatpush1.bf16.msra.mxu0 0
    %2276 = vmatprep.subr.bf16.mxu0 0
    %2277 = vmatpush1.bf16.msra.mxu0 0
    %2278 = vmatprep.mubr.bf16.mxu0 0
    %2279 = vmatmul.mubr.bf16.gmra.mrb[0].mxu0 %v2241
    %v2280 = vpop.f32.mrb[0].mxu0
    %v2281 = vadd.f32 0.0, %v2280
    %v2282 = vpop.f32.mrb[0].mxu0
    %v2283 = vpop.f32.mrb[0].mxu0
    %v2284 = vpop.f32.mrb[0].mxu0
    %2285 = vdwg.mxu0
    %2286 = vrot.lane.b32.xlu0 %v1696, 64
    %v2287 = vpop.permute.xlu0 %2286
    %v2289 = vsel %vm321, %v2184, 0
    %v2292 = vsel %vm812, %v2287, 0
    %2294 = vmatprep.subr.bf16.mxu0 0
    %2295 = vmatpush1.bf16.msra.mxu0 %v2292
    %2296 = vmatprep.subr.bf16.mxu0 0
    %2297 = vmatpush1.bf16.msra.mxu0 0
    %2298 = vmatprep.subr.bf16.mxu0 0
    %2299 = vmatpush1.bf16.msra.mxu0 0
    %2300 = vmatprep.subr.bf16.mxu0 0
    %2301 = vmatpush1.bf16.msra.mxu0 0
    %2302 = vmatprep.subr.bf16.mxu0 0
    %2303 = vmatpush1.bf16.msra.mxu0 0
    %2304 = vmatprep.subr.bf16.mxu0 0
    %2305 = vmatpush1.bf16.msra.mxu0 0
    %2306 = vmatprep.subr.bf16.mxu0 0
    %2307 = vmatpush1.bf16.msra.mxu0 0
    %2308 = vmatprep.subr.bf16.mxu0 0
    %2309 = vmatpush1.bf16.msra.mxu0 0
    %2310 = vmatprep.subr.bf16.mxu0 0
    %2311 = vmatpush1.bf16.msra.mxu0 0
    %2312 = vmatprep.subr.bf16.mxu0 0
    %2313 = vmatpush1.bf16.msra.mxu0 0
    %2314 = vmatprep.subr.bf16.mxu0 0
    %2315 = vmatpush1.bf16.msra.mxu0 0
    %2316 = vmatprep.subr.bf16.mxu0 0
    %2317 = vmatpush1.bf16.msra.mxu0 0
    %2318 = vmatprep.subr.bf16.mxu0 0
    %2319 = vmatpush1.bf16.msra.mxu0 0
    %2320 = vmatprep.subr.bf16.mxu0 0
    %2321 = vmatpush1.bf16.msra.mxu0 0
    %2322 = vmatprep.subr.bf16.mxu0 0
    %2323 = vmatpush1.bf16.msra.mxu0 0
    %2324 = vmatprep.subr.bf16.mxu0 0
    %2325 = vmatpush1.bf16.msra.mxu0 0
    %2326 = vmatprep.mubr.bf16.mxu0 0
    %2327 = vmatmul.mubr.bf16.gmra.mrb[0].mxu0 %v2289
    %v2328 = vpop.f32.mrb[0].mxu0
    %v2329 = vadd.f32 0.0, %v2328
    %v2330 = vpop.f32.mrb[0].mxu0
    %v2331 = vpop.f32.mrb[0].mxu0
    %v2332 = vpop.f32.mrb[0].mxu0
    %2333 = vdwg.mxu0
    %2334 = vrot.lane.b32.xlu0 %v1697, 64
    %v2335 = vpop.permute.xlu0 %2334
    %v2337 = vsel %vm321, %v2185, 0
    %v2340 = vsel %vm812, %v2335, 0
    %2342 = vmatprep.subr.bf16.mxu0 0
    %2343 = vmatpush1.bf16.msra.mxu0 %v2340
    %2344 = vmatprep.subr.bf16.mxu0 0
    %2345 = vmatpush1.bf16.msra.mxu0 0
    %2346 = vmatprep.subr.bf16.mxu0 0
    %2347 = vmatpush1.bf16.msra.mxu0 0
    %2348 = vmatprep.subr.bf16.mxu0 0
    %2349 = vmatpush1.bf16.msra.mxu0 0
    %2350 = vmatprep.subr.bf16.mxu0 0
    %2351 = vmatpush1.bf16.msra.mxu0 0
    %2352 = vmatprep.subr.bf16.mxu0 0
    %2353 = vmatpush1.bf16.msra.mxu0 0
    %2354 = vmatprep.subr.bf16.mxu0 0
    %2355 = vmatpush1.bf16.msra.mxu0 0
    %2356 = vmatprep.subr.bf16.mxu0 0
    %2357 = vmatpush1.bf16.msra.mxu0 0
    %2358 = vmatprep.subr.bf16.mxu0 0
    %2359 = vmatpush1.bf16.msra.mxu0 0
    %2360 = vmatprep.subr.bf16.mxu0 0
    %2361 = vmatpush1.bf16.msra.mxu0 0
    %2362 = vmatprep.subr.bf16.mxu0 0
    %2363 = vmatpush1.bf16.msra.mxu0 0
    %2364 = vmatprep.subr.bf16.mxu0 0
    %2365 = vmatpush1.bf16.msra.mxu0 0
    %2366 = vmatprep.subr.bf16.mxu0 0
    %2367 = vmatpush1.bf16.msra.mxu0 0
    %2368 = vmatprep.subr.bf16.mxu0 0
    %2369 = vmatpush1.bf16.msra.mxu0 0
    %2370 = vmatprep.subr.bf16.mxu0 0
    %2371 = vmatpush1.bf16.msra.mxu0 0
    %2372 = vmatprep.subr.bf16.mxu0 0
    %2373 = vmatpush1.bf16.msra.mxu0 0
    %2374 = vmatprep.mubr.bf16.mxu0 0
    %2375 = vmatmul.mubr.bf16.gmra.mrb[0].mxu0 %v2337
    %v2376 = vpop.f32.mrb[0].mxu0
    %v2377 = vadd.f32 0.0, %v2376
    %v2378 = vpop.f32.mrb[0].mxu0
    %v2379 = vpop.f32.mrb[0].mxu0
    %v2380 = vpop.f32.mrb[0].mxu0
    %2381 = vdwg.mxu0
    %2382 = vrot.lane.b32.xlu0 %v1698, 64
    %v2383 = vpop.permute.xlu0 %2382
    %v2385 = vsel %vm321, %v2186, 0
    %v2388 = vsel %vm812, %v2383, 0
    %2390 = vmatprep.subr.bf16.mxu0 0
    %2391 = vmatpush1.bf16.msra.mxu0 %v2388
    %2392 = vmatprep.subr.bf16.mxu0 0
    %2393 = vmatpush1.bf16.msra.mxu0 0
    %2394 = vmatprep.subr.bf16.mxu0 0
    %2395 = vmatpush1.bf16.msra.mxu0 0
    %2396 = vmatprep.subr.bf16.mxu0 0
    %2397 = vmatpush1.bf16.msra.mxu0 0
    %2398 = vmatprep.subr.bf16.mxu0 0
    %2399 = vmatpush1.bf16.msra.mxu0 0
    %2400 = vmatprep.subr.bf16.mxu0 0
    %2401 = vmatpush1.bf16.msra.mxu0 0
    %2402 = vmatprep.subr.bf16.mxu0 0
    %2403 = vmatpush1.bf16.msra.mxu0 0
    %2404 = vmatprep.subr.bf16.mxu0 0
    %2405 = vmatpush1.bf16.msra.mxu0 0
    %2406 = vmatprep.subr.bf16.mxu0 0
    %2407 = vmatpush1.bf16.msra.mxu0 0
    %2408 = vmatprep.subr.bf16.mxu0 0
    %2409 = vmatpush1.bf16.msra.mxu0 0
    %2410 = vmatprep.subr.bf16.mxu0 0
    %2411 = vmatpush1.bf16.msra.mxu0 0
    %2412 = vmatprep.subr.bf16.mxu0 0
    %2413 = vmatpush1.bf16.msra.mxu0 0
    %2414 = vmatprep.subr.bf16.mxu0 0
    %2415 = vmatpush1.bf16.msra.mxu0 0
    %2416 = vmatprep.subr.bf16.mxu0 0
    %2417 = vmatpush1.bf16.msra.mxu0 0
    %2418 = vmatprep.subr.bf16.mxu0 0
    %2419 = vmatpush1.bf16.msra.mxu0 0
    %2420 = vmatprep.subr.bf16.mxu0 0
    %2421 = vmatpush1.bf16.msra.mxu0 0
    %2422 = vmatprep.mubr.bf16.mxu0 0
    %2423 = vmatmul.mubr.bf16.gmra.mrb[0].mxu0 %v2385
    %v2424 = vpop.f32.mrb[0].mxu0
    %v2425 = vadd.f32 0.0, %v2424
    %v2426 = vpop.f32.mrb[0].mxu0
    %v2427 = vpop.f32.mrb[0].mxu0
    %v2428 = vpop.f32.mrb[0].mxu0
    %2429 = vdwg.mxu0
    %2430 = vrot.lane.b32.xlu0 %v1699, 64
    %v2431 = vpop.permute.xlu0 %2430
    %v2433 = vsel %vm321, %v2187, 0
    %v2436 = vsel %vm812, %v2431, 0
    %2438 = vmatprep.subr.bf16.mxu0 0
    %2439 = vmatpush1.bf16.msra.mxu0 %v2436
    %2440 = vmatprep.subr.bf16.mxu0 0
    %2441 = vmatpush1.bf16.msra.mxu0 0
    %2442 = vmatprep.subr.bf16.mxu0 0
    %2443 = vmatpush1.bf16.msra.mxu0 0
    %2444 = vmatprep.subr.bf16.mxu0 0
    %2445 = vmatpush1.bf16.msra.mxu0 0
    %2446 = vmatprep.subr.bf16.mxu0 0
    %2447 = vmatpush1.bf16.msra.mxu0 0
    %2448 = vmatprep.subr.bf16.mxu0 0
    %2449 = vmatpush1.bf16.msra.mxu0 0
    %2450 = vmatprep.subr.bf16.mxu0 0
    %2451 = vmatpush1.bf16.msra.mxu0 0
    %2452 = vmatprep.subr.bf16.mxu0 0
    %2453 = vmatpush1.bf16.msra.mxu0 0
    %2454 = vmatprep.subr.bf16.mxu0 0
    %2455 = vmatpush1.bf16.msra.mxu0 0
    %2456 = vmatprep.subr.bf16.mxu0 0
    %2457 = vmatpush1.bf16.msra.mxu0 0
    %2458 = vmatprep.subr.bf16.mxu0 0
    %2459 = vmatpush1.bf16.msra.mxu0 0
    %2460 = vmatprep.subr.bf16.mxu0 0
    %2461 = vmatpush1.bf16.msra.mxu0 0
    %2462 = vmatprep.subr.bf16.mxu0 0
    %2463 = vmatpush1.bf16.msra.mxu0 0
    %2464 = vmatprep.subr.bf16.mxu0 0
    %2465 = vmatpush1.bf16.msra.mxu0 0
    %2466 = vmatprep.subr.bf16.mxu0 0
    %2467 = vmatpush1.bf16.msra.mxu0 0
    %2468 = vmatprep.subr.bf16.mxu0 0
    %2469 = vmatpush1.bf16.msra.mxu0 0
    %2470 = vmatprep.mubr.bf16.mxu0 0
    %2471 = vmatmul.mubr.bf16.gmra.mrb[0].mxu0 %v2433
    %v2472 = vpop.f32.mrb[0].mxu0
    %v2473 = vadd.f32 0.0, %v2472
    %v2474 = vpop.f32.mrb[0].mxu0
    %v2475 = vpop.f32.mrb[0].mxu0
    %v2476 = vpop.f32.mrb[0].mxu0
    %2477 = vdwg.mxu0
    %2478 = vrot.lane.b32.xlu0 %v1700, 64
    %v2479 = vpop.permute.xlu0 %2478
    %v2481 = vsel %vm321, %v2188, 0
    %v2484 = vsel %vm812, %v2479, 0
    %2486 = vmatprep.subr.bf16.mxu0 0
    %2487 = vmatpush1.bf16.msra.mxu0 %v2484
    %2488 = vmatprep.subr.bf16.mxu0 0
    %2489 = vmatpush1.bf16.msra.mxu0 0
    %2490 = vmatprep.subr.bf16.mxu0 0
    %2491 = vmatpush1.bf16.msra.mxu0 0
    %2492 = vmatprep.subr.bf16.mxu0 0
    %2493 = vmatpush1.bf16.msra.mxu0 0
    %2494 = vmatprep.subr.bf16.mxu0 0
    %2495 = vmatpush1.bf16.msra.mxu0 0
    %2496 = vmatprep.subr.bf16.mxu0 0
    %2497 = vmatpush1.bf16.msra.mxu0 0
    %2498 = vmatprep.subr.bf16.mxu0 0
    %2499 = vmatpush1.bf16.msra.mxu0 0
    %2500 = vmatprep.subr.bf16.mxu0 0
    %2501 = vmatpush1.bf16.msra.mxu0 0
    %2502 = vmatprep.subr.bf16.mxu0 0
    %2503 = vmatpush1.bf16.msra.mxu0 0
    %2504 = vmatprep.subr.bf16.mxu0 0
    %2505 = vmatpush1.bf16.msra.mxu0 0
    %2506 = vmatprep.subr.bf16.mxu0 0
    %2507 = vmatpush1.bf16.msra.mxu0 0
    %2508 = vmatprep.subr.bf16.mxu0 0
    %2509 = vmatpush1.bf16.msra.mxu0 0
    %2510 = vmatprep.subr.bf16.mxu0 0
    %2511 = vmatpush1.bf16.msra.mxu0 0
    %2512 = vmatprep.subr.bf16.mxu0 0
    %2513 = vmatpush1.bf16.msra.mxu0 0
    %2514 = vmatprep.subr.bf16.mxu0 0
    %2515 = vmatpush1.bf16.msra.mxu0 0
    %2516 = vmatprep.subr.bf16.mxu0 0
    %2517 = vmatpush1.bf16.msra.mxu0 0
    %2518 = vmatprep.mubr.bf16.mxu0 0
    %2519 = vmatmul.mubr.bf16.gmra.mrb[0].mxu0 %v2481
    %v2520 = vpop.f32.mrb[0].mxu0
    %v2521 = vadd.f32 0.0, %v2520
    %v2522 = vpop.f32.mrb[0].mxu0
    %v2523 = vpop.f32.mrb[0].mxu0
    %v2524 = vpop.f32.mrb[0].mxu0
    %2525 = vdwg.mxu0
    %2526 = vrot.lane.b32.xlu0 %v1701, 64
    %v2527 = vpop.permute.xlu0 %2526
    %v2529 = vsel %vm321, %v2189, 0
    %v2532 = vsel %vm812, %v2527, 0
    %2534 = vmatprep.subr.bf16.mxu0 0
    %2535 = vmatpush1.bf16.msra.mxu0 %v2532
    %2536 = vmatprep.subr.bf16.mxu0 0
    %2537 = vmatpush1.bf16.msra.mxu0 0
    %2538 = vmatprep.subr.bf16.mxu0 0
    %2539 = vmatpush1.bf16.msra.mxu0 0
    %2540 = vmatprep.subr.bf16.mxu0 0
    %2541 = vmatpush1.bf16.msra.mxu0 0
    %2542 = vmatprep.subr.bf16.mxu0 0
    %2543 = vmatpush1.bf16.msra.mxu0 0
    %2544 = vmatprep.subr.bf16.mxu0 0
    %2545 = vmatpush1.bf16.msra.mxu0 0
    %2546 = vmatprep.subr.bf16.mxu0 0
    %2547 = vmatpush1.bf16.msra.mxu0 0
    %2548 = vmatprep.subr.bf16.mxu0 0
    %2549 = vmatpush1.bf16.msra.mxu0 0
    %2550 = vmatprep.subr.bf16.mxu0 0
    %2551 = vmatpush1.bf16.msra.mxu0 0
    %2552 = vmatprep.subr.bf16.mxu0 0
    %2553 = vmatpush1.bf16.msra.mxu0 0
    %2554 = vmatprep.subr.bf16.mxu0 0
    %2555 = vmatpush1.bf16.msra.mxu0 0
    %2556 = vmatprep.subr.bf16.mxu0 0
    %2557 = vmatpush1.bf16.msra.mxu0 0
    %2558 = vmatprep.subr.bf16.mxu0 0
    %2559 = vmatpush1.bf16.msra.mxu0 0
    %2560 = vmatprep.subr.bf16.mxu0 0
    %2561 = vmatpush1.bf16.msra.mxu0 0
    %2562 = vmatprep.subr.bf16.mxu0 0
    %2563 = vmatpush1.bf16.msra.mxu0 0
    %2564 = vmatprep.subr.bf16.mxu0 0
    %2565 = vmatpush1.bf16.msra.mxu0 0
    %2566 = vmatprep.mubr.bf16.mxu0 0
    %2567 = vmatmul.mubr.bf16.gmra.mrb[0].mxu0 %v2529
    %v2568 = vpop.f32.mrb[0].mxu0
    %v2569 = vadd.f32 0.0, %v2568
    %v2570 = vpop.f32.mrb[0].mxu0
    %v2571 = vpop.f32.mrb[0].mxu0
    %v2572 = vpop.f32.mrb[0].mxu0
    %2573 = vdwg.mxu0
    %2574 = vst.msk [vmem:[#allocation2] sm:$0xff] %vm321, %v2233
    %2575 = vst.msk [vmem:[#allocation2 + $0x8] sm:$0xff] %vm321, %v2281
    %2578 = vrot.lane.b32.xlu0 %v2329, 8
    %v2579 = vpop.permute.xlu0 %2578
    %2580 = vrot.lane.b32.xlu0 %v2377, 8
    %v2581 = vpop.permute.xlu0 %2580
    %2584 = vst.msk [vmem:[#allocation2] sm:$0xff] %vm1202, %v2579
    %2585 = vst.msk [vmem:[#allocation2 + $0x8] sm:$0xff] %vm1202, %v2581
    %2588 = vrot.lane.b32.xlu0 %v2425, 16
    %v2589 = vpop.permute.xlu0 %2588
    %2590 = vrot.lane.b32.xlu0 %v2473, 16
    %v2591 = vpop.permute.xlu0 %2590
    %2594 = vst.msk [vmem:[#allocation2] sm:$0xff] %vm1213, %v2589
    %2595 = vst.msk [vmem:[#allocation2 + $0x8] sm:$0xff] %vm1213, %v2591
    %2598 = vrot.lane.b32.xlu0 %v2521, 24
    %v2599 = vpop.permute.xlu0 %2598
    %2600 = vrot.lane.b32.xlu0 %v2569, 24
    %v2601 = vpop.permute.xlu0 %2600
    %2604 = vst.msk [vmem:[#allocation2] sm:$0xff] %vm1224, %v2599
    %2605 = vst.msk [vmem:[#allocation2 + $0x8] sm:$0xff] %vm1224, %v2601
    %v2606 = vld [vmem:[#allocation2] sm:$0xff]
    %v2607 = vld [vmem:[#allocation2 + $0x8] sm:$0xff]
    %v2608 = vpack.c.bf16 %v2607, %v2606
    %s2609 = scalar_lea.vmem %s6, 16
    %v2610 = vld [vmem:[%s2609] sm:$0xf]
    %v2611 = vld [vmem:[%s2609 + $0x4] sm:$0xf]
    %v2612 = vld [vmem:[%s2609 + $0x8] sm:$0xf]
    %v2613 = vld [vmem:[%s2609 + $0xc] sm:$0xf]
    %s2614 = scalar_lea.vmem %s7, 1
    %v2615 = vld [vmem:[%s2614] sm:$0x1]
    %v2617 = vlaneseq
    %v2618 = vshrl.u32 %v2617, 7
    %v2619 = vsub.s32 0, %v2618
    %v2620 = vrot.slane %v2615, %v2619
    %v2626 = vunpack.c.l.b16 %v2610
    %v2627 = vunpack.c.l.b16 %v2611
    %v2628 = vunpack.c.l.b16 %v2612
    %v2629 = vunpack.c.l.b16 %v2613
    %v2630 = vpack.c.b16 %v2627, %v2626
    %v2631 = vpack.c.b16 %v2629, %v2628
    %v2635 = vsel %vm71, %v2608, 0
    %2637 = vmatprep.subr.bf16.mxu0 0
    %2638 = vmatpush1.bf16.msra.mxu0 %v2630
    %2639 = vmatprep.subr.bf16.mxu0 0
    %2640 = vmatpush1.bf16.msra.mxu0 %v2631
    %2641 = vmatprep.subr.bf16.mxu0 0
    %2642 = vmatpush1.bf16.msra.mxu0 0
    %2643 = vmatprep.subr.bf16.mxu0 0
    %2644 = vmatpush1.bf16.msra.mxu0 0
    %2645 = vmatprep.subr.bf16.mxu0 0
    %2646 = vmatpush1.bf16.msra.mxu0 0
    %2647 = vmatprep.subr.bf16.mxu0 0
    %2648 = vmatpush1.bf16.msra.mxu0 0
    %2649 = vmatprep.subr.bf16.mxu0 0
    %2650 = vmatpush1.bf16.msra.mxu0 0
    %2651 = vmatprep.subr.bf16.mxu0 0
    %2652 = vmatpush1.bf16.msra.mxu0 0
    %2653 = vmatprep.subr.bf16.mxu0 0
    %2654 = vmatpush1.bf16.msra.mxu0 0
    %2655 = vmatprep.subr.bf16.mxu0 0
    %2656 = vmatpush1.bf16.msra.mxu0 0
    %2657 = vmatprep.subr.bf16.mxu0 0
    %2658 = vmatpush1.bf16.msra.mxu0 0
    %2659 = vmatprep.subr.bf16.mxu0 0
    %2660 = vmatpush1.bf16.msra.mxu0 0
    %2661 = vmatprep.subr.bf16.mxu0 0
    %2662 = vmatpush1.bf16.msra.mxu0 0
    %2663 = vmatprep.subr.bf16.mxu0 0
    %2664 = vmatpush1.bf16.msra.mxu0 0
    %2665 = vmatprep.subr.bf16.mxu0 0
    %2666 = vmatpush1.bf16.msra.mxu0 0
    %2667 = vmatprep.subr.bf16.mxu0 0
    %2668 = vmatpush1.bf16.msra.mxu0 0
    %2669 = vmatprep.mubr.bf16.mxu0 0
    %2670 = vmatmul.mubr.bf16.gmra.mrb[0].mxu0 %v2635
    %v2671 = vpop.f32.mrb[0].mxu0
    %v2672 = vadd.f32 %v2620, %v2671
    %v2673 = vpop.f32.mrb[0].mxu0
    %v2674 = vpop.f32.mrb[0].mxu0
    %v2675 = vadd.f32 %v2620, %v2674
    %v2676 = vpop.f32.mrb[0].mxu0
    %2677 = vdwg.mxu0
    %v2678 = vadd.f32 %v2672, %v1586
    %v2679 = vadd.f32 %v2675, %v1587
    %s2680 = scalar_lea.vmem %s8, 1
    %v2681 = vld [vmem:[%s2680] sm:$0x1]
    %s2682 = scalar_lea.vmem %s9, 1
    %v2683 = vld [vmem:[%s2682] sm:$0x1]
    %v2684 = vsel %vm71, %v2678, 0.0
    %2685 = vadd.xlane.f32.xlu0 %v2684
    %v2686 = vpop.xlane.xlu0 %2685
    %v2687 = vsel %vm71, %v2679, 0.0
    %2688 = vadd.xlane.f32.xlu0 %v2687
    %v2689 = vpop.xlane.xlu0 %2688
    %v2690 = vmul.f32 %v2686, %v78
    %v2691 = vmul.f32 %v2689, %v78
    %v2692 = vsub.f32 %v2678, %v2690
    %v2693 = vsub.f32 %v2679, %v2691
    %v2694 = vmul.f32 %v2692, %v2692
    %v2695 = vmul.f32 %v2693, %v2693
    %v2696 = vsel %vm71, %v2694, 0.0
    %2697 = vadd.xlane.f32.xlu0 %v2696
    %v2698 = vpop.xlane.xlu0 %2697
    %v2699 = vsel %vm71, %v2695, 0.0
    %2700 = vadd.xlane.f32.xlu0 %v2699
    %v2701 = vpop.xlane.xlu0 %2700
    %v2702 = vmul.f32 %v2698, %v78
    %v2703 = vmul.f32 %v2701, %v78
    %v2704 = vadd.f32 %v2702, 1e-12
    %v2705 = vadd.f32 %v2703, 1e-12
    %v2706 = vrsqrt.pop %v2704
    %v2707 = vrsqrt.pop %v2705
    %v2708 = vmul.f32 %v2692, %v2706
    %v2709 = vmul.f32 %v2693, %v2707
    %v2711 = vlaneseq
    %v2712 = vshrl.u32 %v2711, 7
    %v2713 = vsub.s32 0, %v2712
    %v2714 = vrot.slane %v2681, %v2713
    %v2716 = vmul.f32 %v2708, %v2714
    %v2717 = vmul.f32 %v2709, %v2714
    %v2719 = vlaneseq
    %v2720 = vshrl.u32 %v2719, 7
    %v2721 = vsub.s32 0, %v2720
    %v2722 = vrot.slane %v2683, %v2721
    %v2724 = vadd.f32 %v2716, %v2722
    %v2725 = vadd.f32 %v2717, %v2722
    %v2726 = vpack.c.bf16 %v2725, %v2724
    %s2727 = scalar_lea.vmem %s10, 16
    %v2728 = vld [vmem:[%s2727] sm:$0xf]
    %v2729 = vld [vmem:[%s2727 + $0x4] sm:$0xf]
    %v2730 = vld [vmem:[%s2727 + $0x8] sm:$0xf]
    %v2731 = vld [vmem:[%s2727 + $0xc] sm:$0xf]
    %s2732 = scalar_lea.vmem %s11, 1
    %v2733 = vld [vmem:[%s2732] sm:$0x1]
    %v2735 = vlaneseq
    %v2736 = vshrl.u32 %v2735, 7
    %v2737 = vsub.s32 0, %v2736
    %v2738 = vrot.slane %v2733, %v2737
    %v2744 = vunpack.c.l.b16 %v2728
    %v2745 = vunpack.c.l.b16 %v2729
    %v2746 = vunpack.c.l.b16 %v2730
    %v2747 = vunpack.c.l.b16 %v2731
    %v2748 = vpack.c.b16 %v2745, %v2744
    %v2749 = vpack.c.b16 %v2747, %v2746
    %v2753 = vsel %vm71, %v2726, 0
    %2755 = vmatprep.subr.bf16.mxu0 0
    %2756 = vmatpush1.bf16.msra.mxu0 %v2748
    %2757 = vmatprep.subr.bf16.mxu0 0
    %2758 = vmatpush1.bf16.msra.mxu0 %v2749
    %2759 = vmatprep.subr.bf16.mxu0 0
    %2760 = vmatpush1.bf16.msra.mxu0 0
    %2761 = vmatprep.subr.bf16.mxu0 0
    %2762 = vmatpush1.bf16.msra.mxu0 0
    %2763 = vmatprep.subr.bf16.mxu0 0
    %2764 = vmatpush1.bf16.msra.mxu0 0
    %2765 = vmatprep.subr.bf16.mxu0 0
    %2766 = vmatpush1.bf16.msra.mxu0 0
    %2767 = vmatprep.subr.bf16.mxu0 0
    %2768 = vmatpush1.bf16.msra.mxu0 0
    %2769 = vmatprep.subr.bf16.mxu0 0
    %2770 = vmatpush1.bf16.msra.mxu0 0
    %2771 = vmatprep.subr.bf16.mxu0 0
    %2772 = vmatpush1.bf16.msra.mxu0 0
    %2773 = vmatprep.subr.bf16.mxu0 0
    %2774 = vmatpush1.bf16.msra.mxu0 0
    %2775 = vmatprep.subr.bf16.mxu0 0
    %2776 = vmatpush1.bf16.msra.mxu0 0
    %2777 = vmatprep.subr.bf16.mxu0 0
    %2778 = vmatpush1.bf16.msra.mxu0 0
    %2779 = vmatprep.subr.bf16.mxu0 0
    %2780 = vmatpush1.bf16.msra.mxu0 0
    %2781 = vmatprep.subr.bf16.mxu0 0
    %2782 = vmatpush1.bf16.msra.mxu0 0
    %2783 = vmatprep.subr.bf16.mxu0 0
    %2784 = vmatpush1.bf16.msra.mxu0 0
    %2785 = vmatprep.subr.bf16.mxu0 0
    %2786 = vmatpush1.bf16.msra.mxu0 0
    %2787 = vmatprep.mubr.bf16.mxu0 0
    %2788 = vmatmul.mubr.bf16.gmra.mrb[0].mxu0 %v2753
    %v2789 = vpop.f32.mrb[0].mxu0
    %v2790 = vadd.f32 %v2738, %v2789
    %v2791 = vpop.f32.mrb[0].mxu0
    %v2792 = vpop.f32.mrb[0].mxu0
    %v2793 = vadd.f32 %v2738, %v2792
    %v2794 = vpop.f32.mrb[0].mxu0
    %2795 = vdwg.mxu0
    %v2796 = vmul.f32 %v2790, 0.5
    %v2797 = vmul.f32 %v2793, 0.5
    %v2798 = vmul.f32 %v2790, 0.044715
    %v2799 = vmul.f32 %v2793, 0.044715
    %v2800 = vmul.f32 %v2798, %v2790
    %v2801 = vmul.f32 %v2799, %v2793
    %v2802 = vmul.f32 %v2800, %v2790
    %v2803 = vmul.f32 %v2801, %v2793
    %v2804 = vadd.f32 %v2790, %v2802
    %v2805 = vadd.f32 %v2793, %v2803
    %v2806 = vmul.f32 %v2804, 0.7978846
    %v2807 = vmul.f32 %v2805, 0.7978846
    %v2808 = vtanh.pop %v2806
    %v2809 = vtanh.pop %v2807
    %v2810 = vadd.f32 %v2808, 1.0
    %v2811 = vadd.f32 %v2809, 1.0
    %v2812 = vmul.f32 %v2796, %v2810
    %v2813 = vmul.f32 %v2797, %v2811
    %v2814 = vpack.c.bf16 %v2813, %v2812
    %s2815 = scalar_lea.vmem %s12, 64
    %v2816 = vld [vmem:[%s2815] sm:$0xf]
    %v2817 = vld [vmem:[%s2815 + $0x4] sm:$0xf]
    %v2818 = vld [vmem:[%s2815 + $0x8] sm:$0xf]
    %v2819 = vld [vmem:[%s2815 + $0xc] sm:$0xf]
    %v2820 = vld [vmem:[%s2815 + $0x10] sm:$0xf]
    %v2821 = vld [vmem:[%s2815 + $0x14] sm:$0xf]
    %v2822 = vld [vmem:[%s2815 + $0x18] sm:$0xf]
    %v2823 = vld [vmem:[%s2815 + $0x1c] sm:$0xf]
    %v2824 = vld [vmem:[%s2815 + $0x20] sm:$0xf]
    %v2825 = vld [vmem:[%s2815 + $0x24] sm:$0xf]
    %v2826 = vld [vmem:[%s2815 + $0x28] sm:$0xf]
    %v2827 = vld [vmem:[%s2815 + $0x2c] sm:$0xf]
    %v2828 = vld [vmem:[%s2815 + $0x30] sm:$0xf]
    %v2829 = vld [vmem:[%s2815 + $0x34] sm:$0xf]
    %v2830 = vld [vmem:[%s2815 + $0x38] sm:$0xf]
    %v2831 = vld [vmem:[%s2815 + $0x3c] sm:$0xf]
    %s2832 = scalar_lea.vmem %s13, 1
    %v2833 = vld [vmem:[%s2832] sm:$0x1]
    %v2835 = vlaneseq
    %v2836 = vshrl.u32 %v2835, 7
    %v2837 = vsub.s32 0, %v2836
    %v2838 = vrot.slane %v2833, %v2837
    %v2856 = vunpack.c.l.b16 %v2816
    %v2857 = vunpack.c.l.b16 %v2817
    %v2858 = vunpack.c.l.b16 %v2818
    %v2859 = vunpack.c.l.b16 %v2819
    %v2860 = vunpack.c.l.b16 %v2820
    %v2861 = vunpack.c.l.b16 %v2821
    %v2862 = vunpack.c.l.b16 %v2822
    %v2863 = vunpack.c.l.b16 %v2823
    %v2864 = vunpack.c.l.b16 %v2824
    %v2865 = vunpack.c.l.b16 %v2825
    %v2866 = vunpack.c.l.b16 %v2826
    %v2867 = vunpack.c.l.b16 %v2827
    %v2868 = vunpack.c.l.b16 %v2828
    %v2869 = vunpack.c.l.b16 %v2829
    %v2870 = vunpack.c.l.b16 %v2830
    %v2871 = vunpack.c.l.b16 %v2831
    %v2872 = vpack.c.b16 %v2857, %v2856
    %v2873 = vpack.c.b16 %v2859, %v2858
    %v2874 = vpack.c.b16 %v2861, %v2860
    %v2875 = vpack.c.b16 %v2863, %v2862
    %v2876 = vpack.c.b16 %v2865, %v2864
    %v2877 = vpack.c.b16 %v2867, %v2866
    %v2878 = vpack.c.b16 %v2869, %v2868
    %v2879 = vpack.c.b16 %v2871, %v2870
    %2888 = vmatprep.subr.bf16.mxu0 0
    %2889 = vmatpush1.bf16.msra.mxu0 %v2872
    %2890 = vmatprep.subr.bf16.mxu0 0
    %2891 = vmatpush1.bf16.msra.mxu0 %v2873
    %2892 = vmatprep.subr.bf16.mxu0 0
    %2893 = vmatpush1.bf16.msra.mxu0 %v2874
    %2894 = vmatprep.subr.bf16.mxu0 0
    %2895 = vmatpush1.bf16.msra.mxu0 %v2875
    %2896 = vmatprep.subr.bf16.mxu0 0
    %2897 = vmatpush1.bf16.msra.mxu0 %v2876
    %2898 = vmatprep.subr.bf16.mxu0 0
    %2899 = vmatpush1.bf16.msra.mxu0 %v2877
    %2900 = vmatprep.subr.bf16.mxu0 0
    %2901 = vmatpush1.bf16.msra.mxu0 %v2878
    %2902 = vmatprep.subr.bf16.mxu0 0
    %2903 = vmatpush1.bf16.msra.mxu0 %v2879
    %2904 = vmatprep.subr.bf16.mxu0 0
    %2905 = vmatpush1.bf16.msra.mxu0 0
    %2906 = vmatprep.subr.bf16.mxu0 0
    %2907 = vmatpush1.bf16.msra.mxu0 0
    %2908 = vmatprep.subr.bf16.mxu0 0
    %2909 = vmatpush1.bf16.msra.mxu0 0
    %2910 = vmatprep.subr.bf16.mxu0 0
    %2911 = vmatpush1.bf16.msra.mxu0 0
    %2912 = vmatprep.subr.bf16.mxu0 0
    %2913 = vmatpush1.bf16.msra.mxu0 0
    %2914 = vmatprep.subr.bf16.mxu0 0
    %2915 = vmatpush1.bf16.msra.mxu0 0
    %2916 = vmatprep.subr.bf16.mxu0 0
    %2917 = vmatpush1.bf16.msra.mxu0 0
    %2918 = vmatprep.subr.bf16.mxu0 0
    %2919 = vmatpush1.bf16.msra.mxu0 0
    %2920 = vmatprep.mubr.bf16.mxu0 0
    %2921 = vmatmul.mubr.bf16.gmra.mrb[0].mxu0 %v2814
    %v2922 = vpop.f32.mrb[0].mxu0
    %v2923 = vadd.f32 %v2838, %v2922
    %v2924 = vpop.f32.mrb[0].mxu0
    %v2925 = vpop.f32.mrb[0].mxu0
    %v2926 = vadd.f32 %v2838, %v2925
    %v2927 = vpop.f32.mrb[0].mxu0
    %2928 = vdwg.mxu0
    %v2929 = vadd.f32 %v2923, %v2724
    %v2930 = vadd.f32 %v2926, %v2725
    %s2931 = scalar_lea.vmem %s14, 1
    %v2932 = vld [vmem:[%s2931] sm:$0x1]
    %s2933 = scalar_lea.vmem %s15, 1
    %v2934 = vld [vmem:[%s2933] sm:$0x1]
    %v2935 = vsel %vm71, %v2929, 0.0
    %2936 = vadd.xlane.f32.xlu0 %v2935
    %v2937 = vpop.xlane.xlu0 %2936
    %v2938 = vsel %vm71, %v2930, 0.0
    %2939 = vadd.xlane.f32.xlu0 %v2938
    %v2940 = vpop.xlane.xlu0 %2939
    %v2941 = vmul.f32 %v2937, %v78
    %v2942 = vmul.f32 %v2940, %v78
    %v2943 = vsub.f32 %v2929, %v2941
    %v2944 = vsub.f32 %v2930, %v2942
    %v2945 = vmul.f32 %v2943, %v2943
    %v2946 = vmul.f32 %v2944, %v2944
    %v2947 = vsel %vm71, %v2945, 0.0
    %2948 = vadd.xlane.f32.xlu0 %v2947
    %v2949 = vpop.xlane.xlu0 %2948
    %v2950 = vsel %vm71, %v2946, 0.0
    %2951 = vadd.xlane.f32.xlu0 %v2950
    %v2952 = vpop.xlane.xlu0 %2951
    %v2953 = vmul.f32 %v2949, %v78
    %v2954 = vmul.f32 %v2952, %v78
    %v2955 = vadd.f32 %v2953, 1e-12
    %v2956 = vadd.f32 %v2954, 1e-12
    %v2957 = vrsqrt.pop %v2955
    %v2958 = vrsqrt.pop %v2956
    %v2959 = vmul.f32 %v2943, %v2957
    %v2960 = vmul.f32 %v2944, %v2958
    %v2962 = vlaneseq
    %v2963 = vshrl.u32 %v2962, 7
    %v2964 = vsub.s32 0, %v2963
    %v2965 = vrot.slane %v2932, %v2964
    %v2967 = vmul.f32 %v2959, %v2965
    %v2968 = vmul.f32 %v2960, %v2965
    %v2970 = vlaneseq
    %v2971 = vshrl.u32 %v2970, 7
    %v2972 = vsub.s32 0, %v2971
    %v2973 = vrot.slane %v2934, %v2972
    %v2975 = vadd.f32 %v2967, %v2973
    %v2976 = vadd.f32 %v2968, %v2973
    %v2977 = vpack.c.bf16 %v2975, %v2975
    %v2978 = vpack.c.bf16 %v2976, %v2976
    %v2979 = vld [vmem:[%s16] sm:$0xf]
    %v2980 = vld [vmem:[%s16 + $0x4] sm:$0xf]
    %v2981 = vld [vmem:[%s16 + $0x8] sm:$0xf]
    %v2982 = vld [vmem:[%s16 + $0xc] sm:$0xf]
    %v2983 = vld [vmem:[%s17] sm:$0x1]
    %v2985 = vlaneseq
    %v2986 = vshrl.u32 %v2985, 7
    %v2987 = vsub.s32 0, %v2986
    %v2988 = vrot.slane %v2983, %v2987
    %v2992 = vunpack.c.l.b16 %v2977
    %v2993 = vunpack.c.l.b16 %v2978
    %v2994 = vrot.slane %v2993, 7
    %vm2995 = vcmask 1041409
    %v2996 = vsel %vm2995, %v2994, %v2992
    %v2997 = vpack.c.b16 %v2996, %v2996
    %v3002 = vunpack.c.l.b16 %v2979
    %v3003 = vunpack.c.l.b16 %v2980
    %v3004 = vunpack.c.l.b16 %v2981
    %v3005 = vunpack.c.l.b16 %v2982
    %v3006 = vpack.c.b16 %v3003, %v3002
    %v3007 = vpack.c.b16 %v3005, %v3004
    %v3011 = vsel %vm71, %v2997, 0
    %3013 = vmatprep.subr.bf16.mxu0 0
    %3014 = vmatpush1.bf16.msra.mxu0 %v3006
    %3015 = vmatprep.subr.bf16.mxu0 0
    %3016 = vmatpush1.bf16.msra.mxu0 %v3007
    %3017 = vmatprep.subr.bf16.mxu0 0
    %3018 = vmatpush1.bf16.msra.mxu0 0
    %3019 = vmatprep.subr.bf16.mxu0 0
    %3020 = vmatpush1.bf16.msra.mxu0 0
    %3021 = vmatprep.subr.bf16.mxu0 0
    %3022 = vmatpush1.bf16.msra.mxu0 0
    %3023 = vmatprep.subr.bf16.mxu0 0
    %3024 = vmatpush1.bf16.msra.mxu0 0
    %3025 = vmatprep.subr.bf16.mxu0 0
    %3026 = vmatpush1.bf16.msra.mxu0 0
    %3027 = vmatprep.subr.bf16.mxu0 0
    %3028 = vmatpush1.bf16.msra.mxu0 0
    %3029 = vmatprep.subr.bf16.mxu0 0
    %3030 = vmatpush1.bf16.msra.mxu0 0
    %3031 = vmatprep.subr.bf16.mxu0 0
    %3032 = vmatpush1.bf16.msra.mxu0 0
    %3033 = vmatprep.subr.bf16.mxu0 0
    %3034 = vmatpush1.bf16.msra.mxu0 0
    %3035 = vmatprep.subr.bf16.mxu0 0
    %3036 = vmatpush1.bf16.msra.mxu0 0
    %3037 = vmatprep.subr.bf16.mxu0 0
    %3038 = vmatpush1.bf16.msra.mxu0 0
    %3039 = vmatprep.subr.bf16.mxu0 0
    %3040 = vmatpush1.bf16.msra.mxu0 0
    %3041 = vmatprep.subr.bf16.mxu0 0
    %3042 = vmatpush1.bf16.msra.mxu0 0
    %3043 = vmatprep.subr.bf16.mxu0 0
    %3044 = vmatpush1.bf16.msra.mxu0 0
    %3045 = vmatprep.mubr.bf16.mxu0 0
    %3046 = vmatmul.mubr.bf16.gmra.mrb[0].mxu0 %v3011
    %v3047 = vpop.f32.mrb[0].mxu0
    %v3048 = vadd.f32 %v2988, %v3047
    %v3049 = vpop.f32.mrb[0].mxu0
    %v3050 = vpop.f32.mrb[0].mxu0
    %v3051 = vpop.f32.mrb[0].mxu0
    %3052 = vdwg.mxu0
    %v3053 = vtanh.pop %v3048
    %v3054 = vpack.c.bf16 %v3053, %v3053
    %v3055 = vld [vmem:[%s18] sm:$0xf]
    %v3056 = vld [vmem:[%s18 + $0x4] sm:$0xf]
    %v3057 = vld [vmem:[%s18 + $0x8] sm:$0xf]
    %v3058 = vld [vmem:[%s18 + $0xc] sm:$0xf]
    %v3059 = vld [vmem:[%s19] sm:$0x1]
    %v3061 = vlaneseq
    %v3062 = vshrl.u32 %v3061, 7
    %v3063 = vsub.s32 0, %v3062
    %v3064 = vrot.slane %v3059, %v3063
    %v3070 = vunpack.c.l.b16 %v3055
    %v3071 = vunpack.c.l.b16 %v3056
    %v3072 = vunpack.c.l.b16 %v3057
    %v3073 = vunpack.c.l.b16 %v3058
    %v3074 = vpack.c.b16 %v3071, %v3070
    %v3075 = vpack.c.b16 %v3073, %v3072
    %v3079 = vsel %vm71, %v3054, 0
    %3081 = vmatprep.subr.bf16.mxu0 0
    %3082 = vmatpush1.bf16.msra.mxu0 %v3074
    %3083 = vmatprep.subr.bf16.mxu0 0
    %3084 = vmatpush1.bf16.msra.mxu0 %v3075
    %3085 = vmatprep.subr.bf16.mxu0 0
    %3086 = vmatpush1.bf16.msra.mxu0 0
    %3087 = vmatprep.subr.bf16.mxu0 0
    %3088 = vmatpush1.bf16.msra.mxu0 0
    %3089 = vmatprep.subr.bf16.mxu0 0
    %3090 = vmatpush1.bf16.msra.mxu0 0
    %3091 = vmatprep.subr.bf16.mxu0 0
    %3092 = vmatpush1.bf16.msra.mxu0 0
    %3093 = vmatprep.subr.bf16.mxu0 0
    %3094 = vmatpush1.bf16.msra.mxu0 0
    %3095 = vmatprep.subr.bf16.mxu0 0
    %3096 = vmatpush1.bf16.msra.mxu0 0
    %3097 = vmatprep.subr.bf16.mxu0 0
    %3098 = vmatpush1.bf16.msra.mxu0 0
    %3099 = vmatprep.subr.bf16.mxu0 0
    %3100 = vmatpush1.bf16.msra.mxu0 0
    %3101 = vmatprep.subr.bf16.mxu0 0
    %3102 = vmatpush1.bf16.msra.mxu0 0
    %3103 = vmatprep.subr.bf16.mxu0 0
    %3104 = vmatpush1.bf16.msra.mxu0 0
    %3105 = vmatprep.subr.bf16.mxu0 0
    %3106 = vmatpush1.bf16.msra.mxu0 0
    %3107 = vmatprep.subr.bf16.mxu0 0
    %3108 = vmatpush1.bf16.msra.mxu0 0
    %3109 = vmatprep.subr.bf16.mxu0 0
    %3110 = vmatpush1.bf16.msra.mxu0 0
    %3111 = vmatprep.subr.bf16.mxu0 0
    %3112 = vmatpush1.bf16.msra.mxu0 0
    %3113 = vmatprep.mubr.bf16.mxu0 0
    %3114 = vmatmul.mubr.bf16.gmra.mrb[0].mxu0 %v3079
    %v3115 = vpop.f32.mrb[0].mxu0
    %v3116 = vadd.f32 %v3064, %v3115
    %v3117 = vpop.f32.mrb[0].mxu0
    %v3118 = vpop.f32.mrb[0].mxu0
    %v3119 = vpop.f32.mrb[0].mxu0
    %3120 = vdwg.mxu0
    %3121 = vst [vmem:[#allocation3] sm:$0xff] 0.0
    %v3124 = vrot.slane %v2976, 7
    %v3125 = vsel %vm2995, %v3124, %v2975
    %vm3127 = vcmask 254976
    %3128 = vst.msk [vmem:[#allocation3] sm:$0x3] %vm3127, %v3125
    %3130 = vrot.lane.b32.xlu0 %v3053, 32
    %v3131 = vpop.permute.xlu0 %3130
    %vm3133 = vcmask 517376
    %3134 = vst.msk [vmem:[#allocation3] sm:$0x3] %vm3133, %v3131
    %3136 = vrot.lane.b32.xlu0 %v3116, 64
    %v3137 = vpop.permute.xlu0 %3136
    %vm3139 = vcmask 542208
    %3140 = vst.msk [vmem:[#allocation3] sm:$0x3] %vm3139, %v3137
    // Predicated region
    $region82: #{tpu_custom_call.1} parent=1 // pred_check
      _
    $region83: #{tpu_custom_call.1} parent=1 // pred_check_branch
      %3142 = sbr.rel (0) target = $region85
    $region84: #{tpu_custom_call.1} parent=1 // pred_region
      %s3144 = ssub.s32 128, 128
      %3145 = vsyncadd [#allocation4], %s3144
      %s3147 = sshll.u32 [#allocation3], 4
      %s3148 = int_to_ptr.vmem [resolvable:$true] %s3147
      %3150 = dma.vmem_to_hbm [thread:$0]  %s3148, 128, %s20, [#allocation4]
    $region85: #{tpu_custom_call.1} parent=1 // pred_fallthru
      _
    // Predicated region
    $region86: #{tpu_custom_call.1} parent=1 // pred_check
      _
    $region87: #{tpu_custom_call.1} parent=1 // pred_check_branch
      %3152 = sbr.rel (0) target = $region89
    $region88: #{tpu_custom_call.1} parent=1 // pred_region
      %3153 = dma.done [#allocation4], 128
    $region89: #{tpu_custom_call.1} parent=1 // pred_fallthru
      _
    %3154 = vsyncpa [#allocation4], 1

</llo_original>
